<compile_context>
chip_gen: v7x
topology: tpu7x:2x2x1
jax: 0.10.0
libtpu: 0.0.40
codegen_flags: <defaults>
</compile_context>

<pallas_src>
import jax
import jax.numpy as jnp
from jax.experimental import pallas as pl
from jax.experimental.pallas import tpu as pltpu

# --- small synthetic CLIP-text config (last dims lane-dense multiples of 128) ----------
B, S, D = 2, 8, 128         # batch, max_length (seq), transformer width
H = 4                       # attention heads
HD = D // H                 # head dim
MLP = 4 * D                 # mlp hidden
L = 2                       # transformer layers
VOCAB = 99                  # vocab size
DP = 128                    # text_projection output dim (embed dim)
N_REPEAT = 1                # module default n_repeat
EPS = 1e-5                  # nn.LayerNorm default eps


def _layer_norm(x, w, b):
    mu = jnp.mean(x, axis=-1, keepdims=True)
    var = jnp.mean((x - mu) ** 2, axis=-1, keepdims=True)
    return (x - mu) * jax.lax.rsqrt(var + EPS) * w + b


# --- the fused kernel: grid iterates over layers; head fused into the last step --------
def clip_text_kernel(eot_ref,                              # scalar prefetch: (B,) int32 in SMEM
                     x_ref, ln1w_ref, ln1b_ref, wqkv_ref, bqkv_ref,
                     wo_ref, bo_ref, ln2w_ref, ln2b_ref,
                     w1_ref, b1_ref, w2_ref, b2_ref,
                     lnfw_ref, lnfb_ref, proj_ref,
                     out_ref,                              # (B, DP) f32 (written at l == L-1)
                     x_scr, mask_scr):                     # VMEM scratch
    l = pl.program_id(0)

    @pl.when(l == 0)
    def _init():
        x_scr[...] = x_ref[...]
        row = jax.lax.broadcasted_iota(jnp.int32, (S, S), 0)
        col = jax.lax.broadcasted_iota(jnp.int32, (S, S), 1)
        mask_scr[...] = jnp.where(col <= row, 0.0, -jnp.inf).astype(jnp.float32)

    x = x_scr[...]                                         # (B, S, D) f32, layer-resident
    mask = mask_scr[...]                                   # (S, S) f32, built once

    # ---- residual block 1: multi-head causal self-attention ----
    h = _layer_norm(x, ln1w_ref[0], ln1b_ref[0])
    qkv = jnp.einsum('bsd,de->bse', h.astype(jnp.bfloat16), wqkv_ref[0],
                     preferred_element_type=jnp.float32) + bqkv_ref[0]
    q = qkv[:, :, 0 * D:1 * D]
    k = qkv[:, :, 1 * D:2 * D]
    v = qkv[:, :, 2 * D:3 * D]
    wo = wo_ref[0]                                         # (D, D) bf16

    scale = 1.0 / (HD ** 0.5)
    attn = jnp.zeros((B, S, D), jnp.float32)
    for hi in range(H):                                    # static head loop
        sl = slice(hi * HD, (hi + 1) * HD)
        qh = q[:, :, sl].astype(jnp.bfloat16)
        kh = k[:, :, sl].astype(jnp.bfloat16)
        vh = v[:, :, sl].astype(jnp.bfloat16)
        s = jnp.einsum('bqd,bkd->bqk', qh, kh,
                       preferred_element_type=jnp.float32) * scale + mask
        p = jax.nn.softmax(s, axis=-1)                     # f32
        oh = jnp.einsum('bqk,bkd->bqd', p.astype(jnp.bfloat16), vh,
                        preferred_element_type=jnp.float32)
        # fold this head straight into the output projection (no concatenate):
        attn = attn + jnp.einsum('bqd,de->bqe', oh.astype(jnp.bfloat16), wo[sl, :],
                                 preferred_element_type=jnp.float32)
    x = x + attn + bo_ref[0]

    # ---- residual block 2: MLP with QuickGELU ----
    h2 = _layer_norm(x, ln2w_ref[0], ln2b_ref[0])
    h2 = jnp.einsum('bsd,de->bse', h2.astype(jnp.bfloat16), w1_ref[0],
                    preferred_element_type=jnp.float32) + b1_ref[0]
    h2 = h2 * jax.nn.sigmoid(1.702 * h2)                   # QuickGELU, f32
    h2 = jnp.einsum('bse,ed->bsd', h2.astype(jnp.bfloat16), w2_ref[0],
                    preferred_element_type=jnp.float32) + b2_ref[0]
    x = x + h2

    x_scr[...] = x                                         # carry to next layer

    # ---- fused head on the last layer: EOT gather + ln_final + projection + L2 norm ----
    @pl.when(l == L - 1)
    def _head():
        rows = []
        for b in range(B):                                 # B is tiny, static loop
            pos = jax.lax.broadcasted_iota(jnp.int32, (S, D), 0)            # lane-dense
            sel = (pos == eot_ref[b]).astype(jnp.float32)                   # one-hot rows
            rows.append(jnp.sum(x[b] * sel, axis=0, keepdims=True))         # (1, D)
        xe = jnp.concatenate(rows, axis=0)                                  # (B, D)
        hf = _layer_norm(xe, lnfw_ref[...], lnfb_ref[...])
        z = jnp.dot(hf.astype(jnp.bfloat16), proj_ref[...],
                    preferred_element_type=jnp.float32)                     # (B, DP)
        inv_norm = jax.lax.rsqrt(jnp.sum(z * z, axis=-1, keepdims=True) + 1e-12)
        out_ref[...] = z * inv_norm


# --- wrapper: encode_text semantics -----------------------------------------------------
def encode_text(tokens, params):
    # token + positional embedding (cheap glue gather in plain JAX)
    # TODO(synk): could be fused into the l==0 step via a scalar-prefetched id table.
    x = (params['token_embedding'][tokens] + params['positional_embedding']).astype(jnp.float32)
    # EOT position = highest token id (as in real CLIP); scalar-prefetched into SMEM.
    eot_idx = jnp.argmax(tokens, axis=-1).astype(jnp.int32)

    layer_args = [params['ln1_w'], params['ln1_b'], params['wqkv'], params['bqkv'],
                  params['wo'], params['bo'], params['ln2_w'], params['ln2_b'],
                  params['w1'], params['b1'], params['w2'], params['b2']]
    head_args = [params['lnf_w'], params['lnf_b'], params['text_projection']]

    in_specs = [pl.BlockSpec((B, S, D), lambda l, eot: (0, 0, 0))]
    for p in layer_args:
        in_specs.append(pl.BlockSpec((1,) + p.shape[1:], lambda l, eot: (l, 0, 0)))
    in_specs += [
        pl.BlockSpec((1, D), lambda l, eot: (0, 0)),      # lnf_w
        pl.BlockSpec((1, D), lambda l, eot: (0, 0)),      # lnf_b
        pl.BlockSpec((D, DP), lambda l, eot: (0, 0)),     # text_projection
    ]

    z = pl.pallas_call(
        clip_text_kernel,
        out_shape=jax.ShapeDtypeStruct((B, DP), jnp.float32),
        grid_spec=pltpu.PrefetchScalarGridSpec(
            num_scalar_prefetch=1,
            grid=(L,),
            in_specs=in_specs,
            out_specs=pl.BlockSpec((B, DP), lambda l, eot: (0, 0)),
            scratch_shapes=[pltpu.VMEM((B, S, D), jnp.float32),   # layer-resident activation
                            pltpu.VMEM((S, S), jnp.float32)]),    # causal mask (built once)
        compiler_params=pltpu.CompilerParams(
            dimension_semantics=("arbitrary",)),
    )(eot_idx, x, *layer_args, *head_args)
    return z                                                # L2-normalized (B, DP)


def frozen_clip_text_encode(tokens, params, n_repeat=N_REPEAT):
    """forward() + encode(): normalized z, then 'b 1 d -> b k d' repeat."""
    z = encode_text(tokens, params)                         # (B, DP)
    z = z[:, None, :]                                       # (B, 1, DP)
    z = jnp.repeat(z, n_repeat, axis=1)                     # (B, n_repeat, DP)
    return z


# --- deterministic synthetic parameters --------------------------------------------------
def init_params(key):
    ks = jax.random.split(key, 8)

    def nrm(k, shape, scale=0.02, dtype=jnp.float32):
        return (scale * jax.random.normal(k, shape)).astype(dtype)

    bf16 = jnp.bfloat16
    return {
        'token_embedding': nrm(ks[0], (VOCAB, D)),
        'positional_embedding': nrm(ks[1], (S, D), 0.01),
        'ln1_w': jnp.ones((L, 1, D), jnp.float32),
        'ln1_b': jnp.zeros((L, 1, D), jnp.float32),
        'wqkv': nrm(ks[2], (L, D, 3 * D), dtype=bf16),
        'bqkv': jnp.zeros((L, 1, 3 * D), jnp.float32),
        'wo': nrm(ks[3], (L, D, D), dtype=bf16),
        'bo': jnp.zeros((L, 1, D), jnp.float32),
        'ln2_w': jnp.ones((L, 1, D), jnp.float32),
        'ln2_b': jnp.zeros((L, 1, D), jnp.float32),
        'w1': nrm(ks[4], (L, D, MLP), dtype=bf16),
        'b1': jnp.zeros((L, 1, MLP), jnp.float32),
        'w2': nrm(ks[5], (L, MLP, D), dtype=bf16),
        'b2': jnp.zeros((L, 1, D), jnp.float32),
        'lnf_w': jnp.ones((1, D), jnp.float32),
        'lnf_b': jnp.zeros((1, D), jnp.float32),
        'text_projection': nrm(ks[6], (D, DP), dtype=bf16),
    }


if __name__ == "__main__":
    key = jax.random.PRNGKey(0)
    pkey, tkey = jax.random.split(key)
    params = init_params(pkey)
    # synthetic "tokenized" input (stand-in for clip.tokenize output)
    tokens = jax.random.randint(tkey, (B, S), 0, VOCAB, dtype=jnp.int32)

    z = frozen_clip_text_encode(tokens, params)
    z = jax.block_until_ready(z)

    assert z.shape == (B, N_REPEAT, DP)
    assert z.dtype == jnp.float32
    # rows are L2-normalized along the feature dim
    norms = jnp.linalg.norm(z[:, 0, :], axis=-1)
    assert bool(jnp.all(jnp.abs(norms - 1.0) < 1e-3))
    print("KERNEL_OK")
</pallas_src>

<mosaic_0001>
module attributes {stable_mosaic.version = 11 : i64} {
  func.func @clip_text_kernel(%arg0: i32, %arg1: memref<2xi32, #tpu.memory_space<smem>>, %arg2: memref<2x8x128xf32, #tpu.memory_space<vmem>>, %arg3: memref<1x1x128xf32, #tpu.memory_space<vmem>>, %arg4: memref<1x1x128xf32, #tpu.memory_space<vmem>>, %arg5: memref<1x128x384xbf16, #tpu.memory_space<vmem>>, %arg6: memref<1x1x384xf32, #tpu.memory_space<vmem>>, %arg7: memref<1x128x128xbf16, #tpu.memory_space<vmem>>, %arg8: memref<1x1x128xf32, #tpu.memory_space<vmem>>, %arg9: memref<1x1x128xf32, #tpu.memory_space<vmem>>, %arg10: memref<1x1x128xf32, #tpu.memory_space<vmem>>, %arg11: memref<1x128x512xbf16, #tpu.memory_space<vmem>>, %arg12: memref<1x1x512xf32, #tpu.memory_space<vmem>>, %arg13: memref<1x512x128xbf16, #tpu.memory_space<vmem>>, %arg14: memref<1x1x128xf32, #tpu.memory_space<vmem>>, %arg15: memref<1x128xf32, #tpu.memory_space<vmem>>, %arg16: memref<1x128xf32, #tpu.memory_space<vmem>>, %arg17: memref<128x128xbf16, #tpu.memory_space<vmem>>, %arg18: memref<2x128xf32, #tpu.memory_space<vmem>>, %arg19: memref<2x8x128xf32, #tpu.memory_space<vmem>>, %arg20: memref<8x8xf32, #tpu.memory_space<vmem>>) attributes {dimension_semantics = [#tpu.dimension_semantics<arbitrary>], iteration_bounds = array<i64: 2>, scalar_prefetch = 1 : i64, scratch_operands = 2 : i64, tpu.core_type = #tpu.core_type<tc>, window_params = [{pipeline_mode = #tpu.pipeline_mode<synchronous>, transform_indices = @transform_0, window_bounds = array<i64: 2, 8, 128>}, {transform_indices = @transform_1, window_bounds = array<i64: 1, 1, 128>}, {transform_indices = @transform_2, window_bounds = array<i64: 1, 1, 128>}, {transform_indices = @transform_3, window_bounds = array<i64: 1, 128, 384>}, {transform_indices = @transform_4, window_bounds = array<i64: 1, 1, 384>}, {transform_indices = @transform_5, window_bounds = array<i64: 1, 128, 128>}, {transform_indices = @transform_6, window_bounds = array<i64: 1, 1, 128>}, {transform_indices = @transform_7, window_bounds = array<i64: 1, 1, 128>}, {transform_indices = @transform_8, window_bounds = array<i64: 1, 1, 128>}, {transform_indices = @transform_9, window_bounds = array<i64: 1, 128, 512>}, {transform_indices = @transform_10, window_bounds = array<i64: 1, 1, 512>}, {transform_indices = @transform_11, window_bounds = array<i64: 1, 512, 128>}, {transform_indices = @transform_12, window_bounds = array<i64: 1, 1, 128>}, {pipeline_mode = #tpu.pipeline_mode<synchronous>, transform_indices = @transform_13, window_bounds = array<i64: 1, 128>}, {pipeline_mode = #tpu.pipeline_mode<synchronous>, transform_indices = @transform_14, window_bounds = array<i64: 1, 128>}, {pipeline_mode = #tpu.pipeline_mode<synchronous>, transform_indices = @transform_15, window_bounds = array<i64: 128, 128>}, {pipeline_mode = #tpu.pipeline_mode<synchronous>, transform_indices = @transform_16, window_bounds = array<i64: 2, 128>}]} {
    %c0_i32 = arith.constant 0 : i32
    %0 = arith.cmpi eq, %arg0, %c0_i32 : i32
    %1 = arith.extui %0 : i1 to i32
    %c0_i32_0 = arith.constant 0 : i32
    %2 = arith.cmpi ne, %1, %c0_i32_0 : i32
    scf.if %2 {
      %c0_88 = arith.constant 0 : index
      %c0_89 = arith.constant 0 : index
      %c0_90 = arith.constant 0 : index
      %229 = vector.load %arg2[%c0_88, %c0_89, %c0_90] : memref<2x8x128xf32, #tpu.memory_space<vmem>>, vector<2x8x128xf32>
      %c0_91 = arith.constant 0 : index
      %c0_92 = arith.constant 0 : index
      %c0_93 = arith.constant 0 : index
      %230 = vector.load %arg19[%c0_91, %c0_92, %c0_93] : memref<2x8x128xf32, #tpu.memory_space<vmem>>, vector<2x8x128xf32>
      tpu.vector_store %arg19[%c0_91, %c0_92, %c0_93], %229 {strides = array<i32>} : memref<2x8x128xf32, #tpu.memory_space<vmem>>, vector<2x8x128xf32>,
      %231 = tpu.iota {dimensions = array<i32: 0>} : vector<8x8xi32>
      %232 = tpu.iota {dimensions = array<i32: 1>} : vector<8x8xi32>
      %233 = arith.cmpi sle, %232, %231 : vector<8x8xi32>
      %cst_94 = arith.constant 0.000000e+00 : f32
      %cst_95 = arith.constant 0xFF800000 : f32
      %234 = vector.broadcast %cst_94 : f32 to vector<8x8xf32>
      %235 = vector.broadcast %cst_95 : f32 to vector<8x8xf32>
      %236 = arith.select %233, %234, %235 : vector<8x8xi1>, vector<8x8xf32>
      %c0_96 = arith.constant 0 : index
      %c0_97 = arith.constant 0 : index
      %237 = vector.load %arg20[%c0_96, %c0_97] : memref<8x8xf32, #tpu.memory_space<vmem>>, vector<8x8xf32>
      tpu.vector_store %arg20[%c0_96, %c0_97], %236 {strides = array<i32>} : memref<8x8xf32, #tpu.memory_space<vmem>>, vector<8x8xf32>,
    } else {
    }
    %c0 = arith.constant 0 : index
    %c0_1 = arith.constant 0 : index
    %c0_2 = arith.constant 0 : index
    %3 = vector.load %arg19[%c0, %c0_1, %c0_2] : memref<2x8x128xf32, #tpu.memory_space<vmem>>, vector<2x8x128xf32>
    %c0_3 = arith.constant 0 : index
    %c0_4 = arith.constant 0 : index
    %4 = vector.load %arg20[%c0_3, %c0_4] : memref<8x8xf32, #tpu.memory_space<vmem>>, vector<8x8xf32>
    %c0_5 = arith.constant 0 : index
    %c0_6 = arith.constant 0 : index
    %c0_7 = arith.constant 0 : index
    %5 = vector.load %arg3[%c0_5, %c0_6, %c0_7] : memref<1x1x128xf32, #tpu.memory_space<vmem>>, vector<1x1x128xf32>
    %6 = vector.shape_cast %5 : vector<1x1x128xf32> to vector<1x128xf32>
    %c0_8 = arith.constant 0 : index
    %c0_9 = arith.constant 0 : index
    %c0_10 = arith.constant 0 : index
    %7 = vector.load %arg4[%c0_8, %c0_9, %c0_10] : memref<1x1x128xf32, #tpu.memory_space<vmem>>, vector<1x1x128xf32>
    %8 = vector.shape_cast %7 : vector<1x1x128xf32> to vector<1x128xf32>
    %cst = arith.constant dense<0.000000e+00> : vector<2x8xf32>
    %9 = vector.multi_reduction <add>, %3, %cst [2] : vector<2x8x128xf32> to vector<2x8xf32>
    %10 = vector.shape_cast %9 : vector<2x8xf32> to vector<2x8x1xf32>
    %cst_11 = arith.constant 1.280000e+02 : f32
    %11 = vector.broadcast %cst_11 : f32 to vector<2x8x1xf32>
    %12 = arith.divf %10, %11 : vector<2x8x1xf32>
    %13 = vector.broadcast %12 : vector<2x8x1xf32> to vector<2x8x128xf32>
    %14 = arith.subf %3, %13 : vector<2x8x128xf32>
    %15 = arith.mulf %14, %14 : vector<2x8x128xf32>
    %cst_12 = arith.constant dense<0.000000e+00> : vector<2x8xf32>
    %16 = vector.multi_reduction <add>, %15, %cst_12 [2] : vector<2x8x128xf32> to vector<2x8xf32>
    %17 = vector.shape_cast %16 : vector<2x8xf32> to vector<2x8x1xf32>
    %cst_13 = arith.constant 1.280000e+02 : f32
    %18 = vector.broadcast %cst_13 : f32 to vector<2x8x1xf32>
    %19 = arith.divf %17, %18 : vector<2x8x1xf32>
    %20 = vector.broadcast %12 : vector<2x8x1xf32> to vector<2x8x128xf32>
    %21 = arith.subf %3, %20 : vector<2x8x128xf32>
    %cst_14 = arith.constant 9.99999974E-6 : f32
    %22 = vector.broadcast %cst_14 : f32 to vector<2x8x1xf32>
    %23 = arith.addf %19, %22 : vector<2x8x1xf32>
    %24 = math.rsqrt %23 : vector<2x8x1xf32>
    %25 = vector.broadcast %24 : vector<2x8x1xf32> to vector<2x8x128xf32>
    %26 = arith.mulf %21, %25 : vector<2x8x128xf32>
    %27 = vector.shape_cast %6 : vector<1x128xf32> to vector<1x1x128xf32>
    %28 = vector.broadcast %27 : vector<1x1x128xf32> to vector<2x8x128xf32>
    %29 = arith.mulf %26, %28 : vector<2x8x128xf32>
    %30 = vector.shape_cast %8 : vector<1x128xf32> to vector<1x1x128xf32>
    %31 = vector.broadcast %30 : vector<1x1x128xf32> to vector<2x8x128xf32>
    %32 = arith.addf %29, %31 : vector<2x8x128xf32>
    %33 = arith.truncf %32 : vector<2x8x128xf32> to vector<2x8x128xbf16>
    %c0_15 = arith.constant 0 : index
    %c0_16 = arith.constant 0 : index
    %c0_17 = arith.constant 0 : index
    %34 = vector.load %arg5[%c0_15, %c0_16, %c0_17] : memref<1x128x384xbf16, #tpu.memory_space<vmem>>, vector<1x128x384xbf16>
    %35 = vector.shape_cast %34 : vector<1x128x384xbf16> to vector<128x384xbf16>
    "tpu.trace_start"() <{level = 10 : i32, message = "bsd,de->bse"}> : () -> ()
    %cst_18 = arith.constant dense<0.000000e+00> : vector<2x8x384xf32>
    %36 = tpu.matmul %33, %35, %cst_18 {dimension_numbers = #tpu.dot_dimension_numbers<[2], [0], [0, 1], [1], [0, 0, 0, 1, 1, 1], [], []>} : vector<2x8x128xbf16>, vector<128x384xbf16>, vector<2x8x384xf32> -> vector<2x8x384xf32>
    "tpu.trace_stop"() : () -> ()
    %c0_19 = arith.constant 0 : index
    %c0_20 = arith.constant 0 : index
    %c0_21 = arith.constant 0 : index
    %37 = vector.load %arg6[%c0_19, %c0_20, %c0_21] : memref<1x1x384xf32, #tpu.memory_space<vmem>>, vector<1x1x384xf32>
    %38 = vector.shape_cast %37 : vector<1x1x384xf32> to vector<1x384xf32>
    %39 = vector.shape_cast %38 : vector<1x384xf32> to vector<1x1x384xf32>
    %40 = vector.broadcast %39 : vector<1x1x384xf32> to vector<2x8x384xf32>
    %41 = arith.addf %36, %40 : vector<2x8x384xf32>
    %42 = vector.extract_strided_slice %41 {offsets = [0, 0, 0], sizes = [2, 8, 128], strides = [1, 1, 1]} : vector<2x8x384xf32> to vector<2x8x128xf32>
    %43 = vector.extract_strided_slice %41 {offsets = [0, 0, 128], sizes = [2, 8, 128], strides = [1, 1, 1]} : vector<2x8x384xf32> to vector<2x8x128xf32>
    %44 = vector.extract_strided_slice %41 {offsets = [0, 0, 256], sizes = [2, 8, 128], strides = [1, 1, 1]} : vector<2x8x384xf32> to vector<2x8x128xf32>
    %c0_22 = arith.constant 0 : index
    %c0_23 = arith.constant 0 : index
    %c0_24 = arith.constant 0 : index
    %45 = vector.load %arg7[%c0_22, %c0_23, %c0_24] : memref<1x128x128xbf16, #tpu.memory_space<vmem>>, vector<1x128x128xbf16>
    %46 = vector.shape_cast %45 : vector<1x128x128xbf16> to vector<128x128xbf16>
    %cst_25 = arith.constant 0.000000e+00 : f32
    %47 = vector.broadcast %cst_25 : f32 to vector<2x8x128xf32>
    %48 = vector.extract_strided_slice %42 {offsets = [0, 0, 0], sizes = [2, 8, 32], strides = [1, 1, 1]} : vector<2x8x128xf32> to vector<2x8x32xf32>
    %49 = arith.truncf %48 : vector<2x8x32xf32> to vector<2x8x32xbf16>
    %50 = vector.extract_strided_slice %43 {offsets = [0, 0, 0], sizes = [2, 8, 32], strides = [1, 1, 1]} : vector<2x8x128xf32> to vector<2x8x32xf32>
    %51 = arith.truncf %50 : vector<2x8x32xf32> to vector<2x8x32xbf16>
    %52 = vector.extract_strided_slice %44 {offsets = [0, 0, 0], sizes = [2, 8, 32], strides = [1, 1, 1]} : vector<2x8x128xf32> to vector<2x8x32xf32>
    %53 = arith.truncf %52 : vector<2x8x32xf32> to vector<2x8x32xbf16>
    "tpu.trace_start"() <{level = 10 : i32, message = "bqd,bkd->bqk"}> : () -> ()
    %cst_26 = arith.constant dense<0.000000e+00> : vector<2x8x8xf32>
    %54 = tpu.matmul %49, %51, %cst_26 {dimension_numbers = #tpu.dot_dimension_numbers<[2], [2], [1], [1], [0, 0, 0, 1, 1, 1], [0], [0]>} : vector<2x8x32xbf16>, vector<2x8x32xbf16>, vector<2x8x8xf32> -> vector<2x8x8xf32>
    "tpu.trace_stop"() : () -> ()
    %cst_27 = arith.constant 0.176776692 : f32
    %55 = vector.broadcast %cst_27 : f32 to vector<2x8x8xf32>
    %56 = arith.mulf %54, %55 : vector<2x8x8xf32>
    %57 = vector.shape_cast %4 : vector<8x8xf32> to vector<1x8x8xf32>
    %58 = vector.broadcast %57 : vector<1x8x8xf32> to vector<2x8x8xf32>
    %59 = arith.addf %56, %58 : vector<2x8x8xf32>
    %cst_28 = arith.constant dense<0xFF800000> : vector<2x8xf32>
    %60 = vector.multi_reduction <maximumf>, %59, %cst_28 [2] : vector<2x8x8xf32> to vector<2x8xf32>
    %cst_29 = arith.constant 0xFF800000 : f32
    %61 = vector.broadcast %cst_29 : f32 to vector<2x8xf32>
    %62 = arith.maximumf %61, %60 : vector<2x8xf32>
    %63 = vector.shape_cast %62 : vector<2x8xf32> to vector<2x8x1xf32>
    %64 = vector.broadcast %63 : vector<2x8x1xf32> to vector<2x8x8xf32>
    %65 = arith.subf %59, %64 : vector<2x8x8xf32>
    %66 = math.exp %65 : vector<2x8x8xf32>
    %cst_30 = arith.constant dense<0.000000e+00> : vector<2x8xf32>
    %67 = vector.multi_reduction <add>, %66, %cst_30 [2] : vector<2x8x8xf32> to vector<2x8xf32>
    %68 = vector.shape_cast %67 : vector<2x8xf32> to vector<2x8x1xf32>
    %69 = vector.broadcast %68 : vector<2x8x1xf32> to vector<2x8x8xf32>
    %70 = arith.divf %66, %69 : vector<2x8x8xf32>
    %71 = arith.truncf %70 : vector<2x8x8xf32> to vector<2x8x8xbf16>
    "tpu.trace_start"() <{level = 10 : i32, message = "bqk,bkd->bqd"}> : () -> ()
    %cst_31 = arith.constant dense<0.000000e+00> : vector<2x8x32xf32>
    %72 = tpu.matmul %71, %53, %cst_31 {dimension_numbers = #tpu.dot_dimension_numbers<[2], [1], [1], [2], [0, 0, 0, 1, 1, 2], [0], [0]>} : vector<2x8x8xbf16>, vector<2x8x32xbf16>, vector<2x8x32xf32> -> vector<2x8x32xf32>
    "tpu.trace_stop"() : () -> ()
    %73 = arith.truncf %72 : vector<2x8x32xf32> to vector<2x8x32xbf16>
    %74 = vector.extract_strided_slice %46 {offsets = [0, 0], sizes = [32, 128], strides = [1, 1]} : vector<128x128xbf16> to vector<32x128xbf16>
    "tpu.trace_start"() <{level = 10 : i32, message = "bqd,de->bqe"}> : () -> ()
    %cst_32 = arith.constant dense<0.000000e+00> : vector<2x8x128xf32>
    %75 = tpu.matmul %73, %74, %cst_32 {dimension_numbers = #tpu.dot_dimension_numbers<[2], [0], [0, 1], [1], [0, 0, 0, 1, 1, 1], [], []>} : vector<2x8x32xbf16>, vector<32x128xbf16>, vector<2x8x128xf32> -> vector<2x8x128xf32>
    "tpu.trace_stop"() : () -> ()
    %76 = arith.addf %47, %75 : vector<2x8x128xf32>
    %77 = vector.extract_strided_slice %42 {offsets = [0, 0, 32], sizes = [2, 8, 32], strides = [1, 1, 1]} : vector<2x8x128xf32> to vector<2x8x32xf32>
    %78 = arith.truncf %77 : vector<2x8x32xf32> to vector<2x8x32xbf16>
    %79 = vector.extract_strided_slice %43 {offsets = [0, 0, 32], sizes = [2, 8, 32], strides = [1, 1, 1]} : vector<2x8x128xf32> to vector<2x8x32xf32>
    %80 = arith.truncf %79 : vector<2x8x32xf32> to vector<2x8x32xbf16>
    %81 = vector.extract_strided_slice %44 {offsets = [0, 0, 32], sizes = [2, 8, 32], strides = [1, 1, 1]} : vector<2x8x128xf32> to vector<2x8x32xf32>
    %82 = arith.truncf %81 : vector<2x8x32xf32> to vector<2x8x32xbf16>
    "tpu.trace_start"() <{level = 10 : i32, message = "bqd,bkd->bqk"}> : () -> ()
    %cst_33 = arith.constant dense<0.000000e+00> : vector<2x8x8xf32>
    %83 = tpu.matmul %78, %80, %cst_33 {dimension_numbers = #tpu.dot_dimension_numbers<[2], [2], [1], [1], [0, 0, 0, 1, 1, 1], [0], [0]>} : vector<2x8x32xbf16>, vector<2x8x32xbf16>, vector<2x8x8xf32> -> vector<2x8x8xf32>
    "tpu.trace_stop"() : () -> ()
    %cst_34 = arith.constant 0.176776692 : f32
    %84 = vector.broadcast %cst_34 : f32 to vector<2x8x8xf32>
    %85 = arith.mulf %83, %84 : vector<2x8x8xf32>
    %86 = vector.shape_cast %4 : vector<8x8xf32> to vector<1x8x8xf32>
    %87 = vector.broadcast %86 : vector<1x8x8xf32> to vector<2x8x8xf32>
    %88 = arith.addf %85, %87 : vector<2x8x8xf32>
    %cst_35 = arith.constant dense<0xFF800000> : vector<2x8xf32>
    %89 = vector.multi_reduction <maximumf>, %88, %cst_35 [2] : vector<2x8x8xf32> to vector<2x8xf32>
    %cst_36 = arith.constant 0xFF800000 : f32
    %90 = vector.broadcast %cst_36 : f32 to vector<2x8xf32>
    %91 = arith.maximumf %90, %89 : vector<2x8xf32>
    %92 = vector.shape_cast %91 : vector<2x8xf32> to vector<2x8x1xf32>
    %93 = vector.broadcast %92 : vector<2x8x1xf32> to vector<2x8x8xf32>
    %94 = arith.subf %88, %93 : vector<2x8x8xf32>
    %95 = math.exp %94 : vector<2x8x8xf32>
    %cst_37 = arith.constant dense<0.000000e+00> : vector<2x8xf32>
    %96 = vector.multi_reduction <add>, %95, %cst_37 [2] : vector<2x8x8xf32> to vector<2x8xf32>
    %97 = vector.shape_cast %96 : vector<2x8xf32> to vector<2x8x1xf32>
    %98 = vector.broadcast %97 : vector<2x8x1xf32> to vector<2x8x8xf32>
    %99 = arith.divf %95, %98 : vector<2x8x8xf32>
    %100 = arith.truncf %99 : vector<2x8x8xf32> to vector<2x8x8xbf16>
    "tpu.trace_start"() <{level = 10 : i32, message = "bqk,bkd->bqd"}> : () -> ()
    %cst_38 = arith.constant dense<0.000000e+00> : vector<2x8x32xf32>
    %101 = tpu.matmul %100, %82, %cst_38 {dimension_numbers = #tpu.dot_dimension_numbers<[2], [1], [1], [2], [0, 0, 0, 1, 1, 2], [0], [0]>} : vector<2x8x8xbf16>, vector<2x8x32xbf16>, vector<2x8x32xf32> -> vector<2x8x32xf32>
    "tpu.trace_stop"() : () -> ()
    %102 = arith.truncf %101 : vector<2x8x32xf32> to vector<2x8x32xbf16>
    %103 = vector.extract_strided_slice %46 {offsets = [32, 0], sizes = [32, 128], strides = [1, 1]} : vector<128x128xbf16> to vector<32x128xbf16>
    "tpu.trace_start"() <{level = 10 : i32, message = "bqd,de->bqe"}> : () -> ()
    %cst_39 = arith.constant dense<0.000000e+00> : vector<2x8x128xf32>
    %104 = tpu.matmul %102, %103, %cst_39 {dimension_numbers = #tpu.dot_dimension_numbers<[2], [0], [0, 1], [1], [0, 0, 0, 1, 1, 1], [], []>} : vector<2x8x32xbf16>, vector<32x128xbf16>, vector<2x8x128xf32> -> vector<2x8x128xf32>
    "tpu.trace_stop"() : () -> ()
    %105 = arith.addf %76, %104 : vector<2x8x128xf32>
    %106 = vector.extract_strided_slice %42 {offsets = [0, 0, 64], sizes = [2, 8, 32], strides = [1, 1, 1]} : vector<2x8x128xf32> to vector<2x8x32xf32>
    %107 = arith.truncf %106 : vector<2x8x32xf32> to vector<2x8x32xbf16>
    %108 = vector.extract_strided_slice %43 {offsets = [0, 0, 64], sizes = [2, 8, 32], strides = [1, 1, 1]} : vector<2x8x128xf32> to vector<2x8x32xf32>
    %109 = arith.truncf %108 : vector<2x8x32xf32> to vector<2x8x32xbf16>
    %110 = vector.extract_strided_slice %44 {offsets = [0, 0, 64], sizes = [2, 8, 32], strides = [1, 1, 1]} : vector<2x8x128xf32> to vector<2x8x32xf32>
    %111 = arith.truncf %110 : vector<2x8x32xf32> to vector<2x8x32xbf16>
    "tpu.trace_start"() <{level = 10 : i32, message = "bqd,bkd->bqk"}> : () -> ()
    %cst_40 = arith.constant dense<0.000000e+00> : vector<2x8x8xf32>
    %112 = tpu.matmul %107, %109, %cst_40 {dimension_numbers = #tpu.dot_dimension_numbers<[2], [2], [1], [1], [0, 0, 0, 1, 1, 1], [0], [0]>} : vector<2x8x32xbf16>, vector<2x8x32xbf16>, vector<2x8x8xf32> -> vector<2x8x8xf32>
    "tpu.trace_stop"() : () -> ()
    %cst_41 = arith.constant 0.176776692 : f32
    %113 = vector.broadcast %cst_41 : f32 to vector<2x8x8xf32>
    %114 = arith.mulf %112, %113 : vector<2x8x8xf32>
    %115 = vector.shape_cast %4 : vector<8x8xf32> to vector<1x8x8xf32>
    %116 = vector.broadcast %115 : vector<1x8x8xf32> to vector<2x8x8xf32>
    %117 = arith.addf %114, %116 : vector<2x8x8xf32>
    %cst_42 = arith.constant dense<0xFF800000> : vector<2x8xf32>
    %118 = vector.multi_reduction <maximumf>, %117, %cst_42 [2] : vector<2x8x8xf32> to vector<2x8xf32>
    %cst_43 = arith.constant 0xFF800000 : f32
    %119 = vector.broadcast %cst_43 : f32 to vector<2x8xf32>
    %120 = arith.maximumf %119, %118 : vector<2x8xf32>
    %121 = vector.shape_cast %120 : vector<2x8xf32> to vector<2x8x1xf32>
    %122 = vector.broadcast %121 : vector<2x8x1xf32> to vector<2x8x8xf32>
    %123 = arith.subf %117, %122 : vector<2x8x8xf32>
    %124 = math.exp %123 : vector<2x8x8xf32>
    %cst_44 = arith.constant dense<0.000000e+00> : vector<2x8xf32>
    %125 = vector.multi_reduction <add>, %124, %cst_44 [2] : vector<2x8x8xf32> to vector<2x8xf32>
    %126 = vector.shape_cast %125 : vector<2x8xf32> to vector<2x8x1xf32>
    %127 = vector.broadcast %126 : vector<2x8x1xf32> to vector<2x8x8xf32>
    %128 = arith.divf %124, %127 : vector<2x8x8xf32>
    %129 = arith.truncf %128 : vector<2x8x8xf32> to vector<2x8x8xbf16>
    "tpu.trace_start"() <{level = 10 : i32, message = "bqk,bkd->bqd"}> : () -> ()
    %cst_45 = arith.constant dense<0.000000e+00> : vector<2x8x32xf32>
    %130 = tpu.matmul %129, %111, %cst_45 {dimension_numbers = #tpu.dot_dimension_numbers<[2], [1], [1], [2], [0, 0, 0, 1, 1, 2], [0], [0]>} : vector<2x8x8xbf16>, vector<2x8x32xbf16>, vector<2x8x32xf32> -> vector<2x8x32xf32>
    "tpu.trace_stop"() : () -> ()
    %131 = arith.truncf %130 : vector<2x8x32xf32> to vector<2x8x32xbf16>
    %132 = vector.extract_strided_slice %46 {offsets = [64, 0], sizes = [32, 128], strides = [1, 1]} : vector<128x128xbf16> to vector<32x128xbf16>
    "tpu.trace_start"() <{level = 10 : i32, message = "bqd,de->bqe"}> : () -> ()
    %cst_46 = arith.constant dense<0.000000e+00> : vector<2x8x128xf32>
    %133 = tpu.matmul %131, %132, %cst_46 {dimension_numbers = #tpu.dot_dimension_numbers<[2], [0], [0, 1], [1], [0, 0, 0, 1, 1, 1], [], []>} : vector<2x8x32xbf16>, vector<32x128xbf16>, vector<2x8x128xf32> -> vector<2x8x128xf32>
    "tpu.trace_stop"() : () -> ()
    %134 = arith.addf %105, %133 : vector<2x8x128xf32>
    %135 = vector.extract_strided_slice %42 {offsets = [0, 0, 96], sizes = [2, 8, 32], strides = [1, 1, 1]} : vector<2x8x128xf32> to vector<2x8x32xf32>
    %136 = arith.truncf %135 : vector<2x8x32xf32> to vector<2x8x32xbf16>
    %137 = vector.extract_strided_slice %43 {offsets = [0, 0, 96], sizes = [2, 8, 32], strides = [1, 1, 1]} : vector<2x8x128xf32> to vector<2x8x32xf32>
    %138 = arith.truncf %137 : vector<2x8x32xf32> to vector<2x8x32xbf16>
    %139 = vector.extract_strided_slice %44 {offsets = [0, 0, 96], sizes = [2, 8, 32], strides = [1, 1, 1]} : vector<2x8x128xf32> to vector<2x8x32xf32>
    %140 = arith.truncf %139 : vector<2x8x32xf32> to vector<2x8x32xbf16>
    "tpu.trace_start"() <{level = 10 : i32, message = "bqd,bkd->bqk"}> : () -> ()
    %cst_47 = arith.constant dense<0.000000e+00> : vector<2x8x8xf32>
    %141 = tpu.matmul %136, %138, %cst_47 {dimension_numbers = #tpu.dot_dimension_numbers<[2], [2], [1], [1], [0, 0, 0, 1, 1, 1], [0], [0]>} : vector<2x8x32xbf16>, vector<2x8x32xbf16>, vector<2x8x8xf32> -> vector<2x8x8xf32>
    "tpu.trace_stop"() : () -> ()
    %cst_48 = arith.constant 0.176776692 : f32
    %142 = vector.broadcast %cst_48 : f32 to vector<2x8x8xf32>
    %143 = arith.mulf %141, %142 : vector<2x8x8xf32>
    %144 = vector.shape_cast %4 : vector<8x8xf32> to vector<1x8x8xf32>
    %145 = vector.broadcast %144 : vector<1x8x8xf32> to vector<2x8x8xf32>
    %146 = arith.addf %143, %145 : vector<2x8x8xf32>
    %cst_49 = arith.constant dense<0xFF800000> : vector<2x8xf32>
    %147 = vector.multi_reduction <maximumf>, %146, %cst_49 [2] : vector<2x8x8xf32> to vector<2x8xf32>
    %cst_50 = arith.constant 0xFF800000 : f32
    %148 = vector.broadcast %cst_50 : f32 to vector<2x8xf32>
    %149 = arith.maximumf %148, %147 : vector<2x8xf32>
    %150 = vector.shape_cast %149 : vector<2x8xf32> to vector<2x8x1xf32>
    %151 = vector.broadcast %150 : vector<2x8x1xf32> to vector<2x8x8xf32>
    %152 = arith.subf %146, %151 : vector<2x8x8xf32>
    %153 = math.exp %152 : vector<2x8x8xf32>
    %cst_51 = arith.constant dense<0.000000e+00> : vector<2x8xf32>
    %154 = vector.multi_reduction <add>, %153, %cst_51 [2] : vector<2x8x8xf32> to vector<2x8xf32>
    %155 = vector.shape_cast %154 : vector<2x8xf32> to vector<2x8x1xf32>
    %156 = vector.broadcast %155 : vector<2x8x1xf32> to vector<2x8x8xf32>
    %157 = arith.divf %153, %156 : vector<2x8x8xf32>
    %158 = arith.truncf %157 : vector<2x8x8xf32> to vector<2x8x8xbf16>
    "tpu.trace_start"() <{level = 10 : i32, message = "bqk,bkd->bqd"}> : () -> ()
    %cst_52 = arith.constant dense<0.000000e+00> : vector<2x8x32xf32>
    %159 = tpu.matmul %158, %140, %cst_52 {dimension_numbers = #tpu.dot_dimension_numbers<[2], [1], [1], [2], [0, 0, 0, 1, 1, 2], [0], [0]>} : vector<2x8x8xbf16>, vector<2x8x32xbf16>, vector<2x8x32xf32> -> vector<2x8x32xf32>
    "tpu.trace_stop"() : () -> ()
    %160 = arith.truncf %159 : vector<2x8x32xf32> to vector<2x8x32xbf16>
    %161 = vector.extract_strided_slice %46 {offsets = [96, 0], sizes = [32, 128], strides = [1, 1]} : vector<128x128xbf16> to vector<32x128xbf16>
    "tpu.trace_start"() <{level = 10 : i32, message = "bqd,de->bqe"}> : () -> ()
    %cst_53 = arith.constant dense<0.000000e+00> : vector<2x8x128xf32>
    %162 = tpu.matmul %160, %161, %cst_53 {dimension_numbers = #tpu.dot_dimension_numbers<[2], [0], [0, 1], [1], [0, 0, 0, 1, 1, 1], [], []>} : vector<2x8x32xbf16>, vector<32x128xbf16>, vector<2x8x128xf32> -> vector<2x8x128xf32>
    "tpu.trace_stop"() : () -> ()
    %163 = arith.addf %134, %162 : vector<2x8x128xf32>
    %164 = arith.addf %3, %163 : vector<2x8x128xf32>
    %c0_54 = arith.constant 0 : index
    %c0_55 = arith.constant 0 : index
    %c0_56 = arith.constant 0 : index
    %165 = vector.load %arg8[%c0_54, %c0_55, %c0_56] : memref<1x1x128xf32, #tpu.memory_space<vmem>>, vector<1x1x128xf32>
    %166 = vector.shape_cast %165 : vector<1x1x128xf32> to vector<1x128xf32>
    %167 = vector.shape_cast %166 : vector<1x128xf32> to vector<1x1x128xf32>
    %168 = vector.broadcast %167 : vector<1x1x128xf32> to vector<2x8x128xf32>
    %169 = arith.addf %164, %168 : vector<2x8x128xf32>
    %c0_57 = arith.constant 0 : index
    %c0_58 = arith.constant 0 : index
    %c0_59 = arith.constant 0 : index
    %170 = vector.load %arg9[%c0_57, %c0_58, %c0_59] : memref<1x1x128xf32, #tpu.memory_space<vmem>>, vector<1x1x128xf32>
    %171 = vector.shape_cast %170 : vector<1x1x128xf32> to vector<1x128xf32>
    %c0_60 = arith.constant 0 : index
    %c0_61 = arith.constant 0 : index
    %c0_62 = arith.constant 0 : index
    %172 = vector.load %arg10[%c0_60, %c0_61, %c0_62] : memref<1x1x128xf32, #tpu.memory_space<vmem>>, vector<1x1x128xf32>
    %173 = vector.shape_cast %172 : vector<1x1x128xf32> to vector<1x128xf32>
    %cst_63 = arith.constant dense<0.000000e+00> : vector<2x8xf32>
    %174 = vector.multi_reduction <add>, %169, %cst_63 [2] : vector<2x8x128xf32> to vector<2x8xf32>
    %175 = vector.shape_cast %174 : vector<2x8xf32> to vector<2x8x1xf32>
    %cst_64 = arith.constant 1.280000e+02 : f32
    %176 = vector.broadcast %cst_64 : f32 to vector<2x8x1xf32>
    %177 = arith.divf %175, %176 : vector<2x8x1xf32>
    %178 = vector.broadcast %177 : vector<2x8x1xf32> to vector<2x8x128xf32>
    %179 = arith.subf %169, %178 : vector<2x8x128xf32>
    %180 = arith.mulf %179, %179 : vector<2x8x128xf32>
    %cst_65 = arith.constant dense<0.000000e+00> : vector<2x8xf32>
    %181 = vector.multi_reduction <add>, %180, %cst_65 [2] : vector<2x8x128xf32> to vector<2x8xf32>
    %182 = vector.shape_cast %181 : vector<2x8xf32> to vector<2x8x1xf32>
    %cst_66 = arith.constant 1.280000e+02 : f32
    %183 = vector.broadcast %cst_66 : f32 to vector<2x8x1xf32>
    %184 = arith.divf %182, %183 : vector<2x8x1xf32>
    %185 = vector.broadcast %177 : vector<2x8x1xf32> to vector<2x8x128xf32>
    %186 = arith.subf %169, %185 : vector<2x8x128xf32>
    %cst_67 = arith.constant 9.99999974E-6 : f32
    %187 = vector.broadcast %cst_67 : f32 to vector<2x8x1xf32>
    %188 = arith.addf %184, %187 : vector<2x8x1xf32>
    %189 = math.rsqrt %188 : vector<2x8x1xf32>
    %190 = vector.broadcast %189 : vector<2x8x1xf32> to vector<2x8x128xf32>
    %191 = arith.mulf %186, %190 : vector<2x8x128xf32>
    %192 = vector.shape_cast %171 : vector<1x128xf32> to vector<1x1x128xf32>
    %193 = vector.broadcast %192 : vector<1x1x128xf32> to vector<2x8x128xf32>
    %194 = arith.mulf %191, %193 : vector<2x8x128xf32>
    %195 = vector.shape_cast %173 : vector<1x128xf32> to vector<1x1x128xf32>
    %196 = vector.broadcast %195 : vector<1x1x128xf32> to vector<2x8x128xf32>
    %197 = arith.addf %194, %196 : vector<2x8x128xf32>
    %198 = arith.truncf %197 : vector<2x8x128xf32> to vector<2x8x128xbf16>
    %c0_68 = arith.constant 0 : index
    %c0_69 = arith.constant 0 : index
    %c0_70 = arith.constant 0 : index
    %199 = vector.load %arg11[%c0_68, %c0_69, %c0_70] : memref<1x128x512xbf16, #tpu.memory_space<vmem>>, vector<1x128x512xbf16>
    %200 = vector.shape_cast %199 : vector<1x128x512xbf16> to vector<128x512xbf16>
    "tpu.trace_start"() <{level = 10 : i32, message = "bsd,de->bse"}> : () -> ()
    %cst_71 = arith.constant dense<0.000000e+00> : vector<2x8x512xf32>
    %201 = tpu.matmul %198, %200, %cst_71 {dimension_numbers = #tpu.dot_dimension_numbers<[2], [0], [0, 1], [1], [0, 0, 0, 1, 1, 1], [], []>} : vector<2x8x128xbf16>, vector<128x512xbf16>, vector<2x8x512xf32> -> vector<2x8x512xf32>
    "tpu.trace_stop"() : () -> ()
    %c0_72 = arith.constant 0 : index
    %c0_73 = arith.constant 0 : index
    %c0_74 = arith.constant 0 : index
    %202 = vector.load %arg12[%c0_72, %c0_73, %c0_74] : memref<1x1x512xf32, #tpu.memory_space<vmem>>, vector<1x1x512xf32>
    %203 = vector.shape_cast %202 : vector<1x1x512xf32> to vector<1x512xf32>
    %204 = vector.shape_cast %203 : vector<1x512xf32> to vector<1x1x512xf32>
    %205 = vector.broadcast %204 : vector<1x1x512xf32> to vector<2x8x512xf32>
    %206 = arith.addf %201, %205 : vector<2x8x512xf32>
    %cst_75 = arith.constant 1.702000e+00 : f32
    %207 = vector.broadcast %cst_75 : f32 to vector<2x8x512xf32>
    %208 = arith.mulf %207, %206 : vector<2x8x512xf32>
    %209 = arith.negf %208 : vector<2x8x512xf32>
    %210 = math.exp %209 : vector<2x8x512xf32>
    %cst_76 = arith.constant 1.000000e+00 : f32
    %211 = vector.broadcast %cst_76 : f32 to vector<2x8x512xf32>
    %212 = arith.addf %211, %210 : vector<2x8x512xf32>
    %213 = arith.divf %211, %212 : vector<2x8x512xf32>
    %214 = arith.mulf %206, %213 : vector<2x8x512xf32>
    %215 = arith.truncf %214 : vector<2x8x512xf32> to vector<2x8x512xbf16>
    %c0_77 = arith.constant 0 : index
    %c0_78 = arith.constant 0 : index
    %c0_79 = arith.constant 0 : index
    %216 = vector.load %arg13[%c0_77, %c0_78, %c0_79] : memref<1x512x128xbf16, #tpu.memory_space<vmem>>, vector<1x512x128xbf16>
    %217 = vector.shape_cast %216 : vector<1x512x128xbf16> to vector<512x128xbf16>
    "tpu.trace_start"() <{level = 10 : i32, message = "bse,ed->bsd"}> : () -> ()
    %cst_80 = arith.constant dense<0.000000e+00> : vector<2x8x128xf32>
    %218 = tpu.matmul %215, %217, %cst_80 {dimension_numbers = #tpu.dot_dimension_numbers<[2], [0], [0, 1], [1], [0, 0, 0, 1, 1, 1], [], []>} : vector<2x8x512xbf16>, vector<512x128xbf16>, vector<2x8x128xf32> -> vector<2x8x128xf32>
    "tpu.trace_stop"() : () -> ()
    %c0_81 = arith.constant 0 : index
    %c0_82 = arith.constant 0 : index
    %c0_83 = arith.constant 0 : index
    %219 = vector.load %arg14[%c0_81, %c0_82, %c0_83] : memref<1x1x128xf32, #tpu.memory_space<vmem>>, vector<1x1x128xf32>
    %220 = vector.shape_cast %219 : vector<1x1x128xf32> to vector<1x128xf32>
    %221 = vector.shape_cast %220 : vector<1x128xf32> to vector<1x1x128xf32>
    %222 = vector.broadcast %221 : vector<1x1x128xf32> to vector<2x8x128xf32>
    %223 = arith.addf %218, %222 : vector<2x8x128xf32>
    %224 = arith.addf %169, %223 : vector<2x8x128xf32>
    %c0_84 = arith.constant 0 : index
    %c0_85 = arith.constant 0 : index
    %c0_86 = arith.constant 0 : index
    %225 = vector.load %arg19[%c0_84, %c0_85, %c0_86] : memref<2x8x128xf32, #tpu.memory_space<vmem>>, vector<2x8x128xf32>
    tpu.vector_store %arg19[%c0_84, %c0_85, %c0_86], %224 {strides = array<i32>} : memref<2x8x128xf32, #tpu.memory_space<vmem>>, vector<2x8x128xf32>,
    %c1_i32 = arith.constant 1 : i32
    %226 = arith.cmpi eq, %arg0, %c1_i32 : i32
    %227 = arith.extui %226 : i1 to i32
    %c0_i32_87 = arith.constant 0 : i32
    %228 = arith.cmpi ne, %227, %c0_i32_87 : i32
    scf.if %228 {
      %229 = tpu.iota {dimensions = array<i32: 0>} : vector<8x128xi32>
      %c0_88 = arith.constant 0 : index
      %230 = memref.load %arg1[%c0_88] : memref<2xi32, #tpu.memory_space<smem>>
      %231 = vector.broadcast %230 : i32 to vector<8x128xi32>
      %232 = arith.cmpi eq, %229, %231 : vector<8x128xi32>
      %233 = arith.extui %232 : vector<8x128xi1> to vector<8x128xi32>
      %234 = arith.sitofp %233 : vector<8x128xi32> to vector<8x128xf32>
      %235 = vector.extract_strided_slice %224 {offsets = [0, 0, 0], sizes = [1, 8, 128], strides = [1, 1, 1]} : vector<2x8x128xf32> to vector<1x8x128xf32>
      %236 = vector.shape_cast %235 : vector<1x8x128xf32> to vector<8x128xf32>
      %237 = arith.mulf %236, %234 : vector<8x128xf32>
      %cst_89 = arith.constant dense<0.000000e+00> : vector<128xf32>
      %238 = vector.multi_reduction <add>, %237, %cst_89 [0] : vector<8x128xf32> to vector<128xf32>
      %239 = vector.shape_cast %238 : vector<128xf32> to vector<1x128xf32>
      %240 = tpu.iota {dimensions = array<i32: 0>} : vector<8x128xi32>
      %c1 = arith.constant 1 : index
      %241 = memref.load %arg1[%c1] : memref<2xi32, #tpu.memory_space<smem>>
      %242 = vector.broadcast %241 : i32 to vector<8x128xi32>
      %243 = arith.cmpi eq, %240, %242 : vector<8x128xi32>
      %244 = arith.extui %243 : vector<8x128xi1> to vector<8x128xi32>
      %245 = arith.sitofp %244 : vector<8x128xi32> to vector<8x128xf32>
      %246 = vector.extract_strided_slice %224 {offsets = [1, 0, 0], sizes = [1, 8, 128], strides = [1, 1, 1]} : vector<2x8x128xf32> to vector<1x8x128xf32>
      %247 = vector.shape_cast %246 : vector<1x8x128xf32> to vector<8x128xf32>
      %248 = arith.mulf %247, %245 : vector<8x128xf32>
      %cst_90 = arith.constant dense<0.000000e+00> : vector<128xf32>
      %249 = vector.multi_reduction <add>, %248, %cst_90 [0] : vector<8x128xf32> to vector<128xf32>
      %250 = vector.shape_cast %249 : vector<128xf32> to vector<1x128xf32>
      %251 = tpu.concatenate %239, %250 in 0 : vector<1x128xf32>, vector<1x128xf32> -> vector<2x128xf32>
      %c0_91 = arith.constant 0 : index
      %c0_92 = arith.constant 0 : index
      %252 = vector.load %arg15[%c0_91, %c0_92] : memref<1x128xf32, #tpu.memory_space<vmem>>, vector<1x128xf32>
      %c0_93 = arith.constant 0 : index
      %c0_94 = arith.constant 0 : index
      %253 = vector.load %arg16[%c0_93, %c0_94] : memref<1x128xf32, #tpu.memory_space<vmem>>, vector<1x128xf32>
      %cst_95 = arith.constant dense<0.000000e+00> : vector<2xf32>
      %254 = vector.multi_reduction <add>, %251, %cst_95 [1] : vector<2x128xf32> to vector<2xf32>
      %255 = vector.shape_cast %254 : vector<2xf32> to vector<2x1xf32>
      %cst_96 = arith.constant 1.280000e+02 : f32
      %256 = vector.broadcast %cst_96 : f32 to vector<2x1xf32>
      %257 = arith.divf %255, %256 : vector<2x1xf32>
      %258 = vector.broadcast %257 : vector<2x1xf32> to vector<2x128xf32>
      %259 = arith.subf %251, %258 : vector<2x128xf32>
      %260 = arith.mulf %259, %259 : vector<2x128xf32>
      %cst_97 = arith.constant dense<0.000000e+00> : vector<2xf32>
      %261 = vector.multi_reduction <add>, %260, %cst_97 [1] : vector<2x128xf32> to vector<2xf32>
      %262 = vector.shape_cast %261 : vector<2xf32> to vector<2x1xf32>
      %cst_98 = arith.constant 1.280000e+02 : f32
      %263 = vector.broadcast %cst_98 : f32 to vector<2x1xf32>
      %264 = arith.divf %262, %263 : vector<2x1xf32>
      %265 = vector.broadcast %257 : vector<2x1xf32> to vector<2x128xf32>
      %266 = arith.subf %251, %265 : vector<2x128xf32>
      %cst_99 = arith.constant 9.99999974E-6 : f32
      %267 = vector.broadcast %cst_99 : f32 to vector<2x1xf32>
      %268 = arith.addf %264, %267 : vector<2x1xf32>
      %269 = math.rsqrt %268 : vector<2x1xf32>
      %270 = vector.broadcast %269 : vector<2x1xf32> to vector<2x128xf32>
      %271 = arith.mulf %266, %270 : vector<2x128xf32>
      %272 = vector.broadcast %252 : vector<1x128xf32> to vector<2x128xf32>
      %273 = arith.mulf %271, %272 : vector<2x128xf32>
      %274 = vector.broadcast %253 : vector<1x128xf32> to vector<2x128xf32>
      %275 = arith.addf %273, %274 : vector<2x128xf32>
      %276 = arith.truncf %275 : vector<2x128xf32> to vector<2x128xbf16>
      %c0_100 = arith.constant 0 : index
      %c0_101 = arith.constant 0 : index
      %277 = vector.load %arg17[%c0_100, %c0_101] : memref<128x128xbf16, #tpu.memory_space<vmem>>, vector<128x128xbf16>
      %cst_102 = arith.constant dense<0.000000e+00> : vector<2x128xf32>
      %278 = tpu.matmul %276, %277, %cst_102 {dimension_numbers = #tpu.dot_dimension_numbers<[1], [0], [0], [1], [0, 0, 1, 1], [], []>} : vector<2x128xbf16>, vector<128x128xbf16>, vector<2x128xf32> -> vector<2x128xf32>
      %279 = arith.mulf %278, %278 : vector<2x128xf32>
      %cst_103 = arith.constant dense<0.000000e+00> : vector<2xf32>
      %280 = vector.multi_reduction <add>, %279, %cst_103 [1] : vector<2x128xf32> to vector<2xf32>
      %281 = vector.shape_cast %280 : vector<2xf32> to vector<2x1xf32>
      %cst_104 = arith.constant 9.99999996E-13 : f32
      %282 = vector.broadcast %cst_104 : f32 to vector<2x1xf32>
      %283 = arith.addf %281, %282 : vector<2x1xf32>
      %284 = math.rsqrt %283 : vector<2x1xf32>
      %285 = vector.broadcast %284 : vector<2x1xf32> to vector<2x128xf32>
      %286 = arith.mulf %278, %285 : vector<2x128xf32>
      %c0_105 = arith.constant 0 : index
      %c0_106 = arith.constant 0 : index
      %287 = vector.load %arg18[%c0_105, %c0_106] : memref<2x128xf32, #tpu.memory_space<vmem>>, vector<2x128xf32>
      tpu.vector_store %arg18[%c0_105, %c0_106], %286 {strides = array<i32>} : memref<2x128xf32, #tpu.memory_space<vmem>>, vector<2x128xf32>,
    } else {
    }
    return
  }
  func.func @transform_0(%arg0: i32, %arg1: memref<2xi32, #tpu.memory_space<smem>>) -> (i32, i32, i32) {
    %c0_i32 = arith.constant 0 : i32
    %c0_i32_0 = arith.constant 0 : i32
    %c0_i32_1 = arith.constant 0 : i32
    %c0_i32_2 = arith.constant 0 : i32
    return %c0_i32, %c0_i32_0, %c0_i32_1 : i32, i32, i32
  }
  func.func @transform_1(%arg0: i32, %arg1: memref<2xi32, #tpu.memory_space<smem>>) -> (i32, i32, i32) {
    %c0_i32 = arith.constant 0 : i32
    %c0_i32_0 = arith.constant 0 : i32
    %c0_i32_1 = arith.constant 0 : i32
    return %arg0, %c0_i32, %c0_i32_0 : i32, i32, i32
  }
  func.func @transform_2(%arg0: i32, %arg1: memref<2xi32, #tpu.memory_space<smem>>) -> (i32, i32, i32) {
    %c0_i32 = arith.constant 0 : i32
    %c0_i32_0 = arith.constant 0 : i32
    %c0_i32_1 = arith.constant 0 : i32
    return %arg0, %c0_i32, %c0_i32_0 : i32, i32, i32
  }
  func.func @transform_3(%arg0: i32, %arg1: memref<2xi32, #tpu.memory_space<smem>>) -> (i32, i32, i32) {
    %c0_i32 = arith.constant 0 : i32
    %c0_i32_0 = arith.constant 0 : i32
    %c0_i32_1 = arith.constant 0 : i32
    return %arg0, %c0_i32, %c0_i32_0 : i32, i32, i32
  }
  func.func @transform_4(%arg0: i32, %arg1: memref<2xi32, #tpu.memory_space<smem>>) -> (i32, i32, i32) {
    %c0_i32 = arith.constant 0 : i32
    %c0_i32_0 = arith.constant 0 : i32
    %c0_i32_1 = arith.constant 0 : i32
    return %arg0, %c0_i32, %c0_i32_0 : i32, i32, i32
  }
  func.func @transform_5(%arg0: i32, %arg1: memref<2xi32, #tpu.memory_space<smem>>) -> (i32, i32, i32) {
    %c0_i32 = arith.constant 0 : i32
    %c0_i32_0 = arith.constant 0 : i32
    %c0_i32_1 = arith.constant 0 : i32
    return %arg0, %c0_i32, %c0_i32_0 : i32, i32, i32
  }
  func.func @transform_6(%arg0: i32, %arg1: memref<2xi32, #tpu.memory_space<smem>>) -> (i32, i32, i32) {
    %c0_i32 = arith.constant 0 : i32
    %c0_i32_0 = arith.constant 0 : i32
    %c0_i32_1 = arith.constant 0 : i32
    return %arg0, %c0_i32, %c0_i32_0 : i32, i32, i32
  }
  func.func @transform_7(%arg0: i32, %arg1: memref<2xi32, #tpu.memory_space<smem>>) -> (i32, i32, i32) {
    %c0_i32 = arith.constant 0 : i32
    %c0_i32_0 = arith.constant 0 : i32
    %c0_i32_1 = arith.constant 0 : i32
    return %arg0, %c0_i32, %c0_i32_0 : i32, i32, i32
  }
  func.func @transform_8(%arg0: i32, %arg1: memref<2xi32, #tpu.memory_space<smem>>) -> (i32, i32, i32) {
    %c0_i32 = arith.constant 0 : i32
    %c0_i32_0 = arith.constant 0 : i32
    %c0_i32_1 = arith.constant 0 : i32
    return %arg0, %c0_i32, %c0_i32_0 : i32, i32, i32
  }
  func.func @transform_9(%arg0: i32, %arg1: memref<2xi32, #tpu.memory_space<smem>>) -> (i32, i32, i32) {
    %c0_i32 = arith.constant 0 : i32
    %c0_i32_0 = arith.constant 0 : i32
    %c0_i32_1 = arith.constant 0 : i32
    return %arg0, %c0_i32, %c0_i32_0 : i32, i32, i32
  }
  func.func @transform_10(%arg0: i32, %arg1: memref<2xi32, #tpu.memory_space<smem>>) -> (i32, i32, i32) {
    %c0_i32 = arith.constant 0 : i32
    %c0_i32_0 = arith.constant 0 : i32
    %c0_i32_1 = arith.constant 0 : i32
    return %arg0, %c0_i32, %c0_i32_0 : i32, i32, i32
  }
  func.func @transform_11(%arg0: i32, %arg1: memref<2xi32, #tpu.memory_space<smem>>) -> (i32, i32, i32) {
    %c0_i32 = arith.constant 0 : i32
    %c0_i32_0 = arith.constant 0 : i32
    %c0_i32_1 = arith.constant 0 : i32
    return %arg0, %c0_i32, %c0_i32_0 : i32, i32, i32
  }
  func.func @transform_12(%arg0: i32, %arg1: memref<2xi32, #tpu.memory_space<smem>>) -> (i32, i32, i32) {
    %c0_i32 = arith.constant 0 : i32
    %c0_i32_0 = arith.constant 0 : i32
    %c0_i32_1 = arith.constant 0 : i32
    return %arg0, %c0_i32, %c0_i32_0 : i32, i32, i32
  }
  func.func @transform_13(%arg0: i32, %arg1: memref<2xi32, #tpu.memory_space<smem>>) -> (i32, i32) {
    %c0_i32 = arith.constant 0 : i32
    %c0_i32_0 = arith.constant 0 : i32
    %c0_i32_1 = arith.constant 0 : i32
    return %c0_i32, %c0_i32_0 : i32, i32
  }
  func.func @transform_14(%arg0: i32, %arg1: memref<2xi32, #tpu.memory_space<smem>>) -> (i32, i32) {
    %c0_i32 = arith.constant 0 : i32
    %c0_i32_0 = arith.constant 0 : i32
    %c0_i32_1 = arith.constant 0 : i32
    return %c0_i32, %c0_i32_0 : i32, i32
  }
  func.func @transform_15(%arg0: i32, %arg1: memref<2xi32, #tpu.memory_space<smem>>) -> (i32, i32) {
    %c0_i32 = arith.constant 0 : i32
    %c0_i32_0 = arith.constant 0 : i32
    %c0_i32_1 = arith.constant 0 : i32
    return %c0_i32, %c0_i32_0 : i32, i32
  }
  func.func @transform_16(%arg0: i32, %arg1: memref<2xi32, #tpu.memory_space<smem>>) -> (i32, i32) {
    %c0_i32 = arith.constant 0 : i32
    %c0_i32_0 = arith.constant 0 : i32
    %c0_i32_1 = arith.constant 0 : i32
    return %c0_i32, %c0_i32_0 : i32, i32
  }
}

</mosaic_0001>

<llo_original>
// kernel: tpu_custom_call.1
$region0: #{tpu_custom_call.1}
  #allocation0 [shape = 'u32[]', space=smem, size = 0x4, offset = 0x4, fixed_abs, tag = 'smem constant byte address 0x4 - core index']
  #allocation1 [shape = 'u32[144,128]{1,0:T(1,128)}', space=vmem, size = 0x12000, scoped, tag = 'internal scratch']
  #allocation2 [shape = 'f32[2,8,128]{2,1,0:T(8,128)}', space=vmem, size = 0x2000, scoped, tag = 'scratch operand']
  #allocation3 [shape = 'f32[8,8]{1,0:T(8,128)}', space=vmem, size = 0x1000, scoped, tag = 'scratch operand']
  #allocation4 [shape = 's32[1]{0}', space=sflag, size = 0x4, scoped, tag = 'scoped memory for tpu_custom_call.1']
  #allocation5 [shape = 'u8[512]{0}', space=smem, size = 0x200, scoped, tag = 'prefetched SMEM operand 0']
  %s0 = inlined_call_operand.hbm [shape: s32[2], index: 0, kind: input, shape index: {}]
  %s1 = inlined_call_operand.hbm [shape: f32[2,8,128], index: 1, kind: input, shape index: {}]
  %s2 = inlined_call_operand.hbm [shape: f32[2,1,128], index: 2, kind: input, shape index: {}]
  %s3 = inlined_call_operand.hbm [shape: f32[2,1,128], index: 3, kind: input, shape index: {}]
  %s4 = inlined_call_operand.hbm [shape: bf16[2,128,384], index: 4, kind: input, shape index: {}]
  %s5 = inlined_call_operand.vmem [shape: f32[2,1,384], index: 5, kind: input, shape index: {}]
  %s6 = inlined_call_operand.hbm [shape: bf16[2,128,128], index: 6, kind: input, shape index: {}]
  %s7 = inlined_call_operand.vmem [shape: f32[2,1,128], index: 7, kind: input, shape index: {}]
  %s8 = inlined_call_operand.vmem [shape: f32[2,1,128], index: 8, kind: input, shape index: {}]
  %s9 = inlined_call_operand.vmem [shape: f32[2,1,128], index: 9, kind: input, shape index: {}]
  %s10 = inlined_call_operand.hbm [shape: bf16[2,128,512], index: 10, kind: input, shape index: {}]
  %s11 = inlined_call_operand.vmem [shape: f32[2,1,512], index: 11, kind: input, shape index: {}]
  %s12 = inlined_call_operand.hbm [shape: bf16[2,512,128], index: 12, kind: input, shape index: {}]
  %s13 = inlined_call_operand.vmem [shape: f32[2,1,128], index: 13, kind: input, shape index: {}]
  %s14 = inlined_call_operand.vmem [shape: f32[1,128], index: 14, kind: input, shape index: {}]
  %s15 = inlined_call_operand.vmem [shape: f32[1,128], index: 15, kind: input, shape index: {}]
  %s16 = inlined_call_operand.hbm [shape: bf16[128,128], index: 16, kind: input, shape index: {}]
  %s17 = inlined_call_operand.hbm [shape: f32[2,128], index: 17, kind: output, shape index: {}]
  %s18 = sld [smem:[#allocation0]]
  $region137: #{tpu_custom_call.1} parent=0
    _
  %s20 = ssub.s32 1, %s18
  %s21 = scalar_select 0, %s20, %s18
  %23 = dma.hbm_to_smem %s0, 16, [#allocation5], [#allocation4]
  %24 = dma.done [#allocation4], 16
  %25 = sfence
  $region1: #{tpu_custom_call.1} parent=0
    #allocation6 [shape = 'u8[8192]{0}', space=vmem, size = 0x2000, scoped, tag = 'input window, operand 1, single buffered']
    #allocation7 [shape = 's32[2]{0}', space=sflag, size = 0x8, scoped, tag = 'scoped memory for tpu_custom_call.1']
    #allocation8 [shape = 's32[2]{0}', space=sflag, size = 0x8, scoped, tag = 'scoped memory for tpu_custom_call.1']
    #allocation9 [shape = 'u8[1024]{0}', space=vmem, size = 0x400, scoped, tag = 'input window, operand 2']
    #allocation10 [shape = 's32[2]{0}', space=sflag, size = 0x8, scoped, tag = 'scoped memory for tpu_custom_call.1']
    #allocation11 [shape = 'u8[1024]{0}', space=vmem, size = 0x400, scoped, tag = 'input window, operand 3']
    #allocation12 [shape = 'u8[196608]{0}', space=vmem, size = 0x30000, scoped, tag = 'input window, operand 4']
    #allocation13 [shape = 's32[2]{0}', space=sflag, size = 0x8, scoped, tag = 'scoped memory for tpu_custom_call.1']
    #allocation14 [shape = 'u8[65536]{0}', space=vmem, size = 0x10000, scoped, tag = 'input window, operand 6']
    #allocation15 [shape = 'u8[262144]{0}', space=vmem, size = 0x40000, scoped, tag = 'input window, operand 10']
    #allocation16 [shape = 's32[2]{0}', space=sflag, size = 0x8, scoped, tag = 'scoped memory for tpu_custom_call.1']
    #allocation17 [shape = 'u8[262144]{0}', space=vmem, size = 0x40000, scoped, tag = 'input window, operand 12']
    #allocation18 [shape = 'u8[32768]{0}', space=vmem, size = 0x8000, scoped, tag = 'input window, operand 16, single buffered']
    #allocation19 [shape = 's32[1]{0}', space=sflag, size = 0x4, scoped, tag = 'scoped memory for tpu_custom_call.1']
    #allocation20 [shape = 'u8[1024]{0}', space=vmem, size = 0x400, scoped, tag = 'output window, operand 0, single buffered']
    %26 = vsyncpa [#allocation7], 0
    %27 = vsyncpa [#allocation10], 0
    %s28 = scalar_lea.sflag [#allocation10], 1
    %29 = vsyncpa %s28, 0
    %30 = vsyncpa [#allocation13], 0
    %s31 = scalar_lea.sflag [#allocation13], 1
    %32 = vsyncpa %s31, 0
    %33 = vsyncpa [#allocation16], 0
    %s34 = scalar_lea.sflag [#allocation16], 1
    %35 = vsyncpa %s34, 0
    %36 = vsyncpa [#allocation19], 0
    %37 = vsyncpa [#allocation8], 0
    loop: start=0, step=1, limit=4
    $region2: #{tpu_custom_call.1} parent=1 // loop_pre_header
      _
    $region3: #{tpu_custom_call.1} parent=1 // loop_header
      %s39 = sphi 0, %s43
      %p40 = scmp.ge.s32.totalorder %s39, 4
      %s47 = sphi 0, %s47
      %s49 = sphi 0, %s47
      %s50 = sphi 0, %s49
      %s64 = sphi 0, %s50
      %s70 = sphi 0, %s72
      %s73 = sphi 0, %s70
      %s74 = sphi 0, %s73
      %s90 = sphi 0, %s74
      %s96 = sphi 0, %s98
      %s99 = sphi 0, %s96
      %s100 = sphi 0, %s99
      %s116 = sphi 0, %s100
      %s122 = sphi 0, %s124
      %s125 = sphi 0, %s122
      %s126 = sphi 0, %s125
      %s142 = sphi 0, %s126
      %s148 = sphi 0, %s150
      %s151 = sphi 0, %s148
      %s152 = sphi 0, %s151
      %s168 = sphi 0, %s152
      %s174 = sphi 0, %s176
      %s177 = sphi 0, %s174
      %s178 = sphi 0, %s177
      %s194 = sphi 0, %s178
      %s200 = sphi 0, %s202
      %s203 = sphi 0, %s200
      %s204 = sphi 0, %s203
      %s220 = sphi 0, %s204
      %s226 = sphi 0, %s228
      %s229 = sphi 0, %s226
      %s230 = sphi 0, %s229
      %s246 = sphi 0, %s230
      %s252 = sphi 0, %s254
      %s255 = sphi 0, %s252
      %s256 = sphi 0, %s255
      %s272 = sphi 0, %s256
      %s278 = sphi 0, %s280
      %s281 = sphi 0, %s278
      %s282 = sphi 0, %s281
      %s298 = sphi 0, %s282
      %s304 = sphi 0, %s306
      %s307 = sphi 0, %s304
      %s308 = sphi 0, %s307
      %s324 = sphi 0, %s308
      %s330 = sphi 0, %s332
      %s333 = sphi 0, %s330
      %s334 = sphi 0, %s333
      %s350 = sphi 0, %s334
      %s356 = sphi 0, %s358
      %s359 = sphi 0, %s356
      %s360 = sphi 0, %s359
      %s376 = sphi 0, %s360
      %s380 = sphi 0, %s380
      %s382 = sphi 0, %s380
      %s383 = sphi 0, %s382
      %s397 = sphi 0, %s383
      %s401 = sphi 0, %s401
      %s403 = sphi 0, %s401
      %s404 = sphi 0, %s403
      %s418 = sphi 0, %s404
      %s422 = sphi 0, %s422
      %s424 = sphi 0, %s422
      %s425 = sphi 0, %s424
      %s439 = sphi 0, %s425
      %s443 = sphi 0, %s443
      %s445 = sphi 0, %s443
      %s446 = sphi 0, %s445
      %s460 = sphi 0, %s446
    $region4: #{tpu_custom_call.1} parent=1 // loop_header_branch
      %42 = sbr.rel (%p40) target = $region8
    $region5: #{tpu_custom_call.1} parent=1 // loop_body
      %s44 = ssub.s32 %s39, 1
      %s45 = ssub.s32 %s39, 2
      %s46 = sadd.s32 %s39, 1
      %s48 = sadd.s32 %s47, 1
      %p51 = scmp.eq.s32.totalorder %s39, 1
      %p52 = scmp.ne.s32.totalorder %s47, %s49
      %p53 = scmp.eq.s32.totalorder %s39, 0
      %p54 = por %p52, %p53
      %p55 = scmp.ne.s32.totalorder %s47, %s49
      %p56 = scmp.eq.s32.totalorder %s44, 1
      %p57 = por %p55, %p56
      %p58 = scmp.ne.s32.totalorder %s49, %s50
      %p59 = scmp.eq.s32.totalorder %s44, 0
      %p60 = por %p58, %p59
      %p61 = scmp.ne.s32.totalorder %s49, %s50
      %p62 = scmp.eq.s32.totalorder %s45, 1
      %p63 = por %p61, %p62
      %p65 = scmp.ne.s32.totalorder %s50, %s64
      %p66 = scmp.eq.s32.totalorder %s45, 0
      %p67 = por %p65, %p66
      %s68 = ssub.s32 %s39, %s46
      %p69 = scmp.eq.s32.totalorder %s68, 0
      %s71 = sadd.s32 %s70, 1
      %s72 = scalar_select %p69, %s70, %s71
      %p75 = pneg %p69
      %p76 = scmp.eq.s32.totalorder %s39, 1
      %p77 = por %p75, %p76
      %p78 = scmp.ne.s32.totalorder %s70, %s73
      %p79 = scmp.eq.s32.totalorder %s39, 0
      %p80 = por %p78, %p79
      %p81 = scmp.ne.s32.totalorder %s70, %s73
      %p82 = scmp.eq.s32.totalorder %s44, 1
      %p83 = por %p81, %p82
      %p84 = scmp.ne.s32.totalorder %s73, %s74
      %p85 = scmp.eq.s32.totalorder %s44, 0
      %p86 = por %p84, %p85
      %p87 = scmp.ne.s32.totalorder %s73, %s74
      %p88 = scmp.eq.s32.totalorder %s45, 1
      %p89 = por %p87, %p88
      %p91 = scmp.ne.s32.totalorder %s74, %s90
      %p92 = scmp.eq.s32.totalorder %s45, 0
      %p93 = por %p91, %p92
      %s94 = ssub.s32 %s39, %s46
      %p95 = scmp.eq.s32.totalorder %s94, 0
      %s97 = sadd.s32 %s96, 1
      %s98 = scalar_select %p95, %s96, %s97
      %p101 = pneg %p95
      %p102 = scmp.eq.s32.totalorder %s39, 1
      %p103 = por %p101, %p102
      %p104 = scmp.ne.s32.totalorder %s96, %s99
      %p105 = scmp.eq.s32.totalorder %s39, 0
      %p106 = por %p104, %p105
      %p107 = scmp.ne.s32.totalorder %s96, %s99
      %p108 = scmp.eq.s32.totalorder %s44, 1
      %p109 = por %p107, %p108
      %p110 = scmp.ne.s32.totalorder %s99, %s100
      %p111 = scmp.eq.s32.totalorder %s44, 0
      %p112 = por %p110, %p111
      %p113 = scmp.ne.s32.totalorder %s99, %s100
      %p114 = scmp.eq.s32.totalorder %s45, 1
      %p115 = por %p113, %p114
      %p117 = scmp.ne.s32.totalorder %s100, %s116
      %p118 = scmp.eq.s32.totalorder %s45, 0
      %p119 = por %p117, %p118
      %s120 = ssub.s32 %s39, %s46
      %p121 = scmp.eq.s32.totalorder %s120, 0
      %s123 = sadd.s32 %s122, 1
      %s124 = scalar_select %p121, %s122, %s123
      %p127 = pneg %p121
      %p128 = scmp.eq.s32.totalorder %s39, 1
      %p129 = por %p127, %p128
      %p130 = scmp.ne.s32.totalorder %s122, %s125
      %p131 = scmp.eq.s32.totalorder %s39, 0
      %p132 = por %p130, %p131
      %p133 = scmp.ne.s32.totalorder %s122, %s125
      %p134 = scmp.eq.s32.totalorder %s44, 1
      %p135 = por %p133, %p134
      %p136 = scmp.ne.s32.totalorder %s125, %s126
      %p137 = scmp.eq.s32.totalorder %s44, 0
      %p138 = por %p136, %p137
      %p139 = scmp.ne.s32.totalorder %s125, %s126
      %p140 = scmp.eq.s32.totalorder %s45, 1
      %p141 = por %p139, %p140
      %p143 = scmp.ne.s32.totalorder %s126, %s142
      %p144 = scmp.eq.s32.totalorder %s45, 0
      %p145 = por %p143, %p144
      %s146 = ssub.s32 %s39, %s46
      %p147 = scmp.eq.s32.totalorder %s146, 0
      %s149 = sadd.s32 %s148, 1
      %s150 = scalar_select %p147, %s148, %s149
      %p153 = pneg %p147
      %p154 = scmp.eq.s32.totalorder %s39, 1
      %p155 = por %p153, %p154
      %p156 = scmp.ne.s32.totalorder %s148, %s151
      %p157 = scmp.eq.s32.totalorder %s39, 0
      %p158 = por %p156, %p157
      %p159 = scmp.ne.s32.totalorder %s148, %s151
      %p160 = scmp.eq.s32.totalorder %s44, 1
      %p161 = por %p159, %p160
      %p162 = scmp.ne.s32.totalorder %s151, %s152
      %p163 = scmp.eq.s32.totalorder %s44, 0
      %p164 = por %p162, %p163
      %p165 = scmp.ne.s32.totalorder %s151, %s152
      %p166 = scmp.eq.s32.totalorder %s45, 1
      %p167 = por %p165, %p166
      %p169 = scmp.ne.s32.totalorder %s152, %s168
      %p170 = scmp.eq.s32.totalorder %s45, 0
      %p171 = por %p169, %p170
      %s172 = ssub.s32 %s39, %s46
      %p173 = scmp.eq.s32.totalorder %s172, 0
      %s175 = sadd.s32 %s174, 1
      %s176 = scalar_select %p173, %s174, %s175
      %p179 = pneg %p173
      %p180 = scmp.eq.s32.totalorder %s39, 1
      %p181 = por %p179, %p180
      %p182 = scmp.ne.s32.totalorder %s174, %s177
      %p183 = scmp.eq.s32.totalorder %s39, 0
      %p184 = por %p182, %p183
      %p185 = scmp.ne.s32.totalorder %s174, %s177
      %p186 = scmp.eq.s32.totalorder %s44, 1
      %p187 = por %p185, %p186
      %p188 = scmp.ne.s32.totalorder %s177, %s178
      %p189 = scmp.eq.s32.totalorder %s44, 0
      %p190 = por %p188, %p189
      %p191 = scmp.ne.s32.totalorder %s177, %s178
      %p192 = scmp.eq.s32.totalorder %s45, 1
      %p193 = por %p191, %p192
      %p195 = scmp.ne.s32.totalorder %s178, %s194
      %p196 = scmp.eq.s32.totalorder %s45, 0
      %p197 = por %p195, %p196
      %s198 = ssub.s32 %s39, %s46
      %p199 = scmp.eq.s32.totalorder %s198, 0
      %s201 = sadd.s32 %s200, 1
      %s202 = scalar_select %p199, %s200, %s201
      %p205 = pneg %p199
      %p206 = scmp.eq.s32.totalorder %s39, 1
      %p207 = por %p205, %p206
      %p208 = scmp.ne.s32.totalorder %s200, %s203
      %p209 = scmp.eq.s32.totalorder %s39, 0
      %p210 = por %p208, %p209
      %p211 = scmp.ne.s32.totalorder %s200, %s203
      %p212 = scmp.eq.s32.totalorder %s44, 1
      %p213 = por %p211, %p212
      %p214 = scmp.ne.s32.totalorder %s203, %s204
      %p215 = scmp.eq.s32.totalorder %s44, 0
      %p216 = por %p214, %p215
      %p217 = scmp.ne.s32.totalorder %s203, %s204
      %p218 = scmp.eq.s32.totalorder %s45, 1
      %p219 = por %p217, %p218
      %p221 = scmp.ne.s32.totalorder %s204, %s220
      %p222 = scmp.eq.s32.totalorder %s45, 0
      %p223 = por %p221, %p222
      %s224 = ssub.s32 %s39, %s46
      %p225 = scmp.eq.s32.totalorder %s224, 0
      %s227 = sadd.s32 %s226, 1
      %s228 = scalar_select %p225, %s226, %s227
      %p231 = pneg %p225
      %p232 = scmp.eq.s32.totalorder %s39, 1
      %p233 = por %p231, %p232
      %p234 = scmp.ne.s32.totalorder %s226, %s229
      %p235 = scmp.eq.s32.totalorder %s39, 0
      %p236 = por %p234, %p235
      %p237 = scmp.ne.s32.totalorder %s226, %s229
      %p238 = scmp.eq.s32.totalorder %s44, 1
      %p239 = por %p237, %p238
      %p240 = scmp.ne.s32.totalorder %s229, %s230
      %p241 = scmp.eq.s32.totalorder %s44, 0
      %p242 = por %p240, %p241
      %p243 = scmp.ne.s32.totalorder %s229, %s230
      %p244 = scmp.eq.s32.totalorder %s45, 1
      %p245 = por %p243, %p244
      %p247 = scmp.ne.s32.totalorder %s230, %s246
      %p248 = scmp.eq.s32.totalorder %s45, 0
      %p249 = por %p247, %p248
      %s250 = ssub.s32 %s39, %s46
      %p251 = scmp.eq.s32.totalorder %s250, 0
      %s253 = sadd.s32 %s252, 1
      %s254 = scalar_select %p251, %s252, %s253
      %p257 = pneg %p251
      %p258 = scmp.eq.s32.totalorder %s39, 1
      %p259 = por %p257, %p258
      %p260 = scmp.ne.s32.totalorder %s252, %s255
      %p261 = scmp.eq.s32.totalorder %s39, 0
      %p262 = por %p260, %p261
      %p263 = scmp.ne.s32.totalorder %s252, %s255
      %p264 = scmp.eq.s32.totalorder %s44, 1
      %p265 = por %p263, %p264
      %p266 = scmp.ne.s32.totalorder %s255, %s256
      %p267 = scmp.eq.s32.totalorder %s44, 0
      %p268 = por %p266, %p267
      %p269 = scmp.ne.s32.totalorder %s255, %s256
      %p270 = scmp.eq.s32.totalorder %s45, 1
      %p271 = por %p269, %p270
      %p273 = scmp.ne.s32.totalorder %s256, %s272
      %p274 = scmp.eq.s32.totalorder %s45, 0
      %p275 = por %p273, %p274
      %s276 = ssub.s32 %s39, %s46
      %p277 = scmp.eq.s32.totalorder %s276, 0
      %s279 = sadd.s32 %s278, 1
      %s280 = scalar_select %p277, %s278, %s279
      %p283 = pneg %p277
      %p284 = scmp.eq.s32.totalorder %s39, 1
      %p285 = por %p283, %p284
      %p286 = scmp.ne.s32.totalorder %s278, %s281
      %p287 = scmp.eq.s32.totalorder %s39, 0
      %p288 = por %p286, %p287
      %p289 = scmp.ne.s32.totalorder %s278, %s281
      %p290 = scmp.eq.s32.totalorder %s44, 1
      %p291 = por %p289, %p290
      %p292 = scmp.ne.s32.totalorder %s281, %s282
      %p293 = scmp.eq.s32.totalorder %s44, 0
      %p294 = por %p292, %p293
      %p295 = scmp.ne.s32.totalorder %s281, %s282
      %p296 = scmp.eq.s32.totalorder %s45, 1
      %p297 = por %p295, %p296
      %p299 = scmp.ne.s32.totalorder %s282, %s298
      %p300 = scmp.eq.s32.totalorder %s45, 0
      %p301 = por %p299, %p300
      %s302 = ssub.s32 %s39, %s46
      %p303 = scmp.eq.s32.totalorder %s302, 0
      %s305 = sadd.s32 %s304, 1
      %s306 = scalar_select %p303, %s304, %s305
      %p309 = pneg %p303
      %p310 = scmp.eq.s32.totalorder %s39, 1
      %p311 = por %p309, %p310
      %p312 = scmp.ne.s32.totalorder %s304, %s307
      %p313 = scmp.eq.s32.totalorder %s39, 0
      %p314 = por %p312, %p313
      %p315 = scmp.ne.s32.totalorder %s304, %s307
      %p316 = scmp.eq.s32.totalorder %s44, 1
      %p317 = por %p315, %p316
      %p318 = scmp.ne.s32.totalorder %s307, %s308
      %p319 = scmp.eq.s32.totalorder %s44, 0
      %p320 = por %p318, %p319
      %p321 = scmp.ne.s32.totalorder %s307, %s308
      %p322 = scmp.eq.s32.totalorder %s45, 1
      %p323 = por %p321, %p322
      %p325 = scmp.ne.s32.totalorder %s308, %s324
      %p326 = scmp.eq.s32.totalorder %s45, 0
      %p327 = por %p325, %p326
      %s328 = ssub.s32 %s39, %s46
      %p329 = scmp.eq.s32.totalorder %s328, 0
      %s331 = sadd.s32 %s330, 1
      %s332 = scalar_select %p329, %s330, %s331
      %p335 = pneg %p329
      %p336 = scmp.eq.s32.totalorder %s39, 1
      %p337 = por %p335, %p336
      %p338 = scmp.ne.s32.totalorder %s330, %s333
      %p339 = scmp.eq.s32.totalorder %s39, 0
      %p340 = por %p338, %p339
      %p341 = scmp.ne.s32.totalorder %s330, %s333
      %p342 = scmp.eq.s32.totalorder %s44, 1
      %p343 = por %p341, %p342
      %p344 = scmp.ne.s32.totalorder %s333, %s334
      %p345 = scmp.eq.s32.totalorder %s44, 0
      %p346 = por %p344, %p345
      %p347 = scmp.ne.s32.totalorder %s333, %s334
      %p348 = scmp.eq.s32.totalorder %s45, 1
      %p349 = por %p347, %p348
      %p351 = scmp.ne.s32.totalorder %s334, %s350
      %p352 = scmp.eq.s32.totalorder %s45, 0
      %p353 = por %p351, %p352
      %s354 = ssub.s32 %s39, %s46
      %p355 = scmp.eq.s32.totalorder %s354, 0
      %s357 = sadd.s32 %s356, 1
      %s358 = scalar_select %p355, %s356, %s357
      %p361 = pneg %p355
      %p362 = scmp.eq.s32.totalorder %s39, 1
      %p363 = por %p361, %p362
      %p364 = scmp.ne.s32.totalorder %s356, %s359
      %p365 = scmp.eq.s32.totalorder %s39, 0
      %p366 = por %p364, %p365
      %p367 = scmp.ne.s32.totalorder %s356, %s359
      %p368 = scmp.eq.s32.totalorder %s44, 1
      %p369 = por %p367, %p368
      %p370 = scmp.ne.s32.totalorder %s359, %s360
      %p371 = scmp.eq.s32.totalorder %s44, 0
      %p372 = por %p370, %p371
      %p373 = scmp.ne.s32.totalorder %s359, %s360
      %p374 = scmp.eq.s32.totalorder %s45, 1
      %p375 = por %p373, %p374
      %p377 = scmp.ne.s32.totalorder %s360, %s376
      %p378 = scmp.eq.s32.totalorder %s45, 0
      %p379 = por %p377, %p378
      %s381 = sadd.s32 %s380, 1
      %p384 = scmp.eq.s32.totalorder %s39, 1
      %p385 = scmp.ne.s32.totalorder %s380, %s382
      %p386 = scmp.eq.s32.totalorder %s39, 0
      %p387 = por %p385, %p386
      %p388 = scmp.ne.s32.totalorder %s380, %s382
      %p389 = scmp.eq.s32.totalorder %s44, 1
      %p390 = por %p388, %p389
      %p391 = scmp.ne.s32.totalorder %s382, %s383
      %p392 = scmp.eq.s32.totalorder %s44, 0
      %p393 = por %p391, %p392
      %p394 = scmp.ne.s32.totalorder %s382, %s383
      %p395 = scmp.eq.s32.totalorder %s45, 1
      %p396 = por %p394, %p395
      %p398 = scmp.ne.s32.totalorder %s383, %s397
      %p399 = scmp.eq.s32.totalorder %s45, 0
      %p400 = por %p398, %p399
      %s402 = sadd.s32 %s401, 1
      %p405 = scmp.eq.s32.totalorder %s39, 1
      %p406 = scmp.ne.s32.totalorder %s401, %s403
      %p407 = scmp.eq.s32.totalorder %s39, 0
      %p408 = por %p406, %p407
      %p409 = scmp.ne.s32.totalorder %s401, %s403
      %p410 = scmp.eq.s32.totalorder %s44, 1
      %p411 = por %p409, %p410
      %p412 = scmp.ne.s32.totalorder %s403, %s404
      %p413 = scmp.eq.s32.totalorder %s44, 0
      %p414 = por %p412, %p413
      %p415 = scmp.ne.s32.totalorder %s403, %s404
      %p416 = scmp.eq.s32.totalorder %s45, 1
      %p417 = por %p415, %p416
      %p419 = scmp.ne.s32.totalorder %s404, %s418
      %p420 = scmp.eq.s32.totalorder %s45, 0
      %p421 = por %p419, %p420
      %s423 = sadd.s32 %s422, 1
      %p426 = scmp.eq.s32.totalorder %s39, 1
      %p427 = scmp.ne.s32.totalorder %s422, %s424
      %p428 = scmp.eq.s32.totalorder %s39, 0
      %p429 = por %p427, %p428
      %p430 = scmp.ne.s32.totalorder %s422, %s424
      %p431 = scmp.eq.s32.totalorder %s44, 1
      %p432 = por %p430, %p431
      %p433 = scmp.ne.s32.totalorder %s424, %s425
      %p434 = scmp.eq.s32.totalorder %s44, 0
      %p435 = por %p433, %p434
      %p436 = scmp.ne.s32.totalorder %s424, %s425
      %p437 = scmp.eq.s32.totalorder %s45, 1
      %p438 = por %p436, %p437
      %p440 = scmp.ne.s32.totalorder %s425, %s439
      %p441 = scmp.eq.s32.totalorder %s45, 0
      %p442 = por %p440, %p441
      %s444 = sadd.s32 %s443, 1
      %p447 = scmp.eq.s32.totalorder %s39, 1
      %p448 = scmp.ne.s32.totalorder %s443, %s445
      %p449 = scmp.eq.s32.totalorder %s39, 0
      %p450 = por %p448, %p449
      %p451 = scmp.ne.s32.totalorder %s443, %s445
      %p452 = scmp.eq.s32.totalorder %s44, 1
      %p453 = por %p451, %p452
      %p454 = scmp.ne.s32.totalorder %s445, %s446
      %p455 = scmp.eq.s32.totalorder %s44, 0
      %p456 = por %p454, %p455
      %p457 = scmp.ne.s32.totalorder %s445, %s446
      %p458 = scmp.eq.s32.totalorder %s45, 1
      %p459 = por %p457, %p458
      %p461 = scmp.ne.s32.totalorder %s446, %s460
      %p462 = scmp.eq.s32.totalorder %s45, 0
      %p463 = por %p461, %p462
      %p464 = scmp.le.s32.totalorder 1, %s39
      %p465 = scmp.lt.s32.totalorder %s39, 3
      %p466 = pnand %p464, %p465
      %p467 = pneg %p466
      // Predicated region
      $region9: #{tpu_custom_call.1} parent=5 // pred_check
        _
      $region10: #{tpu_custom_call.1} parent=5 // pred_check_branch
        %469 = sbr.rel (%p466) target = $region12
      $region11: #{tpu_custom_call.1} parent=5 // pred_region
        %s470 = ssub.s32 %s39, 1
        // Predicated region
        $region13: #{tpu_custom_call.1} parent=11 // pred_check
          %p471 = pneg %p60
        $region14: #{tpu_custom_call.1} parent=11 // pred_check_branch
          %473 = sbr.rel (%p471) target = $region16
        $region15: #{tpu_custom_call.1} parent=11 // pred_region
          %s475 = ssub.s32 256, 256
          %476 = vsyncadd [#allocation7], %s475
          %s477 = sshll.u32 [#allocation6], 4
          %s478 = int_to_ptr.vmem [resolvable:$true] %s477
          %483 = dma.hbm_to_vmem [thread:$0]  %s1, 256, %s478, [#allocation7], 128, 128, 8
        $region16: #{tpu_custom_call.1} parent=11 // pred_fallthru
          _
        // Predicated region
        $region17: #{tpu_custom_call.1} parent=11 // pred_check
          %p484 = pneg %p393
        $region18: #{tpu_custom_call.1} parent=11 // pred_check_branch
          %486 = sbr.rel (%p484) target = $region20
        $region19: #{tpu_custom_call.1} parent=11 // pred_region
          _
        $region20: #{tpu_custom_call.1} parent=11 // pred_fallthru
          _
        // Predicated region
        $region21: #{tpu_custom_call.1} parent=11 // pred_check
          %p487 = pneg %p414
        $region22: #{tpu_custom_call.1} parent=11 // pred_check_branch
          %489 = sbr.rel (%p487) target = $region24
        $region23: #{tpu_custom_call.1} parent=11 // pred_region
          _
        $region24: #{tpu_custom_call.1} parent=11 // pred_fallthru
          _
        // Predicated region
        $region25: #{tpu_custom_call.1} parent=11 // pred_check
          %p490 = pneg %p435
        $region26: #{tpu_custom_call.1} parent=11 // pred_check_branch
          %492 = sbr.rel (%p490) target = $region28
        $region27: #{tpu_custom_call.1} parent=11 // pred_region
          %s494 = ssub.s32 1024, 1024
          %495 = vsyncadd [#allocation19], %s494
          %s496 = sshll.u32 [#allocation18], 4
          %s497 = int_to_ptr.vmem [resolvable:$true] %s496
          %502 = dma.hbm_to_vmem [thread:$0]  %s16, 1024, %s497, [#allocation19], 64, 64, 4
        $region28: #{tpu_custom_call.1} parent=11 // pred_fallthru
          _
      $region12: #{tpu_custom_call.1} parent=5 // pred_fallthru
        _
      %p503 = scmp.lt.s32.totalorder %s39, 2
      // Predicated region
      $region29: #{tpu_custom_call.1} parent=5 // pred_check
        %p504 = pneg %p503
      $region30: #{tpu_custom_call.1} parent=5 // pred_check_branch
        %506 = sbr.rel (%p504) target = $region32
      $region31: #{tpu_custom_call.1} parent=5 // pred_region
        // Predicated region
        $region33: #{tpu_custom_call.1} parent=31 // pred_check
          %p507 = pneg %p80
        $region34: #{tpu_custom_call.1} parent=31 // pred_check_branch
          %509 = sbr.rel (%p507) target = $region36
        $region35: #{tpu_custom_call.1} parent=31 // pred_region
          %s510 = sand.u32 %s39, 1
          %s511 = scalar_lea.sflag [#allocation10], %s510
          %s512 = sand.u32 %s70, 1
          %s513 = scalar_lea.vmem [#allocation9], %s512
          %s515 = ssub.s32 16, 16
          %516 = vsyncadd %s511, %s515
          %s517 = smul.addr %s39, 16
          %s518 = scalar_lea.hbm %s2, %s517
          %s520 = sshll.u32 %s513, 4
          %s521 = int_to_ptr.vmem [resolvable:$true] %s520
          %523 = dma.hbm_to_vmem [thread:$0]  %s518, 16, %s521, %s511
        $region36: #{tpu_custom_call.1} parent=31 // pred_fallthru
          _
        // Predicated region
        $region37: #{tpu_custom_call.1} parent=31 // pred_check
          %p524 = pneg %p106
        $region38: #{tpu_custom_call.1} parent=31 // pred_check_branch
          %526 = sbr.rel (%p524) target = $region40
        $region39: #{tpu_custom_call.1} parent=31 // pred_region
          %s527 = sand.u32 %s39, 1
          %s528 = scalar_lea.sflag [#allocation10], %s527
          %s529 = sand.u32 %s96, 1
          %s530 = scalar_lea.vmem [#allocation11], %s529
          %s532 = ssub.s32 16, 16
          %533 = vsyncadd %s528, %s532
          %s534 = smul.addr %s39, 16
          %s535 = scalar_lea.hbm %s3, %s534
          %s537 = sshll.u32 %s530, 4
          %s538 = int_to_ptr.vmem [resolvable:$true] %s537
          %540 = dma.hbm_to_vmem [thread:$0]  %s535, 16, %s538, %s528
        $region40: #{tpu_custom_call.1} parent=31 // pred_fallthru
          _
        // Predicated region
        $region41: #{tpu_custom_call.1} parent=31 // pred_check
          %p541 = pneg %p132
        $region42: #{tpu_custom_call.1} parent=31 // pred_check_branch
          %543 = sbr.rel (%p541) target = $region44
        $region43: #{tpu_custom_call.1} parent=31 // pred_region
          %s544 = sand.u32 %s39, 1
          %s545 = scalar_lea.sflag [#allocation13], %s544
          %s546 = sand.u32 %s122, 1
          %s547 = smul.addr %s546, 192
          %s548 = scalar_lea.vmem [#allocation12], %s547
          %s550 = ssub.s32 3072, 3072
          %551 = vsyncadd %s545, %s550
          %s552 = smul.addr %s39, 48
          %s553 = smul.addr %s552, 64
          %s554 = scalar_lea.hbm %s4, %s553
          %s555 = sshll.u32 %s548, 4
          %s556 = int_to_ptr.vmem [resolvable:$true] %s555
          %561 = dma.hbm_to_vmem [thread:$0]  %s554, 3072, %s556, %s545, 192, 192, 12
        $region44: #{tpu_custom_call.1} parent=31 // pred_fallthru
          _
        // Predicated region
        $region45: #{tpu_custom_call.1} parent=31 // pred_check
          %p562 = pneg %p158
        $region46: #{tpu_custom_call.1} parent=31 // pred_check_branch
          %564 = sbr.rel (%p562) target = $region48
        $region47: #{tpu_custom_call.1} parent=31 // pred_region
          %p565 = scmp.lt.s32.totalorder %s39, 1
          %s566 = scalar_select %p565, %s39, 1
          %s567 = smul.addr %s566, 3
          %s568 = scalar_lea.vmem %s5, %s567
        $region48: #{tpu_custom_call.1} parent=31 // pred_fallthru
          _
        // Predicated region
        $region49: #{tpu_custom_call.1} parent=31 // pred_check
          %p569 = pneg %p184
        $region50: #{tpu_custom_call.1} parent=31 // pred_check_branch
          %571 = sbr.rel (%p569) target = $region52
        $region51: #{tpu_custom_call.1} parent=31 // pred_region
          %s572 = sand.u32 %s39, 1
          %s573 = scalar_lea.sflag [#allocation13], %s572
          %s574 = sand.u32 %s174, 1
          %s575 = smul.addr %s574, 64
          %s576 = scalar_lea.vmem [#allocation14], %s575
          %s578 = ssub.s32 1024, 1024
          %579 = vsyncadd %s573, %s578
          %s580 = smul.addr %s39, 16
          %s581 = smul.addr %s580, 64
          %s582 = scalar_lea.hbm %s6, %s581
          %s583 = sshll.u32 %s576, 4
          %s584 = int_to_ptr.vmem [resolvable:$true] %s583
          %589 = dma.hbm_to_vmem [thread:$0]  %s582, 1024, %s584, %s573, 64, 64, 4
        $region52: #{tpu_custom_call.1} parent=31 // pred_fallthru
          _
        // Predicated region
        $region53: #{tpu_custom_call.1} parent=31 // pred_check
          %p590 = pneg %p210
        $region54: #{tpu_custom_call.1} parent=31 // pred_check_branch
          %592 = sbr.rel (%p590) target = $region56
        $region55: #{tpu_custom_call.1} parent=31 // pred_region
          %p593 = scmp.lt.s32.totalorder %s39, 1
          %s594 = scalar_select %p593, %s39, 1
          %s595 = scalar_lea.vmem %s7, %s594
        $region56: #{tpu_custom_call.1} parent=31 // pred_fallthru
          _
        // Predicated region
        $region57: #{tpu_custom_call.1} parent=31 // pred_check
          %p596 = pneg %p236
        $region58: #{tpu_custom_call.1} parent=31 // pred_check_branch
          %598 = sbr.rel (%p596) target = $region60
        $region59: #{tpu_custom_call.1} parent=31 // pred_region
          %p599 = scmp.lt.s32.totalorder %s39, 1
          %s600 = scalar_select %p599, %s39, 1
          %s601 = scalar_lea.vmem %s8, %s600
        $region60: #{tpu_custom_call.1} parent=31 // pred_fallthru
          _
        // Predicated region
        $region61: #{tpu_custom_call.1} parent=31 // pred_check
          %p602 = pneg %p262
        $region62: #{tpu_custom_call.1} parent=31 // pred_check_branch
          %604 = sbr.rel (%p602) target = $region64
        $region63: #{tpu_custom_call.1} parent=31 // pred_region
          %p605 = scmp.lt.s32.totalorder %s39, 1
          %s606 = scalar_select %p605, %s39, 1
          %s607 = scalar_lea.vmem %s9, %s606
        $region64: #{tpu_custom_call.1} parent=31 // pred_fallthru
          _
        // Predicated region
        $region65: #{tpu_custom_call.1} parent=31 // pred_check
          %p608 = pneg %p288
        $region66: #{tpu_custom_call.1} parent=31 // pred_check_branch
          %610 = sbr.rel (%p608) target = $region68
        $region67: #{tpu_custom_call.1} parent=31 // pred_region
          %s611 = sand.u32 %s39, 1
          %s612 = scalar_lea.sflag [#allocation16], %s611
          %s613 = sand.u32 %s278, 1
          %s614 = smul.addr %s613, 256
          %s615 = scalar_lea.vmem [#allocation15], %s614
          %s617 = ssub.s32 4096, 4096
          %618 = vsyncadd %s612, %s617
          %s619 = smul.addr %s39, 64
          %s620 = smul.addr %s619, 64
          %s621 = scalar_lea.hbm %s10, %s620
          %s622 = sshll.u32 %s615, 4
          %s623 = int_to_ptr.vmem [resolvable:$true] %s622
          %628 = dma.hbm_to_vmem [thread:$0]  %s621, 4096, %s623, %s612, 256, 256, 16
        $region68: #{tpu_custom_call.1} parent=31 // pred_fallthru
          _
        // Predicated region
        $region69: #{tpu_custom_call.1} parent=31 // pred_check
          %p629 = pneg %p314
        $region70: #{tpu_custom_call.1} parent=31 // pred_check_branch
          %631 = sbr.rel (%p629) target = $region72
        $region71: #{tpu_custom_call.1} parent=31 // pred_region
          %p632 = scmp.lt.s32.totalorder %s39, 1
          %s633 = scalar_select %p632, %s39, 1
          %s634 = smul.addr %s633, 4
          %s635 = scalar_lea.vmem %s11, %s634
        $region72: #{tpu_custom_call.1} parent=31 // pred_fallthru
          _
        // Predicated region
        $region73: #{tpu_custom_call.1} parent=31 // pred_check
          %p636 = pneg %p340
        $region74: #{tpu_custom_call.1} parent=31 // pred_check_branch
          %638 = sbr.rel (%p636) target = $region76
        $region75: #{tpu_custom_call.1} parent=31 // pred_region
          %s639 = sand.u32 %s39, 1
          %s640 = scalar_lea.sflag [#allocation16], %s639
          %s641 = sand.u32 %s330, 1
          %s642 = smul.addr %s641, 256
          %s643 = scalar_lea.vmem [#allocation17], %s642
          %s645 = ssub.s32 4096, 4096
          %646 = vsyncadd %s640, %s645
          %s647 = smul.addr %s39, 64
          %s648 = smul.addr %s647, 64
          %s649 = scalar_lea.hbm %s12, %s648
          %s650 = sshll.u32 %s643, 4
          %s651 = int_to_ptr.vmem [resolvable:$true] %s650
          %656 = dma.hbm_to_vmem [thread:$0]  %s649, 4096, %s651, %s640, 64, 64, 4
        $region76: #{tpu_custom_call.1} parent=31 // pred_fallthru
          _
        // Predicated region
        $region77: #{tpu_custom_call.1} parent=31 // pred_check
          %p657 = pneg %p366
        $region78: #{tpu_custom_call.1} parent=31 // pred_check_branch
          %659 = sbr.rel (%p657) target = $region80
        $region79: #{tpu_custom_call.1} parent=31 // pred_region
          %p660 = scmp.lt.s32.totalorder %s39, 1
          %s661 = scalar_select %p660, %s39, 1
          %s662 = scalar_lea.vmem %s13, %s661
        $region80: #{tpu_custom_call.1} parent=31 // pred_fallthru
          _
      $region32: #{tpu_custom_call.1} parent=5 // pred_fallthru
        _
      %p663 = scmp.le.s32.totalorder 1, %s39
      %p664 = scmp.lt.s32.totalorder %s39, 3
      %p665 = pnand %p663, %p664
      %p666 = pneg %p665
      // Predicated region
      $region81: #{tpu_custom_call.1} parent=5 // pred_check
        _
      $region82: #{tpu_custom_call.1} parent=5 // pred_check_branch
        %668 = sbr.rel (%p665) target = $region84
      $region83: #{tpu_custom_call.1} parent=5 // pred_region
        %s669 = ssub.s32 %s39, 1
        // Predicated region
        $region85: #{tpu_custom_call.1} parent=83 // pred_check
          %p670 = pneg %p60
        $region86: #{tpu_custom_call.1} parent=83 // pred_check_branch
          %672 = sbr.rel (%p670) target = $region88
        $region87: #{tpu_custom_call.1} parent=83 // pred_region
          %673 = dma.done [#allocation7], 256
        $region88: #{tpu_custom_call.1} parent=83 // pred_fallthru
          _
        %s674 = sand.u32 %s44, 1
        %s675 = scalar_lea.sflag [#allocation10], %s674
        %s676 = sand.u32 %s73, 1
        %s677 = scalar_lea.vmem [#allocation9], %s676
        // Predicated region
        $region89: #{tpu_custom_call.1} parent=83 // pred_check
          %p678 = pneg %p86
        $region90: #{tpu_custom_call.1} parent=83 // pred_check_branch
          %680 = sbr.rel (%p678) target = $region92
        $region91: #{tpu_custom_call.1} parent=83 // pred_region
          %681 = dma.done %s675, 16
        $region92: #{tpu_custom_call.1} parent=83 // pred_fallthru
          _
        %s682 = sand.u32 %s44, 1
        %s683 = scalar_lea.sflag [#allocation10], %s682
        %s684 = sand.u32 %s99, 1
        %s685 = scalar_lea.vmem [#allocation11], %s684
        // Predicated region
        $region93: #{tpu_custom_call.1} parent=83 // pred_check
          %p686 = pneg %p112
        $region94: #{tpu_custom_call.1} parent=83 // pred_check_branch
          %688 = sbr.rel (%p686) target = $region96
        $region95: #{tpu_custom_call.1} parent=83 // pred_region
          %689 = dma.done %s683, 16
        $region96: #{tpu_custom_call.1} parent=83 // pred_fallthru
          _
        %s690 = sand.u32 %s44, 1
        %s691 = scalar_lea.sflag [#allocation13], %s690
        %s692 = sand.u32 %s125, 1
        %s693 = smul.addr %s692, 192
        %s694 = scalar_lea.vmem [#allocation12], %s693
        // Predicated region
        $region97: #{tpu_custom_call.1} parent=83 // pred_check
          %p695 = pneg %p138
        $region98: #{tpu_custom_call.1} parent=83 // pred_check_branch
          %697 = sbr.rel (%p695) target = $region100
        $region99: #{tpu_custom_call.1} parent=83 // pred_region
          %698 = dma.done %s691, 3072
        $region100: #{tpu_custom_call.1} parent=83 // pred_fallthru
          _
        %s699 = sand.u32 %s44, 1
        %s700 = scalar_lea.sflag [#allocation13], %s699
        %s701 = sand.u32 %s177, 1
        %s702 = smul.addr %s701, 64
        %s703 = scalar_lea.vmem [#allocation14], %s702
        // Predicated region
        $region101: #{tpu_custom_call.1} parent=83 // pred_check
          %p704 = pneg %p190
        $region102: #{tpu_custom_call.1} parent=83 // pred_check_branch
          %706 = sbr.rel (%p704) target = $region104
        $region103: #{tpu_custom_call.1} parent=83 // pred_region
          %707 = dma.done %s700, 1024
        $region104: #{tpu_custom_call.1} parent=83 // pred_fallthru
          _
        %s708 = sand.u32 %s44, 1
        %s709 = scalar_lea.sflag [#allocation16], %s708
        %s710 = sand.u32 %s281, 1
        %s711 = smul.addr %s710, 256
        %s712 = scalar_lea.vmem [#allocation15], %s711
        // Predicated region
        $region105: #{tpu_custom_call.1} parent=83 // pred_check
          %p713 = pneg %p294
        $region106: #{tpu_custom_call.1} parent=83 // pred_check_branch
          %715 = sbr.rel (%p713) target = $region108
        $region107: #{tpu_custom_call.1} parent=83 // pred_region
          %716 = dma.done %s709, 4096
        $region108: #{tpu_custom_call.1} parent=83 // pred_fallthru
          _
        %s717 = sand.u32 %s44, 1
        %s718 = scalar_lea.sflag [#allocation16], %s717
        %s719 = sand.u32 %s333, 1
        %s720 = smul.addr %s719, 256
        %s721 = scalar_lea.vmem [#allocation17], %s720
        // Predicated region
        $region109: #{tpu_custom_call.1} parent=83 // pred_check
          %p722 = pneg %p346
        $region110: #{tpu_custom_call.1} parent=83 // pred_check_branch
          %724 = sbr.rel (%p722) target = $region112
        $region111: #{tpu_custom_call.1} parent=83 // pred_region
          %725 = dma.done %s718, 4096
        $region112: #{tpu_custom_call.1} parent=83 // pred_fallthru
          _
        // Predicated region
        $region113: #{tpu_custom_call.1} parent=83 // pred_check
          %p726 = pneg %p435
        $region114: #{tpu_custom_call.1} parent=83 // pred_check_branch
          %728 = sbr.rel (%p726) target = $region116
        $region115: #{tpu_custom_call.1} parent=83 // pred_region
          %729 = dma.done [#allocation19], 1024
        $region116: #{tpu_custom_call.1} parent=83 // pred_fallthru
          _
        %p730 = pneg %p60
        %p731 = pneg %p57
        %s732 = sand.u32 %s44, 1
        %s733 = scalar_lea.sflag [#allocation10], %s732
        %s734 = sand.u32 %s73, 1
        %s735 = scalar_lea.vmem [#allocation9], %s734
        %p736 = pneg %p86
        %p737 = pneg %p83
        %s738 = sand.u32 %s44, 1
        %s739 = scalar_lea.sflag [#allocation10], %s738
        %s740 = sand.u32 %s99, 1
        %s741 = scalar_lea.vmem [#allocation11], %s740
        %p742 = pneg %p112
        %p743 = pneg %p109
        %s744 = sand.u32 %s44, 1
        %s745 = scalar_lea.sflag [#allocation13], %s744
        %s746 = sand.u32 %s125, 1
        %s747 = smul.addr %s746, 192
        %s748 = scalar_lea.vmem [#allocation12], %s747
        %p749 = pneg %p138
        %p750 = pneg %p135
        %p751 = scmp.lt.s32.totalorder %s44, 1
        %s752 = scalar_select %p751, %s44, 1
        %s753 = smul.addr %s752, 3
        %s754 = scalar_lea.vmem %s5, %s753
        %p755 = pneg %p164
        %p756 = pneg %p161
        %s757 = sand.u32 %s44, 1
        %s758 = scalar_lea.sflag [#allocation13], %s757
        %s759 = sand.u32 %s177, 1
        %s760 = smul.addr %s759, 64
        %s761 = scalar_lea.vmem [#allocation14], %s760
        %p762 = pneg %p190
        %p763 = pneg %p187
        %p764 = scmp.lt.s32.totalorder %s44, 1
        %s765 = scalar_select %p764, %s44, 1
        %s766 = scalar_lea.vmem %s7, %s765
        %p767 = pneg %p216
        %p768 = pneg %p213
        %p769 = scmp.lt.s32.totalorder %s44, 1
        %s770 = scalar_select %p769, %s44, 1
        %s771 = scalar_lea.vmem %s8, %s770
        %p772 = pneg %p242
        %p773 = pneg %p239
        %p774 = scmp.lt.s32.totalorder %s44, 1
        %s775 = scalar_select %p774, %s44, 1
        %s776 = scalar_lea.vmem %s9, %s775
        %p777 = pneg %p268
        %p778 = pneg %p265
        %s779 = sand.u32 %s44, 1
        %s780 = scalar_lea.sflag [#allocation16], %s779
        %s781 = sand.u32 %s281, 1
        %s782 = smul.addr %s781, 256
        %s783 = scalar_lea.vmem [#allocation15], %s782
        %p784 = pneg %p294
        %p785 = pneg %p291
        %p786 = scmp.lt.s32.totalorder %s44, 1
        %s787 = scalar_select %p786, %s44, 1
        %s788 = smul.addr %s787, 4
        %s789 = scalar_lea.vmem %s11, %s788
        %p790 = pneg %p320
        %p791 = pneg %p317
        %s792 = sand.u32 %s44, 1
        %s793 = scalar_lea.sflag [#allocation16], %s792
        %s794 = sand.u32 %s333, 1
        %s795 = smul.addr %s794, 256
        %s796 = scalar_lea.vmem [#allocation17], %s795
        %p797 = pneg %p346
        %p798 = pneg %p343
        %p799 = scmp.lt.s32.totalorder %s44, 1
        %s800 = scalar_select %p799, %s44, 1
        %s801 = scalar_lea.vmem %s13, %s800
        %p802 = pneg %p372
        %p803 = pneg %p369
        %p804 = pneg %p393
        %p805 = pneg %p390
        %p806 = pneg %p414
        %p807 = pneg %p411
        %p808 = pneg %p435
        %p809 = pneg %p432
        %p810 = pneg %p456
        %p811 = pneg %p453
        %p812 = scmp.lt.s32.totalorder %s44, 1
        %s813 = scalar_select %p812, %s44, 1
        %s814 = smul.addr %s813, 3
        %s815 = scalar_lea.vmem %s5, %s814
        %p816 = scmp.lt.s32.totalorder %s44, 1
        %s817 = scalar_select %p816, %s44, 1
        %s818 = scalar_lea.vmem %s7, %s817
        %p819 = scmp.lt.s32.totalorder %s44, 1
        %s820 = scalar_select %p819, %s44, 1
        %s821 = scalar_lea.vmem %s8, %s820
        %p822 = scmp.lt.s32.totalorder %s44, 1
        %s823 = scalar_select %p822, %s44, 1
        %s824 = scalar_lea.vmem %s9, %s823
        %p825 = scmp.lt.s32.totalorder %s44, 1
        %s826 = scalar_select %p825, %s44, 1
        %s827 = smul.addr %s826, 4
        %s828 = scalar_lea.vmem %s11, %s827
        %p829 = scmp.lt.s32.totalorder %s44, 1
        %s830 = scalar_select %p829, %s44, 1
        %s831 = scalar_lea.vmem %s13, %s830
        %p833 = scmp.eq.s32.totalorder %s44, 0
        // Predicated region
        $region117: #{tpu_custom_call.1} parent=83 // pred_check
          %p834 = pneg %p833
        $region118: #{tpu_custom_call.1} parent=83 // pred_check_branch
          %836 = sbr.rel (%p834) target = $region120
        $region119: #{tpu_custom_call.1} parent=83 // pred_region
          %v837 = vld [vmem:[#allocation6] sm:$0xff]
          %v838 = vld [vmem:[#allocation6 + $0x8] sm:$0xff]
          %839 = vst [vmem:[#allocation2] sm:$0xff] %v837
          %840 = vst [vmem:[#allocation2 + $0x8] sm:$0xff] %v838
          %v841 = vlaneseq
          %v842 = vshrl.u32 %v841, 7
          %v843 = vlaneseq
          %v844 = vand.u32 %v843, 127
          %vm845 = vcmp.le.s32.totalorder %v844, %v842
          %v846 = vsel %vm845, 0.0, -inf
          %vm847 = vcmask 64512
          %848 = vst.msk [vmem:[#allocation3] sm:$0xff] %vm847, %v846
        $region120: #{tpu_custom_call.1} parent=83 // pred_fallthru
          _
        %v849 = vld [vmem:[#allocation2] sm:$0xff]
        %v850 = vld [vmem:[#allocation2 + $0x8] sm:$0xff]
        %v851 = vld [vmem:[#allocation3] sm:$0xff]
        %v852 = vld [vmem:[%s677] sm:$0x1]
        %v853 = vld [vmem:[%s685] sm:$0x1]
        %854 = vadd.xlane.f32.xlu0 %v849
        %v855 = vpop.xlane.xlu0 %854
        %856 = vadd.xlane.f32.xlu0 %v850
        %v857 = vpop.xlane.xlu0 %856
        %v858 = vrcp.pop 128.0
        %v859 = vmul.f32 %v855, %v858
        %v860 = vmul.f32 %v857, %v858
        %v861 = vsub.f32 %v849, %v859
        %v862 = vsub.f32 %v850, %v860
        %v863 = vmul.f32 %v861, %v861
        %v864 = vmul.f32 %v862, %v862
        %865 = vadd.xlane.f32.xlu0 %v863
        %v866 = vpop.xlane.xlu0 %865
        %867 = vadd.xlane.f32.xlu0 %v864
        %v868 = vpop.xlane.xlu0 %867
        %v869 = vmul.f32 %v866, %v858
        %v870 = vmul.f32 %v868, %v858
        %v871 = vadd.f32 %v869, 1e-05
        %v872 = vadd.f32 %v870, 1e-05
        %v873 = vrsqrt.pop %v871
        %v874 = vrsqrt.pop %v872
        %v875 = vmul.f32 %v861, %v873
        %v876 = vmul.f32 %v862, %v874
        %v878 = vlaneseq
        %v879 = vshrl.u32 %v878, 7
        %v880 = vsub.s32 0, %v879
        %v881 = vrot.slane %v852, %v880
        %v883 = vmul.f32 %v875, %v881
        %v884 = vmul.f32 %v876, %v881
        %v886 = vlaneseq
        %v887 = vshrl.u32 %v886, 7
        %v888 = vsub.s32 0, %v887
        %v889 = vrot.slane %v853, %v888
        %v891 = vadd.f32 %v883, %v889
        %v892 = vadd.f32 %v884, %v889
        %v893 = vpack.c.bf16 %v891, %v891
        %v894 = vpack.c.bf16 %v892, %v892
        %v895 = vld [vmem:[%s694] sm:$0xff]
        %v896 = vld [vmem:[%s694 + $0x8] sm:$0xf]
        %v897 = vld [vmem:[%s694 + $0xc] sm:$0xff]
        %v898 = vld [vmem:[%s694 + $0x14] sm:$0xf]
        %v899 = vld [vmem:[%s694 + $0x18] sm:$0xff]
        %v900 = vld [vmem:[%s694 + $0x20] sm:$0xf]
        %v901 = vld [vmem:[%s694 + $0x24] sm:$0xff]
        %v902 = vld [vmem:[%s694 + $0x2c] sm:$0xf]
        %v903 = vld [vmem:[%s694 + $0x30] sm:$0xff]
        %v904 = vld [vmem:[%s694 + $0x38] sm:$0xf]
        %v905 = vld [vmem:[%s694 + $0x3c] sm:$0xff]
        %v906 = vld [vmem:[%s694 + $0x44] sm:$0xf]
        %v907 = vld [vmem:[%s694 + $0x48] sm:$0xff]
        %v908 = vld [vmem:[%s694 + $0x50] sm:$0xf]
        %v909 = vld [vmem:[%s694 + $0x54] sm:$0xff]
        %v910 = vld [vmem:[%s694 + $0x5c] sm:$0xf]
        %v911 = vld [vmem:[%s694 + $0x60] sm:$0xff]
        %v912 = vld [vmem:[%s694 + $0x68] sm:$0xf]
        %v913 = vld [vmem:[%s694 + $0x6c] sm:$0xff]
        %v914 = vld [vmem:[%s694 + $0x74] sm:$0xf]
        %v915 = vld [vmem:[%s694 + $0x78] sm:$0xff]
        %v916 = vld [vmem:[%s694 + $0x80] sm:$0xf]
        %v917 = vld [vmem:[%s694 + $0x84] sm:$0xff]
        %v918 = vld [vmem:[%s694 + $0x8c] sm:$0xf]
        %v919 = vld [vmem:[%s694 + $0x90] sm:$0xff]
        %v920 = vld [vmem:[%s694 + $0x98] sm:$0xf]
        %v921 = vld [vmem:[%s694 + $0x9c] sm:$0xff]
        %v922 = vld [vmem:[%s694 + $0xa4] sm:$0xf]
        %v923 = vld [vmem:[%s694 + $0xa8] sm:$0xff]
        %v924 = vld [vmem:[%s694 + $0xb0] sm:$0xf]
        %v925 = vld [vmem:[%s694 + $0xb4] sm:$0xff]
        %v926 = vld [vmem:[%s694 + $0xbc] sm:$0xf]
        %v927 = vld [vmem:[%s815] sm:$0x7]
        %v929 = vlaneseq
        %v930 = vshrl.u32 %v929, 7
        %v931 = vsub.s32 0, %v930
        %v932 = vrot.slane %v927, %v931
        %v933 = vlaneseq
        %v934 = vshrl.u32 %v933, 7
        %v935 = vsub.s32 1, %v934
        %v936 = vrot.slane %v927, %v935
        %v937 = vlaneseq
        %v938 = vshrl.u32 %v937, 7
        %v939 = vsub.s32 2, %v938
        %v940 = vrot.slane %v927, %v939
        %v946 = vunpack.c.l.b16 %v893
        %v947 = vunpack.c.l.b16 %v894
        %v948 = vpack.c.b16 %v947, %v946
        %v982 = vunpack.c.l.b16 %v895
        %v983 = vunpack.c.h.b16 %v895
        %v984 = vunpack.c.l.b16 %v896
        %v985 = vunpack.c.l.b16 %v897
        %v986 = vunpack.c.h.b16 %v897
        %v987 = vunpack.c.l.b16 %v898
        %v988 = vunpack.c.l.b16 %v899
        %v989 = vunpack.c.h.b16 %v899
        %v990 = vunpack.c.l.b16 %v900
        %v991 = vunpack.c.l.b16 %v901
        %v992 = vunpack.c.h.b16 %v901
        %v993 = vunpack.c.l.b16 %v902
        %v994 = vunpack.c.l.b16 %v903
        %v995 = vunpack.c.h.b16 %v903
        %v996 = vunpack.c.l.b16 %v904
        %v997 = vunpack.c.l.b16 %v905
        %v998 = vunpack.c.h.b16 %v905
        %v999 = vunpack.c.l.b16 %v906
        %v1000 = vunpack.c.l.b16 %v907
        %v1001 = vunpack.c.h.b16 %v907
        %v1002 = vunpack.c.l.b16 %v908
        %v1003 = vunpack.c.l.b16 %v909
        %v1004 = vunpack.c.h.b16 %v909
        %v1005 = vunpack.c.l.b16 %v910
        %v1006 = vunpack.c.l.b16 %v911
        %v1007 = vunpack.c.h.b16 %v911
        %v1008 = vunpack.c.l.b16 %v912
        %v1009 = vunpack.c.l.b16 %v913
        %v1010 = vunpack.c.h.b16 %v913
        %v1011 = vunpack.c.l.b16 %v914
        %v1012 = vunpack.c.l.b16 %v915
        %v1013 = vunpack.c.h.b16 %v915
        %v1014 = vunpack.c.l.b16 %v916
        %v1015 = vunpack.c.l.b16 %v917
        %v1016 = vunpack.c.h.b16 %v917
        %v1017 = vunpack.c.l.b16 %v918
        %v1018 = vunpack.c.l.b16 %v919
        %v1019 = vunpack.c.h.b16 %v919
        %v1020 = vunpack.c.l.b16 %v920
        %v1021 = vunpack.c.l.b16 %v921
        %v1022 = vunpack.c.h.b16 %v921
        %v1023 = vunpack.c.l.b16 %v922
        %v1024 = vunpack.c.l.b16 %v923
        %v1025 = vunpack.c.h.b16 %v923
        %v1026 = vunpack.c.l.b16 %v924
        %v1027 = vunpack.c.l.b16 %v925
        %v1028 = vunpack.c.h.b16 %v925
        %v1029 = vunpack.c.l.b16 %v926
        %v1030 = vpack.c.b16 %v985, %v982
        %v1031 = vpack.c.b16 %v986, %v983
        %v1032 = vpack.c.b16 %v987, %v984
        %v1033 = vpack.c.b16 %v991, %v988
        %v1034 = vpack.c.b16 %v992, %v989
        %v1035 = vpack.c.b16 %v993, %v990
        %v1036 = vpack.c.b16 %v997, %v994
        %v1037 = vpack.c.b16 %v998, %v995
        %v1038 = vpack.c.b16 %v999, %v996
        %v1039 = vpack.c.b16 %v1003, %v1000
        %v1040 = vpack.c.b16 %v1004, %v1001
        %v1041 = vpack.c.b16 %v1005, %v1002
        %v1042 = vpack.c.b16 %v1009, %v1006
        %v1043 = vpack.c.b16 %v1010, %v1007
        %v1044 = vpack.c.b16 %v1011, %v1008
        %v1045 = vpack.c.b16 %v1015, %v1012
        %v1046 = vpack.c.b16 %v1016, %v1013
        %v1047 = vpack.c.b16 %v1017, %v1014
        %v1048 = vpack.c.b16 %v1021, %v1018
        %v1049 = vpack.c.b16 %v1022, %v1019
        %v1050 = vpack.c.b16 %v1023, %v1020
        %v1051 = vpack.c.b16 %v1027, %v1024
        %v1052 = vpack.c.b16 %v1028, %v1025
        %v1053 = vpack.c.b16 %v1029, %v1026
        %1078 = vmatprep.subr.bf16.mxu0 %v1031
        %1079 = vmatpush1.bf16.msra.mxu0 %v1030
        %1080 = vmatprep.subr.bf16.mxu0 %v1034
        %1081 = vmatpush1.bf16.msra.mxu0 %v1033
        %1082 = vmatprep.subr.bf16.mxu0 %v1037
        %1083 = vmatpush1.bf16.msra.mxu0 %v1036
        %1084 = vmatprep.subr.bf16.mxu0 %v1040
        %1085 = vmatpush1.bf16.msra.mxu0 %v1039
        %1086 = vmatprep.subr.bf16.mxu0 %v1043
        %1087 = vmatpush1.bf16.msra.mxu0 %v1042
        %1088 = vmatprep.subr.bf16.mxu0 %v1046
        %1089 = vmatpush1.bf16.msra.mxu0 %v1045
        %1090 = vmatprep.subr.bf16.mxu0 %v1049
        %1091 = vmatpush1.bf16.msra.mxu0 %v1048
        %1092 = vmatprep.subr.bf16.mxu0 %v1052
        %1093 = vmatpush1.bf16.msra.mxu0 %v1051
        %1094 = vmatprep.subr.bf16.mxu0 0
        %1095 = vmatpush1.bf16.msra.mxu0 0
        %1096 = vmatprep.subr.bf16.mxu0 0
        %1097 = vmatpush1.bf16.msra.mxu0 0
        %1098 = vmatprep.subr.bf16.mxu0 0
        %1099 = vmatpush1.bf16.msra.mxu0 0
        %1100 = vmatprep.subr.bf16.mxu0 0
        %1101 = vmatpush1.bf16.msra.mxu0 0
        %1102 = vmatprep.subr.bf16.mxu0 0
        %1103 = vmatpush1.bf16.msra.mxu0 0
        %1104 = vmatprep.subr.bf16.mxu0 0
        %1105 = vmatpush1.bf16.msra.mxu0 0
        %1106 = vmatprep.subr.bf16.mxu0 0
        %1107 = vmatpush1.bf16.msra.mxu0 0
        %1108 = vmatprep.subr.bf16.mxu0 0
        %1109 = vmatpush1.bf16.msra.mxu0 0
        %1110 = vmatprep.mubr.bf16.mxu0 0
        %1111 = vmatmul.mubr.bf16.gmra.mrb[0].mxu0 %v948
        %v1112 = vpop.f32.mrb[0].mxu0
        %v1113 = vadd.f32 %v932, %v1112
        %v1114 = vpop.f32.mrb[0].mxu0
        %v1115 = vadd.f32 %v936, %v1114
        %v1116 = vpop.f32.mrb[0].mxu0
        %v1117 = vadd.f32 %v932, %v1116
        %v1118 = vpop.f32.mrb[0].mxu0
        %v1119 = vadd.f32 %v936, %v1118
        %1120 = vdwg.mxu0
        %1121 = vmatprep.subr.bf16.mxu0 0
        %1122 = vmatpush1.bf16.msra.mxu0 %v1032
        %1123 = vmatprep.subr.bf16.mxu0 0
        %1124 = vmatpush1.bf16.msra.mxu0 %v1035
        %1125 = vmatprep.subr.bf16.mxu0 0
        %1126 = vmatpush1.bf16.msra.mxu0 %v1038
        %1127 = vmatprep.subr.bf16.mxu0 0
        %1128 = vmatpush1.bf16.msra.mxu0 %v1041
        %1129 = vmatprep.subr.bf16.mxu0 0
        %1130 = vmatpush1.bf16.msra.mxu0 %v1044
        %1131 = vmatprep.subr.bf16.mxu0 0
        %1132 = vmatpush1.bf16.msra.mxu0 %v1047
        %1133 = vmatprep.subr.bf16.mxu0 0
        %1134 = vmatpush1.bf16.msra.mxu0 %v1050
        %1135 = vmatprep.subr.bf16.mxu0 0
        %1136 = vmatpush1.bf16.msra.mxu0 %v1053
        %1137 = vmatprep.subr.bf16.mxu0 0
        %1138 = vmatpush1.bf16.msra.mxu0 0
        %1139 = vmatprep.subr.bf16.mxu0 0
        %1140 = vmatpush1.bf16.msra.mxu0 0
        %1141 = vmatprep.subr.bf16.mxu0 0
        %1142 = vmatpush1.bf16.msra.mxu0 0
        %1143 = vmatprep.subr.bf16.mxu0 0
        %1144 = vmatpush1.bf16.msra.mxu0 0
        %1145 = vmatprep.subr.bf16.mxu0 0
        %1146 = vmatpush1.bf16.msra.mxu0 0
        %1147 = vmatprep.subr.bf16.mxu0 0
        %1148 = vmatpush1.bf16.msra.mxu0 0
        %1149 = vmatprep.subr.bf16.mxu0 0
        %1150 = vmatpush1.bf16.msra.mxu0 0
        %1151 = vmatprep.subr.bf16.mxu0 0
        %1152 = vmatpush1.bf16.msra.mxu0 0
        %1153 = vmatprep.mubr.bf16.mxu0 0
        %1154 = vmatmul.mubr.bf16.gmra.mrb[0].mxu0 %v948
        %v1155 = vpop.f32.mrb[0].mxu0
        %v1156 = vadd.f32 %v940, %v1155
        %v1157 = vpop.f32.mrb[0].mxu0
        %v1158 = vpop.f32.mrb[0].mxu0
        %v1159 = vadd.f32 %v940, %v1158
        %v1160 = vpop.f32.mrb[0].mxu0
        %1161 = vdwg.mxu0
        %v1162 = vld [vmem:[%s703] sm:$0xf]
        %v1163 = vld [vmem:[%s703 + $0x4] sm:$0xf]
        %v1164 = vld [vmem:[%s703 + $0x8] sm:$0xf]
        %v1165 = vld [vmem:[%s703 + $0xc] sm:$0xf]
        %v1166 = vld [vmem:[%s703 + $0x10] sm:$0xf]
        %v1167 = vld [vmem:[%s703 + $0x14] sm:$0xf]
        %v1168 = vld [vmem:[%s703 + $0x18] sm:$0xf]
        %v1169 = vld [vmem:[%s703 + $0x1c] sm:$0xf]
        %v1170 = vld [vmem:[%s703 + $0x20] sm:$0xf]
        %v1171 = vld [vmem:[%s703 + $0x24] sm:$0xf]
        %v1172 = vld [vmem:[%s703 + $0x28] sm:$0xf]
        %v1173 = vld [vmem:[%s703 + $0x2c] sm:$0xf]
        %v1174 = vld [vmem:[%s703 + $0x30] sm:$0xf]
        %v1175 = vld [vmem:[%s703 + $0x34] sm:$0xf]
        %v1176 = vld [vmem:[%s703 + $0x38] sm:$0xf]
        %v1177 = vld [vmem:[%s703 + $0x3c] sm:$0xf]
        %v1178 = vpack.c.bf16 %v1113, %v1113
        %v1179 = vpack.c.bf16 %v1117, %v1117
        %v1180 = vpack.c.bf16 %v1115, %v1115
        %v1181 = vpack.c.bf16 %v1119, %v1119
        %v1182 = vpack.c.bf16 %v1156, %v1156
        %v1183 = vpack.c.bf16 %v1159, %v1159
        %vm1184 = vcmask 261120
        %v1186 = vsel %vm1184, %v1178, 0
        %v1189 = vsel %vm1184, %v1180, 0
        %1191 = vmatprep.subr.bf16.mxu0 0
        %1192 = vmatpush1.bf16.xpose.msra.mxu0 %v1189
        %1193 = vmatprep.subr.bf16.mxu0 0
        %1194 = vmatpush1.bf16.xpose.msra.mxu0 0
        %1195 = vmatprep.subr.bf16.mxu0 0
        %1196 = vmatpush1.bf16.xpose.msra.mxu0 0
        %1197 = vmatprep.subr.bf16.mxu0 0
        %1198 = vmatpush1.bf16.xpose.msra.mxu0 0
        %1199 = vmatprep.subr.bf16.mxu0 0
        %1200 = vmatpush1.bf16.xpose.msra.mxu0 0
        %1201 = vmatprep.subr.bf16.mxu0 0
        %1202 = vmatpush1.bf16.xpose.msra.mxu0 0
        %1203 = vmatprep.subr.bf16.mxu0 0
        %1204 = vmatpush1.bf16.xpose.msra.mxu0 0
        %1205 = vmatprep.subr.bf16.mxu0 0
        %1206 = vmatpush1.bf16.xpose.msra.mxu0 0
        %1207 = vmatprep.subr.bf16.mxu0 0
        %1208 = vmatpush1.bf16.xpose.msra.mxu0 0
        %1209 = vmatprep.subr.bf16.mxu0 0
        %1210 = vmatpush1.bf16.xpose.msra.mxu0 0
        %1211 = vmatprep.subr.bf16.mxu0 0
        %1212 = vmatpush1.bf16.xpose.msra.mxu0 0
        %1213 = vmatprep.subr.bf16.mxu0 0
        %1214 = vmatpush1.bf16.xpose.msra.mxu0 0
        %1215 = vmatprep.subr.bf16.mxu0 0
        %1216 = vmatpush1.bf16.xpose.msra.mxu0 0
        %1217 = vmatprep.subr.bf16.mxu0 0
        %1218 = vmatpush1.bf16.xpose.msra.mxu0 0
        %1219 = vmatprep.subr.bf16.mxu0 0
        %1220 = vmatpush1.bf16.xpose.msra.mxu0 0
        %1221 = vmatprep.subr.bf16.mxu0 0
        %1222 = vmatpush1.bf16.xpose.msra.mxu0 0
        %1223 = vmatprep.mubr.bf16.mxu0 0
        %1224 = vmatmul.mubr.bf16.gmra.mrb[0].mxu0 %v1186
        %v1225 = vpop.f32.mrb[0].mxu0
        %v1226 = vadd.f32 0.0, %v1225
        %v1227 = vpop.f32.mrb[0].mxu0
        %v1228 = vpop.f32.mrb[0].mxu0
        %v1229 = vpop.f32.mrb[0].mxu0
        %1230 = vdwg.mxu0
        %v1232 = vsel %vm1184, %v1179, 0
        %v1235 = vsel %vm1184, %v1181, 0
        %1237 = vmatprep.subr.bf16.mxu0 0
        %1238 = vmatpush1.bf16.xpose.msra.mxu0 %v1235
        %1239 = vmatprep.subr.bf16.mxu0 0
        %1240 = vmatpush1.bf16.xpose.msra.mxu0 0
        %1241 = vmatprep.subr.bf16.mxu0 0
        %1242 = vmatpush1.bf16.xpose.msra.mxu0 0
        %1243 = vmatprep.subr.bf16.mxu0 0
        %1244 = vmatpush1.bf16.xpose.msra.mxu0 0
        %1245 = vmatprep.subr.bf16.mxu0 0
        %1246 = vmatpush1.bf16.xpose.msra.mxu0 0
        %1247 = vmatprep.subr.bf16.mxu0 0
        %1248 = vmatpush1.bf16.xpose.msra.mxu0 0
        %1249 = vmatprep.subr.bf16.mxu0 0
        %1250 = vmatpush1.bf16.xpose.msra.mxu0 0
        %1251 = vmatprep.subr.bf16.mxu0 0
        %1252 = vmatpush1.bf16.xpose.msra.mxu0 0
        %1253 = vmatprep.subr.bf16.mxu0 0
        %1254 = vmatpush1.bf16.xpose.msra.mxu0 0
        %1255 = vmatprep.subr.bf16.mxu0 0
        %1256 = vmatpush1.bf16.xpose.msra.mxu0 0
        %1257 = vmatprep.subr.bf16.mxu0 0
        %1258 = vmatpush1.bf16.xpose.msra.mxu0 0
        %1259 = vmatprep.subr.bf16.mxu0 0
        %1260 = vmatpush1.bf16.xpose.msra.mxu0 0
        %1261 = vmatprep.subr.bf16.mxu0 0
        %1262 = vmatpush1.bf16.xpose.msra.mxu0 0
        %1263 = vmatprep.subr.bf16.mxu0 0
        %1264 = vmatpush1.bf16.xpose.msra.mxu0 0
        %1265 = vmatprep.subr.bf16.mxu0 0
        %1266 = vmatpush1.bf16.xpose.msra.mxu0 0
        %1267 = vmatprep.subr.bf16.mxu0 0
        %1268 = vmatpush1.bf16.xpose.msra.mxu0 0
        %1269 = vmatprep.mubr.bf16.mxu0 0
        %1270 = vmatmul.mubr.bf16.gmra.mrb[0].mxu0 %v1232
        %v1271 = vpop.f32.mrb[0].mxu0
        %v1272 = vadd.f32 0.0, %v1271
        %v1273 = vpop.f32.mrb[0].mxu0
        %v1274 = vpop.f32.mrb[0].mxu0
        %v1275 = vpop.f32.mrb[0].mxu0
        %1276 = vdwg.mxu0
        %v1277 = vmul.f32 %v1226, 0.17677669
        %v1278 = vmul.f32 %v1272, 0.17677669
        %v1279 = vadd.f32 %v1277, %v851
        %v1280 = vadd.f32 %v1278, %v851
        %vm1281 = vcmask 64512
        %v1282 = vsel %vm1281, %v1279, -inf
        %1283 = vmax.xlane.f32.xlu0 %v1282
        %v1284 = vpop.xlane.xlu0 %1283
        %v1285 = vsel %vm1281, %v1280, -inf
        %1286 = vmax.xlane.f32.xlu0 %v1285
        %v1287 = vpop.xlane.xlu0 %1286
        %v1288 = vsub.f32 %v1279, %v1284
        %v1289 = vsub.f32 %v1280, %v1287
        %v1290 = vmul.f32 %v1288, 1.442695
        %v1291 = vpow.pop %v1290
        %v1292 = vmul.f32 %v1289, 1.442695
        %v1293 = vpow.pop %v1292
        %v1294 = vsel %vm1281, %v1291, 0.0
        %1295 = vadd.xlane.f32.xlu0 %v1294
        %v1296 = vpop.xlane.xlu0 %1295
        %v1297 = vsel %vm1281, %v1293, 0.0
        %1298 = vadd.xlane.f32.xlu0 %v1297
        %v1299 = vpop.xlane.xlu0 %1298
        %v1300 = vrcp.pop %v1296
        %v1301 = vmul.f32 %v1291, %v1300
        %v1302 = vrcp.pop %v1299
        %v1303 = vmul.f32 %v1293, %v1302
        %v1304 = vpack.c.bf16 %v1301, %v1301
        %v1305 = vpack.c.bf16 %v1303, %v1303
        %v1307 = vsel %vm1281, %v1304, 0
        %vm1309 = vcmask 1043456
        %v1311 = vsel %vm1309, %v1182, 0
        %1313 = vmatprep.subr.bf16.mxu0 0
        %1314 = vmatpush1.bf16.msra.mxu0 %v1311
        %1315 = vmatprep.subr.bf16.mxu0 0
        %1316 = vmatpush1.bf16.msra.mxu0 0
        %1317 = vmatprep.subr.bf16.mxu0 0
        %1318 = vmatpush1.bf16.msra.mxu0 0
        %1319 = vmatprep.subr.bf16.mxu0 0
        %1320 = vmatpush1.bf16.msra.mxu0 0
        %1321 = vmatprep.subr.bf16.mxu0 0
        %1322 = vmatpush1.bf16.msra.mxu0 0
        %1323 = vmatprep.subr.bf16.mxu0 0
        %1324 = vmatpush1.bf16.msra.mxu0 0
        %1325 = vmatprep.subr.bf16.mxu0 0
        %1326 = vmatpush1.bf16.msra.mxu0 0
        %1327 = vmatprep.subr.bf16.mxu0 0
        %1328 = vmatpush1.bf16.msra.mxu0 0
        %1329 = vmatprep.subr.bf16.mxu0 0
        %1330 = vmatpush1.bf16.msra.mxu0 0
        %1331 = vmatprep.subr.bf16.mxu0 0
        %1332 = vmatpush1.bf16.msra.mxu0 0
        %1333 = vmatprep.subr.bf16.mxu0 0
        %1334 = vmatpush1.bf16.msra.mxu0 0
        %1335 = vmatprep.subr.bf16.mxu0 0
        %1336 = vmatpush1.bf16.msra.mxu0 0
        %1337 = vmatprep.subr.bf16.mxu0 0
        %1338 = vmatpush1.bf16.msra.mxu0 0
        %1339 = vmatprep.subr.bf16.mxu0 0
        %1340 = vmatpush1.bf16.msra.mxu0 0
        %1341 = vmatprep.subr.bf16.mxu0 0
        %1342 = vmatpush1.bf16.msra.mxu0 0
        %1343 = vmatprep.subr.bf16.mxu0 0
        %1344 = vmatpush1.bf16.msra.mxu0 0
        %1345 = vmatprep.mubr.bf16.mxu0 0
        %1346 = vmatmul.mubr.bf16.gmra.mrb[0].mxu0 %v1307
        %v1347 = vpop.f32.mrb[0].mxu0
        %v1348 = vadd.f32 0.0, %v1347
        %v1349 = vpop.f32.mrb[0].mxu0
        %v1350 = vpop.f32.mrb[0].mxu0
        %v1351 = vpop.f32.mrb[0].mxu0
        %1352 = vdwg.mxu0
        %v1354 = vsel %vm1281, %v1305, 0
        %v1357 = vsel %vm1309, %v1183, 0
        %1359 = vmatprep.subr.bf16.mxu0 0
        %1360 = vmatpush1.bf16.msra.mxu0 %v1357
        %1361 = vmatprep.subr.bf16.mxu0 0
        %1362 = vmatpush1.bf16.msra.mxu0 0
        %1363 = vmatprep.subr.bf16.mxu0 0
        %1364 = vmatpush1.bf16.msra.mxu0 0
        %1365 = vmatprep.subr.bf16.mxu0 0
        %1366 = vmatpush1.bf16.msra.mxu0 0
        %1367 = vmatprep.subr.bf16.mxu0 0
        %1368 = vmatpush1.bf16.msra.mxu0 0
        %1369 = vmatprep.subr.bf16.mxu0 0
        %1370 = vmatpush1.bf16.msra.mxu0 0
        %1371 = vmatprep.subr.bf16.mxu0 0
        %1372 = vmatpush1.bf16.msra.mxu0 0
        %1373 = vmatprep.subr.bf16.mxu0 0
        %1374 = vmatpush1.bf16.msra.mxu0 0
        %1375 = vmatprep.subr.bf16.mxu0 0
        %1376 = vmatpush1.bf16.msra.mxu0 0
        %1377 = vmatprep.subr.bf16.mxu0 0
        %1378 = vmatpush1.bf16.msra.mxu0 0
        %1379 = vmatprep.subr.bf16.mxu0 0
        %1380 = vmatpush1.bf16.msra.mxu0 0
        %1381 = vmatprep.subr.bf16.mxu0 0
        %1382 = vmatpush1.bf16.msra.mxu0 0
        %1383 = vmatprep.subr.bf16.mxu0 0
        %1384 = vmatpush1.bf16.msra.mxu0 0
        %1385 = vmatprep.subr.bf16.mxu0 0
        %1386 = vmatpush1.bf16.msra.mxu0 0
        %1387 = vmatprep.subr.bf16.mxu0 0
        %1388 = vmatpush1.bf16.msra.mxu0 0
        %1389 = vmatprep.subr.bf16.mxu0 0
        %1390 = vmatpush1.bf16.msra.mxu0 0
        %1391 = vmatprep.mubr.bf16.mxu0 0
        %1392 = vmatmul.mubr.bf16.gmra.mrb[0].mxu0 %v1354
        %v1393 = vpop.f32.mrb[0].mxu0
        %v1394 = vadd.f32 0.0, %v1393
        %v1395 = vpop.f32.mrb[0].mxu0
        %v1396 = vpop.f32.mrb[0].mxu0
        %v1397 = vpop.f32.mrb[0].mxu0
        %1398 = vdwg.mxu0
        %v1399 = vpack.c.bf16 %v1348, %v1348
        %v1400 = vpack.c.bf16 %v1394, %v1394
        %1402 = vrot.lane.b32.xlu0 %v1178, 96
        %v1403 = vpop.permute.xlu0 %1402
        %1405 = vrot.lane.b32.xlu0 %v1180, 96
        %v1406 = vpop.permute.xlu0 %1405
        %v1408 = vsel %vm1184, %v1403, 0
        %v1411 = vsel %vm1184, %v1406, 0
        %1413 = vmatprep.subr.bf16.mxu0 0
        %1414 = vmatpush1.bf16.xpose.msra.mxu0 %v1411
        %1415 = vmatprep.subr.bf16.mxu0 0
        %1416 = vmatpush1.bf16.xpose.msra.mxu0 0
        %1417 = vmatprep.subr.bf16.mxu0 0
        %1418 = vmatpush1.bf16.xpose.msra.mxu0 0
        %1419 = vmatprep.subr.bf16.mxu0 0
        %1420 = vmatpush1.bf16.xpose.msra.mxu0 0
        %1421 = vmatprep.subr.bf16.mxu0 0
        %1422 = vmatpush1.bf16.xpose.msra.mxu0 0
        %1423 = vmatprep.subr.bf16.mxu0 0
        %1424 = vmatpush1.bf16.xpose.msra.mxu0 0
        %1425 = vmatprep.subr.bf16.mxu0 0
        %1426 = vmatpush1.bf16.xpose.msra.mxu0 0
        %1427 = vmatprep.subr.bf16.mxu0 0
        %1428 = vmatpush1.bf16.xpose.msra.mxu0 0
        %1429 = vmatprep.subr.bf16.mxu0 0
        %1430 = vmatpush1.bf16.xpose.msra.mxu0 0
        %1431 = vmatprep.subr.bf16.mxu0 0
        %1432 = vmatpush1.bf16.xpose.msra.mxu0 0
        %1433 = vmatprep.subr.bf16.mxu0 0
        %1434 = vmatpush1.bf16.xpose.msra.mxu0 0
        %1435 = vmatprep.subr.bf16.mxu0 0
        %1436 = vmatpush1.bf16.xpose.msra.mxu0 0
        %1437 = vmatprep.subr.bf16.mxu0 0
        %1438 = vmatpush1.bf16.xpose.msra.mxu0 0
        %1439 = vmatprep.subr.bf16.mxu0 0
        %1440 = vmatpush1.bf16.xpose.msra.mxu0 0
        %1441 = vmatprep.subr.bf16.mxu0 0
        %1442 = vmatpush1.bf16.xpose.msra.mxu0 0
        %1443 = vmatprep.subr.bf16.mxu0 0
        %1444 = vmatpush1.bf16.xpose.msra.mxu0 0
        %1445 = vmatprep.mubr.bf16.mxu0 0
        %1446 = vmatmul.mubr.bf16.gmra.mrb[0].mxu0 %v1408
        %v1447 = vpop.f32.mrb[0].mxu0
        %v1448 = vadd.f32 0.0, %v1447
        %v1449 = vpop.f32.mrb[0].mxu0
        %v1450 = vpop.f32.mrb[0].mxu0
        %v1451 = vpop.f32.mrb[0].mxu0
        %1452 = vdwg.mxu0
        %1454 = vrot.lane.b32.xlu0 %v1179, 96
        %v1455 = vpop.permute.xlu0 %1454
        %1457 = vrot.lane.b32.xlu0 %v1181, 96
        %v1458 = vpop.permute.xlu0 %1457
        %v1460 = vsel %vm1184, %v1455, 0
        %v1463 = vsel %vm1184, %v1458, 0
        %1465 = vmatprep.subr.bf16.mxu0 0
        %1466 = vmatpush1.bf16.xpose.msra.mxu0 %v1463
        %1467 = vmatprep.subr.bf16.mxu0 0
        %1468 = vmatpush1.bf16.xpose.msra.mxu0 0
        %1469 = vmatprep.subr.bf16.mxu0 0
        %1470 = vmatpush1.bf16.xpose.msra.mxu0 0
        %1471 = vmatprep.subr.bf16.mxu0 0
        %1472 = vmatpush1.bf16.xpose.msra.mxu0 0
        %1473 = vmatprep.subr.bf16.mxu0 0
        %1474 = vmatpush1.bf16.xpose.msra.mxu0 0
        %1475 = vmatprep.subr.bf16.mxu0 0
        %1476 = vmatpush1.bf16.xpose.msra.mxu0 0
        %1477 = vmatprep.subr.bf16.mxu0 0
        %1478 = vmatpush1.bf16.xpose.msra.mxu0 0
        %1479 = vmatprep.subr.bf16.mxu0 0
        %1480 = vmatpush1.bf16.xpose.msra.mxu0 0
        %1481 = vmatprep.subr.bf16.mxu0 0
        %1482 = vmatpush1.bf16.xpose.msra.mxu0 0
        %1483 = vmatprep.subr.bf16.mxu0 0
        %1484 = vmatpush1.bf16.xpose.msra.mxu0 0
        %1485 = vmatprep.subr.bf16.mxu0 0
        %1486 = vmatpush1.bf16.xpose.msra.mxu0 0
        %1487 = vmatprep.subr.bf16.mxu0 0
        %1488 = vmatpush1.bf16.xpose.msra.mxu0 0
        %1489 = vmatprep.subr.bf16.mxu0 0
        %1490 = vmatpush1.bf16.xpose.msra.mxu0 0
        %1491 = vmatprep.subr.bf16.mxu0 0
        %1492 = vmatpush1.bf16.xpose.msra.mxu0 0
        %1493 = vmatprep.subr.bf16.mxu0 0
        %1494 = vmatpush1.bf16.xpose.msra.mxu0 0
        %1495 = vmatprep.subr.bf16.mxu0 0
        %1496 = vmatpush1.bf16.xpose.msra.mxu0 0
        %1497 = vmatprep.mubr.bf16.mxu0 0
        %1498 = vmatmul.mubr.bf16.gmra.mrb[0].mxu0 %v1460
        %v1499 = vpop.f32.mrb[0].mxu0
        %v1500 = vadd.f32 0.0, %v1499
        %v1501 = vpop.f32.mrb[0].mxu0
        %v1502 = vpop.f32.mrb[0].mxu0
        %v1503 = vpop.f32.mrb[0].mxu0
        %1504 = vdwg.mxu0
        %v1505 = vmul.f32 %v1448, 0.17677669
        %v1506 = vmul.f32 %v1500, 0.17677669
        %v1507 = vadd.f32 %v1505, %v851
        %v1508 = vadd.f32 %v1506, %v851
        %v1509 = vsel %vm1281, %v1507, -inf
        %1510 = vmax.xlane.f32.xlu0 %v1509
        %v1511 = vpop.xlane.xlu0 %1510
        %v1512 = vsel %vm1281, %v1508, -inf
        %1513 = vmax.xlane.f32.xlu0 %v1512
        %v1514 = vpop.xlane.xlu0 %1513
        %v1515 = vsub.f32 %v1507, %v1511
        %v1516 = vsub.f32 %v1508, %v1514
        %v1517 = vmul.f32 %v1515, 1.442695
        %v1518 = vpow.pop %v1517
        %v1519 = vmul.f32 %v1516, 1.442695
        %v1520 = vpow.pop %v1519
        %v1521 = vsel %vm1281, %v1518, 0.0
        %1522 = vadd.xlane.f32.xlu0 %v1521
        %v1523 = vpop.xlane.xlu0 %1522
        %v1524 = vsel %vm1281, %v1520, 0.0
        %1525 = vadd.xlane.f32.xlu0 %v1524
        %v1526 = vpop.xlane.xlu0 %1525
        %v1527 = vrcp.pop %v1523
        %v1528 = vmul.f32 %v1518, %v1527
        %v1529 = vrcp.pop %v1526
        %v1530 = vmul.f32 %v1520, %v1529
        %v1531 = vpack.c.bf16 %v1528, %v1528
        %v1532 = vpack.c.bf16 %v1530, %v1530
        %1534 = vrot.lane.b32.xlu0 %v1182, 96
        %v1535 = vpop.permute.xlu0 %1534
        %v1537 = vsel %vm1281, %v1531, 0
        %v1540 = vsel %vm1309, %v1535, 0
        %1542 = vmatprep.subr.bf16.mxu0 0
        %1543 = vmatpush1.bf16.msra.mxu0 %v1540
        %1544 = vmatprep.subr.bf16.mxu0 0
        %1545 = vmatpush1.bf16.msra.mxu0 0
        %1546 = vmatprep.subr.bf16.mxu0 0
        %1547 = vmatpush1.bf16.msra.mxu0 0
        %1548 = vmatprep.subr.bf16.mxu0 0
        %1549 = vmatpush1.bf16.msra.mxu0 0
        %1550 = vmatprep.subr.bf16.mxu0 0
        %1551 = vmatpush1.bf16.msra.mxu0 0
        %1552 = vmatprep.subr.bf16.mxu0 0
        %1553 = vmatpush1.bf16.msra.mxu0 0
        %1554 = vmatprep.subr.bf16.mxu0 0
        %1555 = vmatpush1.bf16.msra.mxu0 0
        %1556 = vmatprep.subr.bf16.mxu0 0
        %1557 = vmatpush1.bf16.msra.mxu0 0
        %1558 = vmatprep.subr.bf16.mxu0 0
        %1559 = vmatpush1.bf16.msra.mxu0 0
        %1560 = vmatprep.subr.bf16.mxu0 0
        %1561 = vmatpush1.bf16.msra.mxu0 0
        %1562 = vmatprep.subr.bf16.mxu0 0
        %1563 = vmatpush1.bf16.msra.mxu0 0
        %1564 = vmatprep.subr.bf16.mxu0 0
        %1565 = vmatpush1.bf16.msra.mxu0 0
        %1566 = vmatprep.subr.bf16.mxu0 0
        %1567 = vmatpush1.bf16.msra.mxu0 0
        %1568 = vmatprep.subr.bf16.mxu0 0
        %1569 = vmatpush1.bf16.msra.mxu0 0
        %1570 = vmatprep.subr.bf16.mxu0 0
        %1571 = vmatpush1.bf16.msra.mxu0 0
        %1572 = vmatprep.subr.bf16.mxu0 0
        %1573 = vmatpush1.bf16.msra.mxu0 0
        %1574 = vmatprep.mubr.bf16.mxu0 0
        %1575 = vmatmul.mubr.bf16.gmra.mrb[0].mxu0 %v1537
        %v1576 = vpop.f32.mrb[0].mxu0
        %v1577 = vadd.f32 0.0, %v1576
        %v1578 = vpop.f32.mrb[0].mxu0
        %v1579 = vpop.f32.mrb[0].mxu0
        %v1580 = vpop.f32.mrb[0].mxu0
        %1581 = vdwg.mxu0
        %1583 = vrot.lane.b32.xlu0 %v1183, 96
        %v1584 = vpop.permute.xlu0 %1583
        %v1586 = vsel %vm1281, %v1532, 0
        %v1589 = vsel %vm1309, %v1584, 0
        %1591 = vmatprep.subr.bf16.mxu0 0
        %1592 = vmatpush1.bf16.msra.mxu0 %v1589
        %1593 = vmatprep.subr.bf16.mxu0 0
        %1594 = vmatpush1.bf16.msra.mxu0 0
        %1595 = vmatprep.subr.bf16.mxu0 0
        %1596 = vmatpush1.bf16.msra.mxu0 0
        %1597 = vmatprep.subr.bf16.mxu0 0
        %1598 = vmatpush1.bf16.msra.mxu0 0
        %1599 = vmatprep.subr.bf16.mxu0 0
        %1600 = vmatpush1.bf16.msra.mxu0 0
        %1601 = vmatprep.subr.bf16.mxu0 0
        %1602 = vmatpush1.bf16.msra.mxu0 0
        %1603 = vmatprep.subr.bf16.mxu0 0
        %1604 = vmatpush1.bf16.msra.mxu0 0
        %1605 = vmatprep.subr.bf16.mxu0 0
        %1606 = vmatpush1.bf16.msra.mxu0 0
        %1607 = vmatprep.subr.bf16.mxu0 0
        %1608 = vmatpush1.bf16.msra.mxu0 0
        %1609 = vmatprep.subr.bf16.mxu0 0
        %1610 = vmatpush1.bf16.msra.mxu0 0
        %1611 = vmatprep.subr.bf16.mxu0 0
        %1612 = vmatpush1.bf16.msra.mxu0 0
        %1613 = vmatprep.subr.bf16.mxu0 0
        %1614 = vmatpush1.bf16.msra.mxu0 0
        %1615 = vmatprep.subr.bf16.mxu0 0
        %1616 = vmatpush1.bf16.msra.mxu0 0
        %1617 = vmatprep.subr.bf16.mxu0 0
        %1618 = vmatpush1.bf16.msra.mxu0 0
        %1619 = vmatprep.subr.bf16.mxu0 0
        %1620 = vmatpush1.bf16.msra.mxu0 0
        %1621 = vmatprep.subr.bf16.mxu0 0
        %1622 = vmatpush1.bf16.msra.mxu0 0
        %1623 = vmatprep.mubr.bf16.mxu0 0
        %1624 = vmatmul.mubr.bf16.gmra.mrb[0].mxu0 %v1586
        %v1625 = vpop.f32.mrb[0].mxu0
        %v1626 = vadd.f32 0.0, %v1625
        %v1627 = vpop.f32.mrb[0].mxu0
        %v1628 = vpop.f32.mrb[0].mxu0
        %v1629 = vpop.f32.mrb[0].mxu0
        %1630 = vdwg.mxu0
        %v1631 = vpack.c.bf16 %v1577, %v1577
        %v1632 = vpack.c.bf16 %v1626, %v1626
        %v1635 = vunpack.c.l.b16 %v1631
        %v1636 = vunpack.c.l.b16 %v1632
        %v1637 = vpack.c.b16 %v1636, %v1635
        %v1642 = vunpack.c.l.b16 %v1166
        %v1643 = vunpack.c.l.b16 %v1167
        %v1644 = vunpack.c.l.b16 %v1168
        %v1645 = vunpack.c.l.b16 %v1169
        %v1646 = vpack.c.b16 %v1643, %v1642
        %v1647 = vpack.c.b16 %v1645, %v1644
        %v1651 = vsel %vm1184, %v1637, 0
        %1653 = vmatprep.subr.bf16.mxu0 0
        %1654 = vmatpush1.bf16.msra.mxu0 %v1646
        %1655 = vmatprep.subr.bf16.mxu0 0
        %1656 = vmatpush1.bf16.msra.mxu0 %v1647
        %1657 = vmatprep.subr.bf16.mxu0 0
        %1658 = vmatpush1.bf16.msra.mxu0 0
        %1659 = vmatprep.subr.bf16.mxu0 0
        %1660 = vmatpush1.bf16.msra.mxu0 0
        %1661 = vmatprep.subr.bf16.mxu0 0
        %1662 = vmatpush1.bf16.msra.mxu0 0
        %1663 = vmatprep.subr.bf16.mxu0 0
        %1664 = vmatpush1.bf16.msra.mxu0 0
        %1665 = vmatprep.subr.bf16.mxu0 0
        %1666 = vmatpush1.bf16.msra.mxu0 0
        %1667 = vmatprep.subr.bf16.mxu0 0
        %1668 = vmatpush1.bf16.msra.mxu0 0
        %1669 = vmatprep.subr.bf16.mxu0 0
        %1670 = vmatpush1.bf16.msra.mxu0 0
        %1671 = vmatprep.subr.bf16.mxu0 0
        %1672 = vmatpush1.bf16.msra.mxu0 0
        %1673 = vmatprep.subr.bf16.mxu0 0
        %1674 = vmatpush1.bf16.msra.mxu0 0
        %1675 = vmatprep.subr.bf16.mxu0 0
        %1676 = vmatpush1.bf16.msra.mxu0 0
        %1677 = vmatprep.subr.bf16.mxu0 0
        %1678 = vmatpush1.bf16.msra.mxu0 0
        %1679 = vmatprep.subr.bf16.mxu0 0
        %1680 = vmatpush1.bf16.msra.mxu0 0
        %1681 = vmatprep.subr.bf16.mxu0 0
        %1682 = vmatpush1.bf16.msra.mxu0 0
        %1683 = vmatprep.subr.bf16.mxu0 0
        %1684 = vmatpush1.bf16.msra.mxu0 0
        %1685 = vmatprep.mubr.bf16.mxu0 0
        %1686 = vmatmul.mubr.bf16.gmra.mrb[0].mxu0 %v1651
        %v1687 = vpop.f32.mrb[0].mxu0
        %v1688 = vadd.f32 0.0, %v1687
        %v1689 = vpop.f32.mrb[0].mxu0
        %v1690 = vpop.f32.mrb[0].mxu0
        %v1691 = vadd.f32 0.0, %v1690
        %v1692 = vpop.f32.mrb[0].mxu0
        %1693 = vdwg.mxu0
        %v1696 = vunpack.c.l.b16 %v1399
        %v1697 = vunpack.c.l.b16 %v1400
        %v1698 = vpack.c.b16 %v1697, %v1696
        %v1703 = vunpack.c.l.b16 %v1162
        %v1704 = vunpack.c.l.b16 %v1163
        %v1705 = vunpack.c.l.b16 %v1164
        %v1706 = vunpack.c.l.b16 %v1165
        %v1707 = vpack.c.b16 %v1704, %v1703
        %v1708 = vpack.c.b16 %v1706, %v1705
        %v1712 = vsel %vm1184, %v1698, 0
        %1714 = vmatprep.subr.bf16.mxu0 0
        %1715 = vmatpush1.bf16.msra.mxu0 %v1707
        %1716 = vmatprep.subr.bf16.mxu0 0
        %1717 = vmatpush1.bf16.msra.mxu0 %v1708
        %1718 = vmatprep.subr.bf16.mxu0 0
        %1719 = vmatpush1.bf16.msra.mxu0 0
        %1720 = vmatprep.subr.bf16.mxu0 0
        %1721 = vmatpush1.bf16.msra.mxu0 0
        %1722 = vmatprep.subr.bf16.mxu0 0
        %1723 = vmatpush1.bf16.msra.mxu0 0
        %1724 = vmatprep.subr.bf16.mxu0 0
        %1725 = vmatpush1.bf16.msra.mxu0 0
        %1726 = vmatprep.subr.bf16.mxu0 0
        %1727 = vmatpush1.bf16.msra.mxu0 0
        %1728 = vmatprep.subr.bf16.mxu0 0
        %1729 = vmatpush1.bf16.msra.mxu0 0
        %1730 = vmatprep.subr.bf16.mxu0 0
        %1731 = vmatpush1.bf16.msra.mxu0 0
        %1732 = vmatprep.subr.bf16.mxu0 0
        %1733 = vmatpush1.bf16.msra.mxu0 0
        %1734 = vmatprep.subr.bf16.mxu0 0
        %1735 = vmatpush1.bf16.msra.mxu0 0
        %1736 = vmatprep.subr.bf16.mxu0 0
        %1737 = vmatpush1.bf16.msra.mxu0 0
        %1738 = vmatprep.subr.bf16.mxu0 0
        %1739 = vmatpush1.bf16.msra.mxu0 0
        %1740 = vmatprep.subr.bf16.mxu0 0
        %1741 = vmatpush1.bf16.msra.mxu0 0
        %1742 = vmatprep.subr.bf16.mxu0 0
        %1743 = vmatpush1.bf16.msra.mxu0 0
        %1744 = vmatprep.subr.bf16.mxu0 0
        %1745 = vmatpush1.bf16.msra.mxu0 0
        %1746 = vmatprep.mubr.bf16.mxu0 0
        %1747 = vmatmul.mubr.bf16.gmra.mrb[0].mxu0 %v1712
        %v1748 = vpop.f32.mrb[0].mxu0
        %v1749 = vadd.f32 %v1688, %v1748
        %v1750 = vpop.f32.mrb[0].mxu0
        %v1751 = vpop.f32.mrb[0].mxu0
        %v1752 = vadd.f32 %v1691, %v1751
        %v1753 = vpop.f32.mrb[0].mxu0
        %1754 = vdwg.mxu0
        %1755 = vrot.lane.b32.xlu0 %v1178, 64
        %v1756 = vpop.permute.xlu0 %1755
        %1757 = vrot.lane.b32.xlu0 %v1180, 64
        %v1758 = vpop.permute.xlu0 %1757
        %v1760 = vsel %vm1184, %v1756, 0
        %v1763 = vsel %vm1184, %v1758, 0
        %1765 = vmatprep.subr.bf16.mxu0 0
        %1766 = vmatpush1.bf16.xpose.msra.mxu0 %v1763
        %1767 = vmatprep.subr.bf16.mxu0 0
        %1768 = vmatpush1.bf16.xpose.msra.mxu0 0
        %1769 = vmatprep.subr.bf16.mxu0 0
        %1770 = vmatpush1.bf16.xpose.msra.mxu0 0
        %1771 = vmatprep.subr.bf16.mxu0 0
        %1772 = vmatpush1.bf16.xpose.msra.mxu0 0
        %1773 = vmatprep.subr.bf16.mxu0 0
        %1774 = vmatpush1.bf16.xpose.msra.mxu0 0
        %1775 = vmatprep.subr.bf16.mxu0 0
        %1776 = vmatpush1.bf16.xpose.msra.mxu0 0
        %1777 = vmatprep.subr.bf16.mxu0 0
        %1778 = vmatpush1.bf16.xpose.msra.mxu0 0
        %1779 = vmatprep.subr.bf16.mxu0 0
        %1780 = vmatpush1.bf16.xpose.msra.mxu0 0
        %1781 = vmatprep.subr.bf16.mxu0 0
        %1782 = vmatpush1.bf16.xpose.msra.mxu0 0
        %1783 = vmatprep.subr.bf16.mxu0 0
        %1784 = vmatpush1.bf16.xpose.msra.mxu0 0
        %1785 = vmatprep.subr.bf16.mxu0 0
        %1786 = vmatpush1.bf16.xpose.msra.mxu0 0
        %1787 = vmatprep.subr.bf16.mxu0 0
        %1788 = vmatpush1.bf16.xpose.msra.mxu0 0
        %1789 = vmatprep.subr.bf16.mxu0 0
        %1790 = vmatpush1.bf16.xpose.msra.mxu0 0
        %1791 = vmatprep.subr.bf16.mxu0 0
        %1792 = vmatpush1.bf16.xpose.msra.mxu0 0
        %1793 = vmatprep.subr.bf16.mxu0 0
        %1794 = vmatpush1.bf16.xpose.msra.mxu0 0
        %1795 = vmatprep.subr.bf16.mxu0 0
        %1796 = vmatpush1.bf16.xpose.msra.mxu0 0
        %1797 = vmatprep.mubr.bf16.mxu0 0
        %1798 = vmatmul.mubr.bf16.gmra.mrb[0].mxu0 %v1760
        %v1799 = vpop.f32.mrb[0].mxu0
        %v1800 = vadd.f32 0.0, %v1799
        %v1801 = vpop.f32.mrb[0].mxu0
        %v1802 = vpop.f32.mrb[0].mxu0
        %v1803 = vpop.f32.mrb[0].mxu0
        %1804 = vdwg.mxu0
        %1805 = vrot.lane.b32.xlu0 %v1179, 64
        %v1806 = vpop.permute.xlu0 %1805
        %1807 = vrot.lane.b32.xlu0 %v1181, 64
        %v1808 = vpop.permute.xlu0 %1807
        %v1810 = vsel %vm1184, %v1806, 0
        %v1813 = vsel %vm1184, %v1808, 0
        %1815 = vmatprep.subr.bf16.mxu0 0
        %1816 = vmatpush1.bf16.xpose.msra.mxu0 %v1813
        %1817 = vmatprep.subr.bf16.mxu0 0
        %1818 = vmatpush1.bf16.xpose.msra.mxu0 0
        %1819 = vmatprep.subr.bf16.mxu0 0
        %1820 = vmatpush1.bf16.xpose.msra.mxu0 0
        %1821 = vmatprep.subr.bf16.mxu0 0
        %1822 = vmatpush1.bf16.xpose.msra.mxu0 0
        %1823 = vmatprep.subr.bf16.mxu0 0
        %1824 = vmatpush1.bf16.xpose.msra.mxu0 0
        %1825 = vmatprep.subr.bf16.mxu0 0
        %1826 = vmatpush1.bf16.xpose.msra.mxu0 0
        %1827 = vmatprep.subr.bf16.mxu0 0
        %1828 = vmatpush1.bf16.xpose.msra.mxu0 0
        %1829 = vmatprep.subr.bf16.mxu0 0
        %1830 = vmatpush1.bf16.xpose.msra.mxu0 0
        %1831 = vmatprep.subr.bf16.mxu0 0
        %1832 = vmatpush1.bf16.xpose.msra.mxu0 0
        %1833 = vmatprep.subr.bf16.mxu0 0
        %1834 = vmatpush1.bf16.xpose.msra.mxu0 0
        %1835 = vmatprep.subr.bf16.mxu0 0
        %1836 = vmatpush1.bf16.xpose.msra.mxu0 0
        %1837 = vmatprep.subr.bf16.mxu0 0
        %1838 = vmatpush1.bf16.xpose.msra.mxu0 0
        %1839 = vmatprep.subr.bf16.mxu0 0
        %1840 = vmatpush1.bf16.xpose.msra.mxu0 0
        %1841 = vmatprep.subr.bf16.mxu0 0
        %1842 = vmatpush1.bf16.xpose.msra.mxu0 0
        %1843 = vmatprep.subr.bf16.mxu0 0
        %1844 = vmatpush1.bf16.xpose.msra.mxu0 0
        %1845 = vmatprep.subr.bf16.mxu0 0
        %1846 = vmatpush1.bf16.xpose.msra.mxu0 0
        %1847 = vmatprep.mubr.bf16.mxu0 0
        %1848 = vmatmul.mubr.bf16.gmra.mrb[0].mxu0 %v1810
        %v1849 = vpop.f32.mrb[0].mxu0
        %v1850 = vadd.f32 0.0, %v1849
        %v1851 = vpop.f32.mrb[0].mxu0
        %v1852 = vpop.f32.mrb[0].mxu0
        %v1853 = vpop.f32.mrb[0].mxu0
        %1854 = vdwg.mxu0
        %v1855 = vmul.f32 %v1800, 0.17677669
        %v1856 = vmul.f32 %v1850, 0.17677669
        %v1857 = vadd.f32 %v1855, %v851
        %v1858 = vadd.f32 %v1856, %v851
        %v1859 = vsel %vm1281, %v1857, -inf
        %1860 = vmax.xlane.f32.xlu0 %v1859
        %v1861 = vpop.xlane.xlu0 %1860
        %v1862 = vsel %vm1281, %v1858, -inf
        %1863 = vmax.xlane.f32.xlu0 %v1862
        %v1864 = vpop.xlane.xlu0 %1863
        %v1865 = vsub.f32 %v1857, %v1861
        %v1866 = vsub.f32 %v1858, %v1864
        %v1867 = vmul.f32 %v1865, 1.442695
        %v1868 = vpow.pop %v1867
        %v1869 = vmul.f32 %v1866, 1.442695
        %v1870 = vpow.pop %v1869
        %v1871 = vsel %vm1281, %v1868, 0.0
        %1872 = vadd.xlane.f32.xlu0 %v1871
        %v1873 = vpop.xlane.xlu0 %1872
        %v1874 = vsel %vm1281, %v1870, 0.0
        %1875 = vadd.xlane.f32.xlu0 %v1874
        %v1876 = vpop.xlane.xlu0 %1875
        %v1877 = vrcp.pop %v1873
        %v1878 = vmul.f32 %v1868, %v1877
        %v1879 = vrcp.pop %v1876
        %v1880 = vmul.f32 %v1870, %v1879
        %v1881 = vpack.c.bf16 %v1878, %v1878
        %v1882 = vpack.c.bf16 %v1880, %v1880
        %1883 = vrot.lane.b32.xlu0 %v1182, 64
        %v1884 = vpop.permute.xlu0 %1883
        %v1886 = vsel %vm1281, %v1881, 0
        %v1889 = vsel %vm1309, %v1884, 0
        %1891 = vmatprep.subr.bf16.mxu0 0
        %1892 = vmatpush1.bf16.msra.mxu0 %v1889
        %1893 = vmatprep.subr.bf16.mxu0 0
        %1894 = vmatpush1.bf16.msra.mxu0 0
        %1895 = vmatprep.subr.bf16.mxu0 0
        %1896 = vmatpush1.bf16.msra.mxu0 0
        %1897 = vmatprep.subr.bf16.mxu0 0
        %1898 = vmatpush1.bf16.msra.mxu0 0
        %1899 = vmatprep.subr.bf16.mxu0 0
        %1900 = vmatpush1.bf16.msra.mxu0 0
        %1901 = vmatprep.subr.bf16.mxu0 0
        %1902 = vmatpush1.bf16.msra.mxu0 0
        %1903 = vmatprep.subr.bf16.mxu0 0
        %1904 = vmatpush1.bf16.msra.mxu0 0
        %1905 = vmatprep.subr.bf16.mxu0 0
        %1906 = vmatpush1.bf16.msra.mxu0 0
        %1907 = vmatprep.subr.bf16.mxu0 0
        %1908 = vmatpush1.bf16.msra.mxu0 0
        %1909 = vmatprep.subr.bf16.mxu0 0
        %1910 = vmatpush1.bf16.msra.mxu0 0
        %1911 = vmatprep.subr.bf16.mxu0 0
        %1912 = vmatpush1.bf16.msra.mxu0 0
        %1913 = vmatprep.subr.bf16.mxu0 0
        %1914 = vmatpush1.bf16.msra.mxu0 0
        %1915 = vmatprep.subr.bf16.mxu0 0
        %1916 = vmatpush1.bf16.msra.mxu0 0
        %1917 = vmatprep.subr.bf16.mxu0 0
        %1918 = vmatpush1.bf16.msra.mxu0 0
        %1919 = vmatprep.subr.bf16.mxu0 0
        %1920 = vmatpush1.bf16.msra.mxu0 0
        %1921 = vmatprep.subr.bf16.mxu0 0
        %1922 = vmatpush1.bf16.msra.mxu0 0
        %1923 = vmatprep.mubr.bf16.mxu0 0
        %1924 = vmatmul.mubr.bf16.gmra.mrb[0].mxu0 %v1886
        %v1925 = vpop.f32.mrb[0].mxu0
        %v1926 = vadd.f32 0.0, %v1925
        %v1927 = vpop.f32.mrb[0].mxu0
        %v1928 = vpop.f32.mrb[0].mxu0
        %v1929 = vpop.f32.mrb[0].mxu0
        %1930 = vdwg.mxu0
        %1931 = vrot.lane.b32.xlu0 %v1183, 64
        %v1932 = vpop.permute.xlu0 %1931
        %v1934 = vsel %vm1281, %v1882, 0
        %v1937 = vsel %vm1309, %v1932, 0
        %1939 = vmatprep.subr.bf16.mxu0 0
        %1940 = vmatpush1.bf16.msra.mxu0 %v1937
        %1941 = vmatprep.subr.bf16.mxu0 0
        %1942 = vmatpush1.bf16.msra.mxu0 0
        %1943 = vmatprep.subr.bf16.mxu0 0
        %1944 = vmatpush1.bf16.msra.mxu0 0
        %1945 = vmatprep.subr.bf16.mxu0 0
        %1946 = vmatpush1.bf16.msra.mxu0 0
        %1947 = vmatprep.subr.bf16.mxu0 0
        %1948 = vmatpush1.bf16.msra.mxu0 0
        %1949 = vmatprep.subr.bf16.mxu0 0
        %1950 = vmatpush1.bf16.msra.mxu0 0
        %1951 = vmatprep.subr.bf16.mxu0 0
        %1952 = vmatpush1.bf16.msra.mxu0 0
        %1953 = vmatprep.subr.bf16.mxu0 0
        %1954 = vmatpush1.bf16.msra.mxu0 0
        %1955 = vmatprep.subr.bf16.mxu0 0
        %1956 = vmatpush1.bf16.msra.mxu0 0
        %1957 = vmatprep.subr.bf16.mxu0 0
        %1958 = vmatpush1.bf16.msra.mxu0 0
        %1959 = vmatprep.subr.bf16.mxu0 0
        %1960 = vmatpush1.bf16.msra.mxu0 0
        %1961 = vmatprep.subr.bf16.mxu0 0
        %1962 = vmatpush1.bf16.msra.mxu0 0
        %1963 = vmatprep.subr.bf16.mxu0 0
        %1964 = vmatpush1.bf16.msra.mxu0 0
        %1965 = vmatprep.subr.bf16.mxu0 0
        %1966 = vmatpush1.bf16.msra.mxu0 0
        %1967 = vmatprep.subr.bf16.mxu0 0
        %1968 = vmatpush1.bf16.msra.mxu0 0
        %1969 = vmatprep.subr.bf16.mxu0 0
        %1970 = vmatpush1.bf16.msra.mxu0 0
        %1971 = vmatprep.mubr.bf16.mxu0 0
        %1972 = vmatmul.mubr.bf16.gmra.mrb[0].mxu0 %v1934
        %v1973 = vpop.f32.mrb[0].mxu0
        %v1974 = vadd.f32 0.0, %v1973
        %v1975 = vpop.f32.mrb[0].mxu0
        %v1976 = vpop.f32.mrb[0].mxu0
        %v1977 = vpop.f32.mrb[0].mxu0
        %1978 = vdwg.mxu0
        %v1979 = vpack.c.bf16 %v1926, %v1926
        %v1980 = vpack.c.bf16 %v1974, %v1974
        %v1983 = vunpack.c.l.b16 %v1979
        %v1984 = vunpack.c.l.b16 %v1980
        %v1985 = vpack.c.b16 %v1984, %v1983
        %v1990 = vunpack.c.l.b16 %v1170
        %v1991 = vunpack.c.l.b16 %v1171
        %v1992 = vunpack.c.l.b16 %v1172
        %v1993 = vunpack.c.l.b16 %v1173
        %v1994 = vpack.c.b16 %v1991, %v1990
        %v1995 = vpack.c.b16 %v1993, %v1992
        %v1999 = vsel %vm1184, %v1985, 0
        %2001 = vmatprep.subr.bf16.mxu0 0
        %2002 = vmatpush1.bf16.msra.mxu0 %v1994
        %2003 = vmatprep.subr.bf16.mxu0 0
        %2004 = vmatpush1.bf16.msra.mxu0 %v1995
        %2005 = vmatprep.subr.bf16.mxu0 0
        %2006 = vmatpush1.bf16.msra.mxu0 0
        %2007 = vmatprep.subr.bf16.mxu0 0
        %2008 = vmatpush1.bf16.msra.mxu0 0
        %2009 = vmatprep.subr.bf16.mxu0 0
        %2010 = vmatpush1.bf16.msra.mxu0 0
        %2011 = vmatprep.subr.bf16.mxu0 0
        %2012 = vmatpush1.bf16.msra.mxu0 0
        %2013 = vmatprep.subr.bf16.mxu0 0
        %2014 = vmatpush1.bf16.msra.mxu0 0
        %2015 = vmatprep.subr.bf16.mxu0 0
        %2016 = vmatpush1.bf16.msra.mxu0 0
        %2017 = vmatprep.subr.bf16.mxu0 0
        %2018 = vmatpush1.bf16.msra.mxu0 0
        %2019 = vmatprep.subr.bf16.mxu0 0
        %2020 = vmatpush1.bf16.msra.mxu0 0
        %2021 = vmatprep.subr.bf16.mxu0 0
        %2022 = vmatpush1.bf16.msra.mxu0 0
        %2023 = vmatprep.subr.bf16.mxu0 0
        %2024 = vmatpush1.bf16.msra.mxu0 0
        %2025 = vmatprep.subr.bf16.mxu0 0
        %2026 = vmatpush1.bf16.msra.mxu0 0
        %2027 = vmatprep.subr.bf16.mxu0 0
        %2028 = vmatpush1.bf16.msra.mxu0 0
        %2029 = vmatprep.subr.bf16.mxu0 0
        %2030 = vmatpush1.bf16.msra.mxu0 0
        %2031 = vmatprep.subr.bf16.mxu0 0
        %2032 = vmatpush1.bf16.msra.mxu0 0
        %2033 = vmatprep.mubr.bf16.mxu0 0
        %2034 = vmatmul.mubr.bf16.gmra.mrb[0].mxu0 %v1999
        %v2035 = vpop.f32.mrb[0].mxu0
        %v2036 = vadd.f32 0.0, %v2035
        %v2037 = vpop.f32.mrb[0].mxu0
        %v2038 = vpop.f32.mrb[0].mxu0
        %v2039 = vadd.f32 0.0, %v2038
        %v2040 = vpop.f32.mrb[0].mxu0
        %2041 = vdwg.mxu0
        %v2042 = vadd.f32 %v1749, %v2036
        %v2043 = vadd.f32 %v1752, %v2039
        %2044 = vrot.lane.b32.xlu0 %v1178, 32
        %v2045 = vpop.permute.xlu0 %2044
        %2046 = vrot.lane.b32.xlu0 %v1180, 32
        %v2047 = vpop.permute.xlu0 %2046
        %v2049 = vsel %vm1184, %v2045, 0
        %v2052 = vsel %vm1184, %v2047, 0
        %2054 = vmatprep.subr.bf16.mxu0 0
        %2055 = vmatpush1.bf16.xpose.msra.mxu0 %v2052
        %2056 = vmatprep.subr.bf16.mxu0 0
        %2057 = vmatpush1.bf16.xpose.msra.mxu0 0
        %2058 = vmatprep.subr.bf16.mxu0 0
        %2059 = vmatpush1.bf16.xpose.msra.mxu0 0
        %2060 = vmatprep.subr.bf16.mxu0 0
        %2061 = vmatpush1.bf16.xpose.msra.mxu0 0
        %2062 = vmatprep.subr.bf16.mxu0 0
        %2063 = vmatpush1.bf16.xpose.msra.mxu0 0
        %2064 = vmatprep.subr.bf16.mxu0 0
        %2065 = vmatpush1.bf16.xpose.msra.mxu0 0
        %2066 = vmatprep.subr.bf16.mxu0 0
        %2067 = vmatpush1.bf16.xpose.msra.mxu0 0
        %2068 = vmatprep.subr.bf16.mxu0 0
        %2069 = vmatpush1.bf16.xpose.msra.mxu0 0
        %2070 = vmatprep.subr.bf16.mxu0 0
        %2071 = vmatpush1.bf16.xpose.msra.mxu0 0
        %2072 = vmatprep.subr.bf16.mxu0 0
        %2073 = vmatpush1.bf16.xpose.msra.mxu0 0
        %2074 = vmatprep.subr.bf16.mxu0 0
        %2075 = vmatpush1.bf16.xpose.msra.mxu0 0
        %2076 = vmatprep.subr.bf16.mxu0 0
        %2077 = vmatpush1.bf16.xpose.msra.mxu0 0
        %2078 = vmatprep.subr.bf16.mxu0 0
        %2079 = vmatpush1.bf16.xpose.msra.mxu0 0
        %2080 = vmatprep.subr.bf16.mxu0 0
        %2081 = vmatpush1.bf16.xpose.msra.mxu0 0
        %2082 = vmatprep.subr.bf16.mxu0 0
        %2083 = vmatpush1.bf16.xpose.msra.mxu0 0
        %2084 = vmatprep.subr.bf16.mxu0 0
        %2085 = vmatpush1.bf16.xpose.msra.mxu0 0
        %2086 = vmatprep.mubr.bf16.mxu0 0
        %2087 = vmatmul.mubr.bf16.gmra.mrb[0].mxu0 %v2049
        %v2088 = vpop.f32.mrb[0].mxu0
        %v2089 = vadd.f32 0.0, %v2088
        %v2090 = vpop.f32.mrb[0].mxu0
        %v2091 = vpop.f32.mrb[0].mxu0
        %v2092 = vpop.f32.mrb[0].mxu0
        %2093 = vdwg.mxu0
        %2094 = vrot.lane.b32.xlu0 %v1179, 32
        %v2095 = vpop.permute.xlu0 %2094
        %2096 = vrot.lane.b32.xlu0 %v1181, 32
        %v2097 = vpop.permute.xlu0 %2096
        %v2099 = vsel %vm1184, %v2095, 0
        %v2102 = vsel %vm1184, %v2097, 0
        %2104 = vmatprep.subr.bf16.mxu0 0
        %2105 = vmatpush1.bf16.xpose.msra.mxu0 %v2102
        %2106 = vmatprep.subr.bf16.mxu0 0
        %2107 = vmatpush1.bf16.xpose.msra.mxu0 0
        %2108 = vmatprep.subr.bf16.mxu0 0
        %2109 = vmatpush1.bf16.xpose.msra.mxu0 0
        %2110 = vmatprep.subr.bf16.mxu0 0
        %2111 = vmatpush1.bf16.xpose.msra.mxu0 0
        %2112 = vmatprep.subr.bf16.mxu0 0
        %2113 = vmatpush1.bf16.xpose.msra.mxu0 0
        %2114 = vmatprep.subr.bf16.mxu0 0
        %2115 = vmatpush1.bf16.xpose.msra.mxu0 0
        %2116 = vmatprep.subr.bf16.mxu0 0
        %2117 = vmatpush1.bf16.xpose.msra.mxu0 0
        %2118 = vmatprep.subr.bf16.mxu0 0
        %2119 = vmatpush1.bf16.xpose.msra.mxu0 0
        %2120 = vmatprep.subr.bf16.mxu0 0
        %2121 = vmatpush1.bf16.xpose.msra.mxu0 0
        %2122 = vmatprep.subr.bf16.mxu0 0
        %2123 = vmatpush1.bf16.xpose.msra.mxu0 0
        %2124 = vmatprep.subr.bf16.mxu0 0
        %2125 = vmatpush1.bf16.xpose.msra.mxu0 0
        %2126 = vmatprep.subr.bf16.mxu0 0
        %2127 = vmatpush1.bf16.xpose.msra.mxu0 0
        %2128 = vmatprep.subr.bf16.mxu0 0
        %2129 = vmatpush1.bf16.xpose.msra.mxu0 0
        %2130 = vmatprep.subr.bf16.mxu0 0
        %2131 = vmatpush1.bf16.xpose.msra.mxu0 0
        %2132 = vmatprep.subr.bf16.mxu0 0
        %2133 = vmatpush1.bf16.xpose.msra.mxu0 0
        %2134 = vmatprep.subr.bf16.mxu0 0
        %2135 = vmatpush1.bf16.xpose.msra.mxu0 0
        %2136 = vmatprep.mubr.bf16.mxu0 0
        %2137 = vmatmul.mubr.bf16.gmra.mrb[0].mxu0 %v2099
        %v2138 = vpop.f32.mrb[0].mxu0
        %v2139 = vadd.f32 0.0, %v2138
        %v2140 = vpop.f32.mrb[0].mxu0
        %v2141 = vpop.f32.mrb[0].mxu0
        %v2142 = vpop.f32.mrb[0].mxu0
        %2143 = vdwg.mxu0
        %v2144 = vmul.f32 %v2089, 0.17677669
        %v2145 = vmul.f32 %v2139, 0.17677669
        %v2146 = vadd.f32 %v2144, %v851
        %v2147 = vadd.f32 %v2145, %v851
        %v2148 = vsel %vm1281, %v2146, -inf
        %2149 = vmax.xlane.f32.xlu0 %v2148
        %v2150 = vpop.xlane.xlu0 %2149
        %v2151 = vsel %vm1281, %v2147, -inf
        %2152 = vmax.xlane.f32.xlu0 %v2151
        %v2153 = vpop.xlane.xlu0 %2152
        %v2154 = vsub.f32 %v2146, %v2150
        %v2155 = vsub.f32 %v2147, %v2153
        %v2156 = vmul.f32 %v2154, 1.442695
        %v2157 = vpow.pop %v2156
        %v2158 = vmul.f32 %v2155, 1.442695
        %v2159 = vpow.pop %v2158
        %v2160 = vsel %vm1281, %v2157, 0.0
        %2161 = vadd.xlane.f32.xlu0 %v2160
        %v2162 = vpop.xlane.xlu0 %2161
        %v2163 = vsel %vm1281, %v2159, 0.0
        %2164 = vadd.xlane.f32.xlu0 %v2163
        %v2165 = vpop.xlane.xlu0 %2164
        %v2166 = vrcp.pop %v2162
        %v2167 = vmul.f32 %v2157, %v2166
        %v2168 = vrcp.pop %v2165
        %v2169 = vmul.f32 %v2159, %v2168
        %v2170 = vpack.c.bf16 %v2167, %v2167
        %v2171 = vpack.c.bf16 %v2169, %v2169
        %2172 = vrot.lane.b32.xlu0 %v1182, 32
        %v2173 = vpop.permute.xlu0 %2172
        %v2175 = vsel %vm1281, %v2170, 0
        %v2178 = vsel %vm1309, %v2173, 0
        %2180 = vmatprep.subr.bf16.mxu0 0
        %2181 = vmatpush1.bf16.msra.mxu0 %v2178
        %2182 = vmatprep.subr.bf16.mxu0 0
        %2183 = vmatpush1.bf16.msra.mxu0 0
        %2184 = vmatprep.subr.bf16.mxu0 0
        %2185 = vmatpush1.bf16.msra.mxu0 0
        %2186 = vmatprep.subr.bf16.mxu0 0
        %2187 = vmatpush1.bf16.msra.mxu0 0
        %2188 = vmatprep.subr.bf16.mxu0 0
        %2189 = vmatpush1.bf16.msra.mxu0 0
        %2190 = vmatprep.subr.bf16.mxu0 0
        %2191 = vmatpush1.bf16.msra.mxu0 0
        %2192 = vmatprep.subr.bf16.mxu0 0
        %2193 = vmatpush1.bf16.msra.mxu0 0
        %2194 = vmatprep.subr.bf16.mxu0 0
        %2195 = vmatpush1.bf16.msra.mxu0 0
        %2196 = vmatprep.subr.bf16.mxu0 0
        %2197 = vmatpush1.bf16.msra.mxu0 0
        %2198 = vmatprep.subr.bf16.mxu0 0
        %2199 = vmatpush1.bf16.msra.mxu0 0
        %2200 = vmatprep.subr.bf16.mxu0 0
        %2201 = vmatpush1.bf16.msra.mxu0 0
        %2202 = vmatprep.subr.bf16.mxu0 0
        %2203 = vmatpush1.bf16.msra.mxu0 0
        %2204 = vmatprep.subr.bf16.mxu0 0
        %2205 = vmatpush1.bf16.msra.mxu0 0
        %2206 = vmatprep.subr.bf16.mxu0 0
        %2207 = vmatpush1.bf16.msra.mxu0 0
        %2208 = vmatprep.subr.bf16.mxu0 0
        %2209 = vmatpush1.bf16.msra.mxu0 0
        %2210 = vmatprep.subr.bf16.mxu0 0
        %2211 = vmatpush1.bf16.msra.mxu0 0
        %2212 = vmatprep.mubr.bf16.mxu0 0
        %2213 = vmatmul.mubr.bf16.gmra.mrb[0].mxu0 %v2175
        %v2214 = vpop.f32.mrb[0].mxu0
        %v2215 = vadd.f32 0.0, %v2214
        %v2216 = vpop.f32.mrb[0].mxu0
        %v2217 = vpop.f32.mrb[0].mxu0
        %v2218 = vpop.f32.mrb[0].mxu0
        %2219 = vdwg.mxu0
        %2220 = vrot.lane.b32.xlu0 %v1183, 32
        %v2221 = vpop.permute.xlu0 %2220
        %v2223 = vsel %vm1281, %v2171, 0
        %v2226 = vsel %vm1309, %v2221, 0
        %2228 = vmatprep.subr.bf16.mxu0 0
        %2229 = vmatpush1.bf16.msra.mxu0 %v2226
        %2230 = vmatprep.subr.bf16.mxu0 0
        %2231 = vmatpush1.bf16.msra.mxu0 0
        %2232 = vmatprep.subr.bf16.mxu0 0
        %2233 = vmatpush1.bf16.msra.mxu0 0
        %2234 = vmatprep.subr.bf16.mxu0 0
        %2235 = vmatpush1.bf16.msra.mxu0 0
        %2236 = vmatprep.subr.bf16.mxu0 0
        %2237 = vmatpush1.bf16.msra.mxu0 0
        %2238 = vmatprep.subr.bf16.mxu0 0
        %2239 = vmatpush1.bf16.msra.mxu0 0
        %2240 = vmatprep.subr.bf16.mxu0 0
        %2241 = vmatpush1.bf16.msra.mxu0 0
        %2242 = vmatprep.subr.bf16.mxu0 0
        %2243 = vmatpush1.bf16.msra.mxu0 0
        %2244 = vmatprep.subr.bf16.mxu0 0
        %2245 = vmatpush1.bf16.msra.mxu0 0
        %2246 = vmatprep.subr.bf16.mxu0 0
        %2247 = vmatpush1.bf16.msra.mxu0 0
        %2248 = vmatprep.subr.bf16.mxu0 0
        %2249 = vmatpush1.bf16.msra.mxu0 0
        %2250 = vmatprep.subr.bf16.mxu0 0
        %2251 = vmatpush1.bf16.msra.mxu0 0
        %2252 = vmatprep.subr.bf16.mxu0 0
        %2253 = vmatpush1.bf16.msra.mxu0 0
        %2254 = vmatprep.subr.bf16.mxu0 0
        %2255 = vmatpush1.bf16.msra.mxu0 0
        %2256 = vmatprep.subr.bf16.mxu0 0
        %2257 = vmatpush1.bf16.msra.mxu0 0
        %2258 = vmatprep.subr.bf16.mxu0 0
        %2259 = vmatpush1.bf16.msra.mxu0 0
        %2260 = vmatprep.mubr.bf16.mxu0 0
        %2261 = vmatmul.mubr.bf16.gmra.mrb[0].mxu0 %v2223
        %v2262 = vpop.f32.mrb[0].mxu0
        %v2263 = vadd.f32 0.0, %v2262
        %v2264 = vpop.f32.mrb[0].mxu0
        %v2265 = vpop.f32.mrb[0].mxu0
        %v2266 = vpop.f32.mrb[0].mxu0
        %2267 = vdwg.mxu0
        %v2268 = vpack.c.bf16 %v2215, %v2215
        %v2269 = vpack.c.bf16 %v2263, %v2263
        %v2272 = vunpack.c.l.b16 %v2268
        %v2273 = vunpack.c.l.b16 %v2269
        %v2274 = vpack.c.b16 %v2273, %v2272
        %v2279 = vunpack.c.l.b16 %v1174
        %v2280 = vunpack.c.l.b16 %v1175
        %v2281 = vunpack.c.l.b16 %v1176
        %v2282 = vunpack.c.l.b16 %v1177
        %v2283 = vpack.c.b16 %v2280, %v2279
        %v2284 = vpack.c.b16 %v2282, %v2281
        %v2288 = vsel %vm1184, %v2274, 0
        %2290 = vmatprep.subr.bf16.mxu0 0
        %2291 = vmatpush1.bf16.msra.mxu0 %v2283
        %2292 = vmatprep.subr.bf16.mxu0 0
        %2293 = vmatpush1.bf16.msra.mxu0 %v2284
        %2294 = vmatprep.subr.bf16.mxu0 0
        %2295 = vmatpush1.bf16.msra.mxu0 0
        %2296 = vmatprep.subr.bf16.mxu0 0
        %2297 = vmatpush1.bf16.msra.mxu0 0
        %2298 = vmatprep.subr.bf16.mxu0 0
        %2299 = vmatpush1.bf16.msra.mxu0 0
        %2300 = vmatprep.subr.bf16.mxu0 0
        %2301 = vmatpush1.bf16.msra.mxu0 0
        %2302 = vmatprep.subr.bf16.mxu0 0
        %2303 = vmatpush1.bf16.msra.mxu0 0
        %2304 = vmatprep.subr.bf16.mxu0 0
        %2305 = vmatpush1.bf16.msra.mxu0 0
        %2306 = vmatprep.subr.bf16.mxu0 0
        %2307 = vmatpush1.bf16.msra.mxu0 0
        %2308 = vmatprep.subr.bf16.mxu0 0
        %2309 = vmatpush1.bf16.msra.mxu0 0
        %2310 = vmatprep.subr.bf16.mxu0 0
        %2311 = vmatpush1.bf16.msra.mxu0 0
        %2312 = vmatprep.subr.bf16.mxu0 0
        %2313 = vmatpush1.bf16.msra.mxu0 0
        %2314 = vmatprep.subr.bf16.mxu0 0
        %2315 = vmatpush1.bf16.msra.mxu0 0
        %2316 = vmatprep.subr.bf16.mxu0 0
        %2317 = vmatpush1.bf16.msra.mxu0 0
        %2318 = vmatprep.subr.bf16.mxu0 0
        %2319 = vmatpush1.bf16.msra.mxu0 0
        %2320 = vmatprep.subr.bf16.mxu0 0
        %2321 = vmatpush1.bf16.msra.mxu0 0
        %2322 = vmatprep.mubr.bf16.mxu0 0
        %2323 = vmatmul.mubr.bf16.gmra.mrb[0].mxu0 %v2288
        %v2324 = vpop.f32.mrb[0].mxu0
        %v2325 = vadd.f32 0.0, %v2324
        %v2326 = vpop.f32.mrb[0].mxu0
        %v2327 = vpop.f32.mrb[0].mxu0
        %v2328 = vadd.f32 0.0, %v2327
        %v2329 = vpop.f32.mrb[0].mxu0
        %2330 = vdwg.mxu0
        %v2331 = vadd.f32 %v2042, %v2325
        %v2332 = vadd.f32 %v2043, %v2328
        %v2333 = vadd.f32 %v849, %v2331
        %v2334 = vadd.f32 %v850, %v2332
        %v2335 = vld [vmem:[%s818] sm:$0x1]
        %v2337 = vlaneseq
        %v2338 = vshrl.u32 %v2337, 7
        %v2339 = vsub.s32 0, %v2338
        %v2340 = vrot.slane %v2335, %v2339
        %v2342 = vadd.f32 %v2333, %v2340
        %v2343 = vadd.f32 %v2334, %v2340
        %v2344 = vld [vmem:[%s821] sm:$0x1]
        %v2345 = vld [vmem:[%s824] sm:$0x1]
        %2346 = vadd.xlane.f32.xlu0 %v2342
        %v2347 = vpop.xlane.xlu0 %2346
        %2348 = vadd.xlane.f32.xlu0 %v2343
        %v2349 = vpop.xlane.xlu0 %2348
        %v2350 = vmul.f32 %v2347, %v858
        %v2351 = vmul.f32 %v2349, %v858
        %v2352 = vsub.f32 %v2342, %v2350
        %v2353 = vsub.f32 %v2343, %v2351
        %v2354 = vmul.f32 %v2352, %v2352
        %v2355 = vmul.f32 %v2353, %v2353
        %2356 = vadd.xlane.f32.xlu0 %v2354
        %v2357 = vpop.xlane.xlu0 %2356
        %2358 = vadd.xlane.f32.xlu0 %v2355
        %v2359 = vpop.xlane.xlu0 %2358
        %v2360 = vmul.f32 %v2357, %v858
        %v2361 = vmul.f32 %v2359, %v858
        %v2362 = vadd.f32 %v2360, 1e-05
        %v2363 = vadd.f32 %v2361, 1e-05
        %v2364 = vrsqrt.pop %v2362
        %v2365 = vrsqrt.pop %v2363
        %v2366 = vmul.f32 %v2352, %v2364
        %v2367 = vmul.f32 %v2353, %v2365
        %v2369 = vlaneseq
        %v2370 = vshrl.u32 %v2369, 7
        %v2371 = vsub.s32 0, %v2370
        %v2372 = vrot.slane %v2344, %v2371
        %v2374 = vmul.f32 %v2366, %v2372
        %v2375 = vmul.f32 %v2367, %v2372
        %v2377 = vlaneseq
        %v2378 = vshrl.u32 %v2377, 7
        %v2379 = vsub.s32 0, %v2378
        %v2380 = vrot.slane %v2345, %v2379
        %v2382 = vadd.f32 %v2374, %v2380
        %v2383 = vadd.f32 %v2375, %v2380
        %v2384 = vpack.c.bf16 %v2382, %v2382
        %v2385 = vpack.c.bf16 %v2383, %v2383
        %v2386 = vld [vmem:[%s712] sm:$0xff]
        %v2387 = vld [vmem:[%s712 + $0x8] sm:$0xff]
        %v2388 = vld [vmem:[%s712 + $0x10] sm:$0xff]
        %v2389 = vld [vmem:[%s712 + $0x18] sm:$0xff]
        %v2390 = vld [vmem:[%s712 + $0x20] sm:$0xff]
        %v2391 = vld [vmem:[%s712 + $0x28] sm:$0xff]
        %v2392 = vld [vmem:[%s712 + $0x30] sm:$0xff]
        %v2393 = vld [vmem:[%s712 + $0x38] sm:$0xff]
        %v2394 = vld [vmem:[%s712 + $0x40] sm:$0xff]
        %v2395 = vld [vmem:[%s712 + $0x48] sm:$0xff]
        %v2396 = vld [vmem:[%s712 + $0x50] sm:$0xff]
        %v2397 = vld [vmem:[%s712 + $0x58] sm:$0xff]
        %v2398 = vld [vmem:[%s712 + $0x60] sm:$0xff]
        %v2399 = vld [vmem:[%s712 + $0x68] sm:$0xff]
        %v2400 = vld [vmem:[%s712 + $0x70] sm:$0xff]
        %v2401 = vld [vmem:[%s712 + $0x78] sm:$0xff]
        %v2402 = vld [vmem:[%s712 + $0x80] sm:$0xff]
        %v2403 = vld [vmem:[%s712 + $0x88] sm:$0xff]
        %v2404 = vld [vmem:[%s712 + $0x90] sm:$0xff]
        %v2405 = vld [vmem:[%s712 + $0x98] sm:$0xff]
        %v2406 = vld [vmem:[%s712 + $0xa0] sm:$0xff]
        %v2407 = vld [vmem:[%s712 + $0xa8] sm:$0xff]
        %v2408 = vld [vmem:[%s712 + $0xb0] sm:$0xff]
        %v2409 = vld [vmem:[%s712 + $0xb8] sm:$0xff]
        %v2410 = vld [vmem:[%s712 + $0xc0] sm:$0xff]
        %v2411 = vld [vmem:[%s712 + $0xc8] sm:$0xff]
        %v2412 = vld [vmem:[%s712 + $0xd0] sm:$0xff]
        %v2413 = vld [vmem:[%s712 + $0xd8] sm:$0xff]
        %v2414 = vld [vmem:[%s712 + $0xe0] sm:$0xff]
        %v2415 = vld [vmem:[%s712 + $0xe8] sm:$0xff]
        %v2416 = vld [vmem:[%s712 + $0xf0] sm:$0xff]
        %v2417 = vld [vmem:[%s712 + $0xf8] sm:$0xff]
        %v2418 = vld [vmem:[%s828] sm:$0xf]
        %v2420 = vlaneseq
        %v2421 = vshrl.u32 %v2420, 7
        %v2422 = vsub.s32 0, %v2421
        %v2423 = vrot.slane %v2418, %v2422
        %v2424 = vlaneseq
        %v2425 = vshrl.u32 %v2424, 7
        %v2426 = vsub.s32 1, %v2425
        %v2427 = vrot.slane %v2418, %v2426
        %v2428 = vlaneseq
        %v2429 = vshrl.u32 %v2428, 7
        %v2430 = vsub.s32 2, %v2429
        %v2431 = vrot.slane %v2418, %v2430
        %v2432 = vlaneseq
        %v2433 = vshrl.u32 %v2432, 7
        %v2434 = vsub.s32 3, %v2433
        %v2435 = vrot.slane %v2418, %v2434
        %v2442 = vunpack.c.l.b16 %v2384
        %v2443 = vunpack.c.l.b16 %v2385
        %v2444 = vpack.c.b16 %v2443, %v2442
        %v2478 = vunpack.c.l.b16 %v2386
        %v2479 = vunpack.c.h.b16 %v2386
        %v2480 = vunpack.c.l.b16 %v2387
        %v2481 = vunpack.c.h.b16 %v2387
        %v2482 = vunpack.c.l.b16 %v2388
        %v2483 = vunpack.c.h.b16 %v2388
        %v2484 = vunpack.c.l.b16 %v2389
        %v2485 = vunpack.c.h.b16 %v2389
        %v2486 = vunpack.c.l.b16 %v2390
        %v2487 = vunpack.c.h.b16 %v2390
        %v2488 = vunpack.c.l.b16 %v2391
        %v2489 = vunpack.c.h.b16 %v2391
        %v2490 = vunpack.c.l.b16 %v2392
        %v2491 = vunpack.c.h.b16 %v2392
        %v2492 = vunpack.c.l.b16 %v2393
        %v2493 = vunpack.c.h.b16 %v2393
        %v2494 = vunpack.c.l.b16 %v2394
        %v2495 = vunpack.c.h.b16 %v2394
        %v2496 = vunpack.c.l.b16 %v2395
        %v2497 = vunpack.c.h.b16 %v2395
        %v2498 = vunpack.c.l.b16 %v2396
        %v2499 = vunpack.c.h.b16 %v2396
        %v2500 = vunpack.c.l.b16 %v2397
        %v2501 = vunpack.c.h.b16 %v2397
        %v2502 = vunpack.c.l.b16 %v2398
        %v2503 = vunpack.c.h.b16 %v2398
        %v2504 = vunpack.c.l.b16 %v2399
        %v2505 = vunpack.c.h.b16 %v2399
        %v2506 = vunpack.c.l.b16 %v2400
        %v2507 = vunpack.c.h.b16 %v2400
        %v2508 = vunpack.c.l.b16 %v2401
        %v2509 = vunpack.c.h.b16 %v2401
        %v2510 = vunpack.c.l.b16 %v2402
        %v2511 = vunpack.c.h.b16 %v2402
        %v2512 = vunpack.c.l.b16 %v2403
        %v2513 = vunpack.c.h.b16 %v2403
        %v2514 = vunpack.c.l.b16 %v2404
        %v2515 = vunpack.c.h.b16 %v2404
        %v2516 = vunpack.c.l.b16 %v2405
        %v2517 = vunpack.c.h.b16 %v2405
        %v2518 = vunpack.c.l.b16 %v2406
        %v2519 = vunpack.c.h.b16 %v2406
        %v2520 = vunpack.c.l.b16 %v2407
        %v2521 = vunpack.c.h.b16 %v2407
        %v2522 = vunpack.c.l.b16 %v2408
        %v2523 = vunpack.c.h.b16 %v2408
        %v2524 = vunpack.c.l.b16 %v2409
        %v2525 = vunpack.c.h.b16 %v2409
        %v2526 = vunpack.c.l.b16 %v2410
        %v2527 = vunpack.c.h.b16 %v2410
        %v2528 = vunpack.c.l.b16 %v2411
        %v2529 = vunpack.c.h.b16 %v2411
        %v2530 = vunpack.c.l.b16 %v2412
        %v2531 = vunpack.c.h.b16 %v2412
        %v2532 = vunpack.c.l.b16 %v2413
        %v2533 = vunpack.c.h.b16 %v2413
        %v2534 = vunpack.c.l.b16 %v2414
        %v2535 = vunpack.c.h.b16 %v2414
        %v2536 = vunpack.c.l.b16 %v2415
        %v2537 = vunpack.c.h.b16 %v2415
        %v2538 = vunpack.c.l.b16 %v2416
        %v2539 = vunpack.c.h.b16 %v2416
        %v2540 = vunpack.c.l.b16 %v2417
        %v2541 = vunpack.c.h.b16 %v2417
        %v2542 = vpack.c.b16 %v2482, %v2478
        %v2543 = vpack.c.b16 %v2483, %v2479
        %v2544 = vpack.c.b16 %v2484, %v2480
        %v2545 = vpack.c.b16 %v2485, %v2481
        %v2546 = vpack.c.b16 %v2490, %v2486
        %v2547 = vpack.c.b16 %v2491, %v2487
        %v2548 = vpack.c.b16 %v2492, %v2488
        %v2549 = vpack.c.b16 %v2493, %v2489
        %v2550 = vpack.c.b16 %v2498, %v2494
        %v2551 = vpack.c.b16 %v2499, %v2495
        %v2552 = vpack.c.b16 %v2500, %v2496
        %v2553 = vpack.c.b16 %v2501, %v2497
        %v2554 = vpack.c.b16 %v2506, %v2502
        %v2555 = vpack.c.b16 %v2507, %v2503
        %v2556 = vpack.c.b16 %v2508, %v2504
        %v2557 = vpack.c.b16 %v2509, %v2505
        %v2558 = vpack.c.b16 %v2514, %v2510
        %v2559 = vpack.c.b16 %v2515, %v2511
        %v2560 = vpack.c.b16 %v2516, %v2512
        %v2561 = vpack.c.b16 %v2517, %v2513
        %v2562 = vpack.c.b16 %v2522, %v2518
        %v2563 = vpack.c.b16 %v2523, %v2519
        %v2564 = vpack.c.b16 %v2524, %v2520
        %v2565 = vpack.c.b16 %v2525, %v2521
        %v2566 = vpack.c.b16 %v2530, %v2526
        %v2567 = vpack.c.b16 %v2531, %v2527
        %v2568 = vpack.c.b16 %v2532, %v2528
        %v2569 = vpack.c.b16 %v2533, %v2529
        %v2570 = vpack.c.b16 %v2538, %v2534
        %v2571 = vpack.c.b16 %v2539, %v2535
        %v2572 = vpack.c.b16 %v2540, %v2536
        %v2573 = vpack.c.b16 %v2541, %v2537
        %2606 = vmatprep.subr.bf16.mxu0 %v2543
        %2607 = vmatpush1.bf16.msra.mxu0 %v2542
        %2608 = vmatprep.subr.bf16.mxu0 %v2547
        %2609 = vmatpush1.bf16.msra.mxu0 %v2546
        %2610 = vmatprep.subr.bf16.mxu0 %v2551
        %2611 = vmatpush1.bf16.msra.mxu0 %v2550
        %2612 = vmatprep.subr.bf16.mxu0 %v2555
        %2613 = vmatpush1.bf16.msra.mxu0 %v2554
        %2614 = vmatprep.subr.bf16.mxu0 %v2559
        %2615 = vmatpush1.bf16.msra.mxu0 %v2558
        %2616 = vmatprep.subr.bf16.mxu0 %v2563
        %2617 = vmatpush1.bf16.msra.mxu0 %v2562
        %2618 = vmatprep.subr.bf16.mxu0 %v2567
        %2619 = vmatpush1.bf16.msra.mxu0 %v2566
        %2620 = vmatprep.subr.bf16.mxu0 %v2571
        %2621 = vmatpush1.bf16.msra.mxu0 %v2570
        %2622 = vmatprep.subr.bf16.mxu0 0
        %2623 = vmatpush1.bf16.msra.mxu0 0
        %2624 = vmatprep.subr.bf16.mxu0 0
        %2625 = vmatpush1.bf16.msra.mxu0 0
        %2626 = vmatprep.subr.bf16.mxu0 0
        %2627 = vmatpush1.bf16.msra.mxu0 0
        %2628 = vmatprep.subr.bf16.mxu0 0
        %2629 = vmatpush1.bf16.msra.mxu0 0
        %2630 = vmatprep.subr.bf16.mxu0 0
        %2631 = vmatpush1.bf16.msra.mxu0 0
        %2632 = vmatprep.subr.bf16.mxu0 0
        %2633 = vmatpush1.bf16.msra.mxu0 0
        %2634 = vmatprep.subr.bf16.mxu0 0
        %2635 = vmatpush1.bf16.msra.mxu0 0
        %2636 = vmatprep.subr.bf16.mxu0 0
        %2637 = vmatpush1.bf16.msra.mxu0 0
        %2638 = vmatprep.mubr.bf16.mxu0 0
        %2639 = vmatmul.mubr.bf16.gmra.mrb[0].mxu0 %v2444
        %v2640 = vpop.f32.mrb[0].mxu0
        %v2641 = vadd.f32 %v2423, %v2640
        %v2642 = vpop.f32.mrb[0].mxu0
        %v2643 = vadd.f32 %v2427, %v2642
        %v2644 = vpop.f32.mrb[0].mxu0
        %v2645 = vadd.f32 %v2423, %v2644
        %v2646 = vpop.f32.mrb[0].mxu0
        %v2647 = vadd.f32 %v2427, %v2646
        %2648 = vdwg.mxu0
        %2649 = vmatprep.subr.bf16.mxu0 %v2545
        %2650 = vmatpush1.bf16.msra.mxu0 %v2544
        %2651 = vmatprep.subr.bf16.mxu0 %v2549
        %2652 = vmatpush1.bf16.msra.mxu0 %v2548
        %2653 = vmatprep.subr.bf16.mxu0 %v2553
        %2654 = vmatpush1.bf16.msra.mxu0 %v2552
        %2655 = vmatprep.subr.bf16.mxu0 %v2557
        %2656 = vmatpush1.bf16.msra.mxu0 %v2556
        %2657 = vmatprep.subr.bf16.mxu0 %v2561
        %2658 = vmatpush1.bf16.msra.mxu0 %v2560
        %2659 = vmatprep.subr.bf16.mxu0 %v2565
        %2660 = vmatpush1.bf16.msra.mxu0 %v2564
        %2661 = vmatprep.subr.bf16.mxu0 %v2569
        %2662 = vmatpush1.bf16.msra.mxu0 %v2568
        %2663 = vmatprep.subr.bf16.mxu0 %v2573
        %2664 = vmatpush1.bf16.msra.mxu0 %v2572
        %2665 = vmatprep.subr.bf16.mxu0 0
        %2666 = vmatpush1.bf16.msra.mxu0 0
        %2667 = vmatprep.subr.bf16.mxu0 0
        %2668 = vmatpush1.bf16.msra.mxu0 0
        %2669 = vmatprep.subr.bf16.mxu0 0
        %2670 = vmatpush1.bf16.msra.mxu0 0
        %2671 = vmatprep.subr.bf16.mxu0 0
        %2672 = vmatpush1.bf16.msra.mxu0 0
        %2673 = vmatprep.subr.bf16.mxu0 0
        %2674 = vmatpush1.bf16.msra.mxu0 0
        %2675 = vmatprep.subr.bf16.mxu0 0
        %2676 = vmatpush1.bf16.msra.mxu0 0
        %2677 = vmatprep.subr.bf16.mxu0 0
        %2678 = vmatpush1.bf16.msra.mxu0 0
        %2679 = vmatprep.subr.bf16.mxu0 0
        %2680 = vmatpush1.bf16.msra.mxu0 0
        %2681 = vmatprep.mubr.bf16.mxu0 0
        %2682 = vmatmul.mubr.bf16.gmra.mrb[0].mxu0 %v2444
        %v2683 = vpop.f32.mrb[0].mxu0
        %v2684 = vadd.f32 %v2431, %v2683
        %v2685 = vpop.f32.mrb[0].mxu0
        %v2686 = vadd.f32 %v2435, %v2685
        %v2687 = vpop.f32.mrb[0].mxu0
        %v2688 = vadd.f32 %v2431, %v2687
        %v2689 = vpop.f32.mrb[0].mxu0
        %v2690 = vadd.f32 %v2435, %v2689
        %2691 = vdwg.mxu0
        %v2692 = vmul.f32 %v2641, 1.702
        %v2693 = vmul.f32 %v2643, 1.702
        %v2694 = vmul.f32 %v2684, 1.702
        %v2695 = vmul.f32 %v2686, 1.702
        %v2696 = vmul.f32 %v2645, 1.702
        %v2697 = vmul.f32 %v2647, 1.702
        %v2698 = vmul.f32 %v2688, 1.702
        %v2699 = vmul.f32 %v2690, 1.702
        %v2700 = vxor.u32 %v2692, 2147483648
        %v2701 = vxor.u32 %v2693, 2147483648
        %v2702 = vxor.u32 %v2694, 2147483648
        %v2703 = vxor.u32 %v2695, 2147483648
        %v2704 = vxor.u32 %v2696, 2147483648
        %v2705 = vxor.u32 %v2697, 2147483648
        %v2706 = vxor.u32 %v2698, 2147483648
        %v2707 = vxor.u32 %v2699, 2147483648
        %v2708 = vmul.f32 %v2700, 1.442695
        %v2709 = vpow.pop %v2708
        %v2710 = vmul.f32 %v2701, 1.442695
        %v2711 = vpow.pop %v2710
        %v2712 = vmul.f32 %v2702, 1.442695
        %v2713 = vpow.pop %v2712
        %v2714 = vmul.f32 %v2703, 1.442695
        %v2715 = vpow.pop %v2714
        %v2716 = vmul.f32 %v2704, 1.442695
        %v2717 = vpow.pop %v2716
        %v2718 = vmul.f32 %v2705, 1.442695
        %v2719 = vpow.pop %v2718
        %v2720 = vmul.f32 %v2706, 1.442695
        %v2721 = vpow.pop %v2720
        %v2722 = vmul.f32 %v2707, 1.442695
        %v2723 = vpow.pop %v2722
        %v2724 = vadd.f32 %v2709, 1.0
        %v2725 = vadd.f32 %v2711, 1.0
        %v2726 = vadd.f32 %v2713, 1.0
        %v2727 = vadd.f32 %v2715, 1.0
        %v2728 = vadd.f32 %v2717, 1.0
        %v2729 = vadd.f32 %v2719, 1.0
        %v2730 = vadd.f32 %v2721, 1.0
        %v2731 = vadd.f32 %v2723, 1.0
        %v2732 = vrcp.pop %v2724
        %v2733 = vmul.f32 1.0, %v2732
        %v2734 = vrcp.pop %v2725
        %v2735 = vmul.f32 1.0, %v2734
        %v2736 = vrcp.pop %v2726
        %v2737 = vmul.f32 1.0, %v2736
        %v2738 = vrcp.pop %v2727
        %v2739 = vmul.f32 1.0, %v2738
        %v2740 = vrcp.pop %v2728
        %v2741 = vmul.f32 1.0, %v2740
        %v2742 = vrcp.pop %v2729
        %v2743 = vmul.f32 1.0, %v2742
        %v2744 = vrcp.pop %v2730
        %v2745 = vmul.f32 1.0, %v2744
        %v2746 = vrcp.pop %v2731
        %v2747 = vmul.f32 1.0, %v2746
        %v2748 = vmul.f32 %v2641, %v2733
        %v2749 = vmul.f32 %v2643, %v2735
        %v2750 = vmul.f32 %v2684, %v2737
        %v2751 = vmul.f32 %v2686, %v2739
        %v2752 = vmul.f32 %v2645, %v2741
        %v2753 = vmul.f32 %v2647, %v2743
        %v2754 = vmul.f32 %v2688, %v2745
        %v2755 = vmul.f32 %v2690, %v2747
        %v2756 = vpack.c.bf16 %v2748, %v2748
        %v2757 = vpack.c.bf16 %v2749, %v2749
        %v2758 = vpack.c.bf16 %v2750, %v2750
        %v2759 = vpack.c.bf16 %v2751, %v2751
        %v2760 = vpack.c.bf16 %v2752, %v2752
        %v2761 = vpack.c.bf16 %v2753, %v2753
        %v2762 = vpack.c.bf16 %v2754, %v2754
        %v2763 = vpack.c.bf16 %v2755, %v2755
        %v2764 = vld [vmem:[%s721] sm:$0xf]
        %v2765 = vld [vmem:[%s721 + $0x4] sm:$0xf]
        %v2766 = vld [vmem:[%s721 + $0x8] sm:$0xf]
        %v2767 = vld [vmem:[%s721 + $0xc] sm:$0xf]
        %v2768 = vld [vmem:[%s721 + $0x10] sm:$0xf]
        %v2769 = vld [vmem:[%s721 + $0x14] sm:$0xf]
        %v2770 = vld [vmem:[%s721 + $0x18] sm:$0xf]
        %v2771 = vld [vmem:[%s721 + $0x1c] sm:$0xf]
        %v2772 = vld [vmem:[%s721 + $0x20] sm:$0xf]
        %v2773 = vld [vmem:[%s721 + $0x24] sm:$0xf]
        %v2774 = vld [vmem:[%s721 + $0x28] sm:$0xf]
        %v2775 = vld [vmem:[%s721 + $0x2c] sm:$0xf]
        %v2776 = vld [vmem:[%s721 + $0x30] sm:$0xf]
        %v2777 = vld [vmem:[%s721 + $0x34] sm:$0xf]
        %v2778 = vld [vmem:[%s721 + $0x38] sm:$0xf]
        %v2779 = vld [vmem:[%s721 + $0x3c] sm:$0xf]
        %v2780 = vld [vmem:[%s721 + $0x40] sm:$0xf]
        %v2781 = vld [vmem:[%s721 + $0x44] sm:$0xf]
        %v2782 = vld [vmem:[%s721 + $0x48] sm:$0xf]
        %v2783 = vld [vmem:[%s721 + $0x4c] sm:$0xf]
        %v2784 = vld [vmem:[%s721 + $0x50] sm:$0xf]
        %v2785 = vld [vmem:[%s721 + $0x54] sm:$0xf]
        %v2786 = vld [vmem:[%s721 + $0x58] sm:$0xf]
        %v2787 = vld [vmem:[%s721 + $0x5c] sm:$0xf]
        %v2788 = vld [vmem:[%s721 + $0x60] sm:$0xf]
        %v2789 = vld [vmem:[%s721 + $0x64] sm:$0xf]
        %v2790 = vld [vmem:[%s721 + $0x68] sm:$0xf]
        %v2791 = vld [vmem:[%s721 + $0x6c] sm:$0xf]
        %v2792 = vld [vmem:[%s721 + $0x70] sm:$0xf]
        %v2793 = vld [vmem:[%s721 + $0x74] sm:$0xf]
        %v2794 = vld [vmem:[%s721 + $0x78] sm:$0xf]
        %v2795 = vld [vmem:[%s721 + $0x7c] sm:$0xf]
        %v2796 = vld [vmem:[%s721 + $0x80] sm:$0xf]
        %v2797 = vld [vmem:[%s721 + $0x84] sm:$0xf]
        %v2798 = vld [vmem:[%s721 + $0x88] sm:$0xf]
        %v2799 = vld [vmem:[%s721 + $0x8c] sm:$0xf]
        %v2800 = vld [vmem:[%s721 + $0x90] sm:$0xf]
        %v2801 = vld [vmem:[%s721 + $0x94] sm:$0xf]
        %v2802 = vld [vmem:[%s721 + $0x98] sm:$0xf]
        %v2803 = vld [vmem:[%s721 + $0x9c] sm:$0xf]
        %v2804 = vld [vmem:[%s721 + $0xa0] sm:$0xf]
        %v2805 = vld [vmem:[%s721 + $0xa4] sm:$0xf]
        %v2806 = vld [vmem:[%s721 + $0xa8] sm:$0xf]
        %v2807 = vld [vmem:[%s721 + $0xac] sm:$0xf]
        %v2808 = vld [vmem:[%s721 + $0xb0] sm:$0xf]
        %v2809 = vld [vmem:[%s721 + $0xb4] sm:$0xf]
        %v2810 = vld [vmem:[%s721 + $0xb8] sm:$0xf]
        %v2811 = vld [vmem:[%s721 + $0xbc] sm:$0xf]
        %v2812 = vld [vmem:[%s721 + $0xc0] sm:$0xf]
        %v2813 = vld [vmem:[%s721 + $0xc4] sm:$0xf]
        %v2814 = vld [vmem:[%s721 + $0xc8] sm:$0xf]
        %v2815 = vld [vmem:[%s721 + $0xcc] sm:$0xf]
        %v2816 = vld [vmem:[%s721 + $0xd0] sm:$0xf]
        %v2817 = vld [vmem:[%s721 + $0xd4] sm:$0xf]
        %v2818 = vld [vmem:[%s721 + $0xd8] sm:$0xf]
        %v2819 = vld [vmem:[%s721 + $0xdc] sm:$0xf]
        %v2820 = vld [vmem:[%s721 + $0xe0] sm:$0xf]
        %v2821 = vld [vmem:[%s721 + $0xe4] sm:$0xf]
        %v2822 = vld [vmem:[%s721 + $0xe8] sm:$0xf]
        %v2823 = vld [vmem:[%s721 + $0xec] sm:$0xf]
        %v2824 = vld [vmem:[%s721 + $0xf0] sm:$0xf]
        %v2825 = vld [vmem:[%s721 + $0xf4] sm:$0xf]
        %v2826 = vld [vmem:[%s721 + $0xf8] sm:$0xf]
        %v2827 = vld [vmem:[%s721 + $0xfc] sm:$0xf]
        %v2828 = vld [vmem:[%s831] sm:$0x1]
        %v2830 = vlaneseq
        %v2831 = vshrl.u32 %v2830, 7
        %v2832 = vsub.s32 0, %v2831
        %v2833 = vrot.slane %v2828, %v2832
        %v2843 = vunpack.c.l.b16 %v2756
        %v2844 = vunpack.c.l.b16 %v2757
        %v2845 = vunpack.c.l.b16 %v2758
        %v2846 = vunpack.c.l.b16 %v2759
        %v2847 = vunpack.c.l.b16 %v2760
        %v2848 = vunpack.c.l.b16 %v2761
        %v2849 = vunpack.c.l.b16 %v2762
        %v2850 = vunpack.c.l.b16 %v2763
        %v2851 = vpack.c.b16 %v2847, %v2843
        %v2852 = vpack.c.b16 %v2848, %v2844
        %v2853 = vpack.c.b16 %v2849, %v2845
        %v2854 = vpack.c.b16 %v2850, %v2846
        %v2923 = vunpack.c.l.b16 %v2764
        %v2924 = vunpack.c.l.b16 %v2765
        %v2925 = vunpack.c.l.b16 %v2766
        %v2926 = vunpack.c.l.b16 %v2767
        %v2927 = vunpack.c.l.b16 %v2768
        %v2928 = vunpack.c.l.b16 %v2769
        %v2929 = vunpack.c.l.b16 %v2770
        %v2930 = vunpack.c.l.b16 %v2771
        %v2931 = vunpack.c.l.b16 %v2772
        %v2932 = vunpack.c.l.b16 %v2773
        %v2933 = vunpack.c.l.b16 %v2774
        %v2934 = vunpack.c.l.b16 %v2775
        %v2935 = vunpack.c.l.b16 %v2776
        %v2936 = vunpack.c.l.b16 %v2777
        %v2937 = vunpack.c.l.b16 %v2778
        %v2938 = vunpack.c.l.b16 %v2779
        %v2939 = vunpack.c.l.b16 %v2780
        %v2940 = vunpack.c.l.b16 %v2781
        %v2941 = vunpack.c.l.b16 %v2782
        %v2942 = vunpack.c.l.b16 %v2783
        %v2943 = vunpack.c.l.b16 %v2784
        %v2944 = vunpack.c.l.b16 %v2785
        %v2945 = vunpack.c.l.b16 %v2786
        %v2946 = vunpack.c.l.b16 %v2787
        %v2947 = vunpack.c.l.b16 %v2788
        %v2948 = vunpack.c.l.b16 %v2789
        %v2949 = vunpack.c.l.b16 %v2790
        %v2950 = vunpack.c.l.b16 %v2791
        %v2951 = vunpack.c.l.b16 %v2792
        %v2952 = vunpack.c.l.b16 %v2793
        %v2953 = vunpack.c.l.b16 %v2794
        %v2954 = vunpack.c.l.b16 %v2795
        %v2955 = vunpack.c.l.b16 %v2796
        %v2956 = vunpack.c.l.b16 %v2797
        %v2957 = vunpack.c.l.b16 %v2798
        %v2958 = vunpack.c.l.b16 %v2799
        %v2959 = vunpack.c.l.b16 %v2800
        %v2960 = vunpack.c.l.b16 %v2801
        %v2961 = vunpack.c.l.b16 %v2802
        %v2962 = vunpack.c.l.b16 %v2803
        %v2963 = vunpack.c.l.b16 %v2804
        %v2964 = vunpack.c.l.b16 %v2805
        %v2965 = vunpack.c.l.b16 %v2806
        %v2966 = vunpack.c.l.b16 %v2807
        %v2967 = vunpack.c.l.b16 %v2808
        %v2968 = vunpack.c.l.b16 %v2809
        %v2969 = vunpack.c.l.b16 %v2810
        %v2970 = vunpack.c.l.b16 %v2811
        %v2971 = vunpack.c.l.b16 %v2812
        %v2972 = vunpack.c.l.b16 %v2813
        %v2973 = vunpack.c.l.b16 %v2814
        %v2974 = vunpack.c.l.b16 %v2815
        %v2975 = vunpack.c.l.b16 %v2816
        %v2976 = vunpack.c.l.b16 %v2817
        %v2977 = vunpack.c.l.b16 %v2818
        %v2978 = vunpack.c.l.b16 %v2819
        %v2979 = vunpack.c.l.b16 %v2820
        %v2980 = vunpack.c.l.b16 %v2821
        %v2981 = vunpack.c.l.b16 %v2822
        %v2982 = vunpack.c.l.b16 %v2823
        %v2983 = vunpack.c.l.b16 %v2824
        %v2984 = vunpack.c.l.b16 %v2825
        %v2985 = vunpack.c.l.b16 %v2826
        %v2986 = vunpack.c.l.b16 %v2827
        %v2987 = vpack.c.b16 %v2924, %v2923
        %v2988 = vpack.c.b16 %v2926, %v2925
        %v2989 = vpack.c.b16 %v2928, %v2927
        %v2990 = vpack.c.b16 %v2930, %v2929
        %v2991 = vpack.c.b16 %v2932, %v2931
        %v2992 = vpack.c.b16 %v2934, %v2933
        %v2993 = vpack.c.b16 %v2936, %v2935
        %v2994 = vpack.c.b16 %v2938, %v2937
        %v2995 = vpack.c.b16 %v2940, %v2939
        %v2996 = vpack.c.b16 %v2942, %v2941
        %v2997 = vpack.c.b16 %v2944, %v2943
        %v2998 = vpack.c.b16 %v2946, %v2945
        %v2999 = vpack.c.b16 %v2948, %v2947
        %v3000 = vpack.c.b16 %v2950, %v2949
        %v3001 = vpack.c.b16 %v2952, %v2951
        %v3002 = vpack.c.b16 %v2954, %v2953
        %v3003 = vpack.c.b16 %v2956, %v2955
        %v3004 = vpack.c.b16 %v2958, %v2957
        %v3005 = vpack.c.b16 %v2960, %v2959
        %v3006 = vpack.c.b16 %v2962, %v2961
        %v3007 = vpack.c.b16 %v2964, %v2963
        %v3008 = vpack.c.b16 %v2966, %v2965
        %v3009 = vpack.c.b16 %v2968, %v2967
        %v3010 = vpack.c.b16 %v2970, %v2969
        %v3011 = vpack.c.b16 %v2972, %v2971
        %v3012 = vpack.c.b16 %v2974, %v2973
        %v3013 = vpack.c.b16 %v2976, %v2975
        %v3014 = vpack.c.b16 %v2978, %v2977
        %v3015 = vpack.c.b16 %v2980, %v2979
        %v3016 = vpack.c.b16 %v2982, %v2981
        %v3017 = vpack.c.b16 %v2984, %v2983
        %v3018 = vpack.c.b16 %v2986, %v2985
        %3051 = vmatprep.subr.bf16.mxu0 0
        %3052 = vmatpush1.bf16.msra.mxu0 %v2987
        %3053 = vmatprep.subr.bf16.mxu0 0
        %3054 = vmatpush1.bf16.msra.mxu0 %v2988
        %3055 = vmatprep.subr.bf16.mxu0 0
        %3056 = vmatpush1.bf16.msra.mxu0 %v2989
        %3057 = vmatprep.subr.bf16.mxu0 0
        %3058 = vmatpush1.bf16.msra.mxu0 %v2990
        %3059 = vmatprep.subr.bf16.mxu0 0
        %3060 = vmatpush1.bf16.msra.mxu0 %v2991
        %3061 = vmatprep.subr.bf16.mxu0 0
        %3062 = vmatpush1.bf16.msra.mxu0 %v2992
        %3063 = vmatprep.subr.bf16.mxu0 0
        %3064 = vmatpush1.bf16.msra.mxu0 %v2993
        %3065 = vmatprep.subr.bf16.mxu0 0
        %3066 = vmatpush1.bf16.msra.mxu0 %v2994
        %3067 = vmatprep.subr.bf16.mxu0 0
        %3068 = vmatpush1.bf16.msra.mxu0 %v2995
        %3069 = vmatprep.subr.bf16.mxu0 0
        %3070 = vmatpush1.bf16.msra.mxu0 %v2996
        %3071 = vmatprep.subr.bf16.mxu0 0
        %3072 = vmatpush1.bf16.msra.mxu0 %v2997
        %3073 = vmatprep.subr.bf16.mxu0 0
        %3074 = vmatpush1.bf16.msra.mxu0 %v2998
        %3075 = vmatprep.subr.bf16.mxu0 0
        %3076 = vmatpush1.bf16.msra.mxu0 %v2999
        %3077 = vmatprep.subr.bf16.mxu0 0
        %3078 = vmatpush1.bf16.msra.mxu0 %v3000
        %3079 = vmatprep.subr.bf16.mxu0 0
        %3080 = vmatpush1.bf16.msra.mxu0 %v3001
        %3081 = vmatprep.subr.bf16.mxu0 0
        %3082 = vmatpush1.bf16.msra.mxu0 %v3002
        %3083 = vmatprep.mubr.bf16.mxu0 %v2852
        %3084 = vmatmul.mubr.bf16.gmra.mrb[0].mxu0 %v2851
        %v3085 = vpop.f32.mrb[0].mxu0
        %v3086 = vadd.f32 %v2833, %v3085
        %v3087 = vpop.f32.mrb[0].mxu0
        %v3088 = vpop.f32.mrb[0].mxu0
        %v3089 = vadd.f32 %v2833, %v3088
        %v3090 = vpop.f32.mrb[0].mxu0
        %3091 = vdwg.mxu0
        %3092 = vmatprep.subr.bf16.mxu0 0
        %3093 = vmatpush1.bf16.msra.mxu0 %v3003
        %3094 = vmatprep.subr.bf16.mxu0 0
        %3095 = vmatpush1.bf16.msra.mxu0 %v3004
        %3096 = vmatprep.subr.bf16.mxu0 0
        %3097 = vmatpush1.bf16.msra.mxu0 %v3005
        %3098 = vmatprep.subr.bf16.mxu0 0
        %3099 = vmatpush1.bf16.msra.mxu0 %v3006
        %3100 = vmatprep.subr.bf16.mxu0 0
        %3101 = vmatpush1.bf16.msra.mxu0 %v3007
        %3102 = vmatprep.subr.bf16.mxu0 0
        %3103 = vmatpush1.bf16.msra.mxu0 %v3008
        %3104 = vmatprep.subr.bf16.mxu0 0
        %3105 = vmatpush1.bf16.msra.mxu0 %v3009
        %3106 = vmatprep.subr.bf16.mxu0 0
        %3107 = vmatpush1.bf16.msra.mxu0 %v3010
        %3108 = vmatprep.subr.bf16.mxu0 0
        %3109 = vmatpush1.bf16.msra.mxu0 %v3011
        %3110 = vmatprep.subr.bf16.mxu0 0
        %3111 = vmatpush1.bf16.msra.mxu0 %v3012
        %3112 = vmatprep.subr.bf16.mxu0 0
        %3113 = vmatpush1.bf16.msra.mxu0 %v3013
        %3114 = vmatprep.subr.bf16.mxu0 0
        %3115 = vmatpush1.bf16.msra.mxu0 %v3014
        %3116 = vmatprep.subr.bf16.mxu0 0
        %3117 = vmatpush1.bf16.msra.mxu0 %v3015
        %3118 = vmatprep.subr.bf16.mxu0 0
        %3119 = vmatpush1.bf16.msra.mxu0 %v3016
        %3120 = vmatprep.subr.bf16.mxu0 0
        %3121 = vmatpush1.bf16.msra.mxu0 %v3017
        %3122 = vmatprep.subr.bf16.mxu0 0
        %3123 = vmatpush1.bf16.msra.mxu0 %v3018
        %3124 = vmatprep.mubr.bf16.mxu0 %v2854
        %3125 = vmatmul.mubr.bf16.gmra.mrb[0].mxu0 %v2853
        %v3126 = vpop.f32.mrb[0].mxu0
        %v3127 = vadd.f32 %v3086, %v3126
        %v3128 = vpop.f32.mrb[0].mxu0
        %v3129 = vpop.f32.mrb[0].mxu0
        %v3130 = vadd.f32 %v3089, %v3129
        %v3131 = vpop.f32.mrb[0].mxu0
        %3132 = vdwg.mxu0
        %v3133 = vadd.f32 %v2342, %v3127
        %v3134 = vadd.f32 %v2343, %v3130
        %3135 = vst [vmem:[#allocation2] sm:$0xff] %v3133
        %3136 = vst [vmem:[#allocation2 + $0x8] sm:$0xff] %v3134
        %p3137 = scmp.eq.s32.totalorder %s44, 1
        // Predicated region
        $region121: #{tpu_custom_call.1} parent=83 // pred_check
          %p3138 = pneg %p3137
        $region122: #{tpu_custom_call.1} parent=83 // pred_check_branch
          %3140 = sbr.rel (%p3138) target = $region124
        $region123: #{tpu_custom_call.1} parent=83 // pred_region
          %v3141 = vlaneseq
          %v3142 = vshrl.u32 %v3141, 7
          %s3143 = sld [smem:[#allocation5]]
          %v3144 = vstv %s3143
          %vm3145 = vcmp.eq.s32.totalorder %v3142, %v3144
          %v3146 = vsel %vm3145, 1, 0
          %v3147 = vcvt.s32.f32 %v3146
          %v3148 = vmul.f32 %v3133, %v3147
          %v3149 = vrot.slane %v3148, 4
          %v3150 = vadd.f32 %v3148, %v3149
          %v3151 = vrot.slane %v3150, 2
          %v3152 = vadd.f32 %v3150, %v3151
          %v3153 = vrot.slane %v3152, 1
          %v3154 = vadd.f32 %v3152, %v3153
          %s3155 = sld [smem:[#allocation5 + $0x1]]
          %v3156 = vstv %s3155
          %vm3157 = vcmp.eq.s32.totalorder %v3142, %v3156
          %v3158 = vsel %vm3157, 1, 0
          %v3159 = vcvt.s32.f32 %v3158
          %v3160 = vmul.f32 %v3134, %v3159
          %v3161 = vrot.slane %v3160, 4
          %v3162 = vadd.f32 %v3160, %v3161
          %v3163 = vrot.slane %v3162, 2
          %v3164 = vadd.f32 %v3162, %v3163
          %v3165 = vrot.slane %v3164, 1
          %v3166 = vadd.f32 %v3164, %v3165
          %vm3167 = vcmask 1040384
          %v3168 = vsel %vm3167, %v3154, %v3166
          %v3169 = vld [vmem:[%s14] sm:$0x1]
          %v3170 = vld [vmem:[%s15] sm:$0x1]
          %vm3171 = vcmask 1041408
          %v3172 = vsel %vm3171, %v3168, 0.0
          %3173 = vadd.xlane.f32.xlu0 %v3172
          %v3174 = vpop.xlane.xlu0 %3173
          %v3175 = vmul.f32 %v3174, %v858
          %v3176 = vsub.f32 %v3168, %v3175
          %v3177 = vmul.f32 %v3176, %v3176
          %v3178 = vsel %vm3171, %v3177, 0.0
          %3179 = vadd.xlane.f32.xlu0 %v3178
          %v3180 = vpop.xlane.xlu0 %3179
          %v3181 = vmul.f32 %v3180, %v858
          %v3182 = vadd.f32 %v3181, 1e-05
          %v3183 = vrsqrt.pop %v3182
          %v3184 = vmul.f32 %v3176, %v3183
          %v3186 = vlaneseq
          %v3187 = vshrl.u32 %v3186, 7
          %v3188 = vsub.s32 0, %v3187
          %v3189 = vrot.slane %v3169, %v3188
          %v3191 = vmul.f32 %v3184, %v3189
          %v3193 = vlaneseq
          %v3194 = vshrl.u32 %v3193, 7
          %v3195 = vsub.s32 0, %v3194
          %v3196 = vrot.slane %v3170, %v3195
          %v3198 = vadd.f32 %v3191, %v3196
          %v3199 = vpack.c.bf16 %v3198, %v3198
          %v3200 = vld [vmem:[#allocation18] sm:$0xf]
          %v3201 = vld [vmem:[#allocation18 + $0x4] sm:$0xf]
          %v3202 = vld [vmem:[#allocation18 + $0x8] sm:$0xf]
          %v3203 = vld [vmem:[#allocation18 + $0xc] sm:$0xf]
          %v3204 = vld [vmem:[#allocation18 + $0x10] sm:$0xf]
          %v3205 = vld [vmem:[#allocation18 + $0x14] sm:$0xf]
          %v3206 = vld [vmem:[#allocation18 + $0x18] sm:$0xf]
          %v3207 = vld [vmem:[#allocation18 + $0x1c] sm:$0xf]
          %v3208 = vld [vmem:[#allocation18 + $0x20] sm:$0xf]
          %v3209 = vld [vmem:[#allocation18 + $0x24] sm:$0xf]
          %v3210 = vld [vmem:[#allocation18 + $0x28] sm:$0xf]
          %v3211 = vld [vmem:[#allocation18 + $0x2c] sm:$0xf]
          %v3212 = vld [vmem:[#allocation18 + $0x30] sm:$0xf]
          %v3213 = vld [vmem:[#allocation18 + $0x34] sm:$0xf]
          %v3214 = vld [vmem:[#allocation18 + $0x38] sm:$0xf]
          %v3215 = vld [vmem:[#allocation18 + $0x3c] sm:$0xf]
          %v3232 = vunpack.c.l.b16 %v3200
          %v3233 = vunpack.c.l.b16 %v3201
          %v3234 = vunpack.c.l.b16 %v3202
          %v3235 = vunpack.c.l.b16 %v3203
          %v3236 = vunpack.c.l.b16 %v3204
          %v3237 = vunpack.c.l.b16 %v3205
          %v3238 = vunpack.c.l.b16 %v3206
          %v3239 = vunpack.c.l.b16 %v3207
          %v3240 = vunpack.c.l.b16 %v3208
          %v3241 = vunpack.c.l.b16 %v3209
          %v3242 = vunpack.c.l.b16 %v3210
          %v3243 = vunpack.c.l.b16 %v3211
          %v3244 = vunpack.c.l.b16 %v3212
          %v3245 = vunpack.c.l.b16 %v3213
          %v3246 = vunpack.c.l.b16 %v3214
          %v3247 = vunpack.c.l.b16 %v3215
          %v3248 = vpack.c.b16 %v3233, %v3232
          %v3249 = vpack.c.b16 %v3235, %v3234
          %v3250 = vpack.c.b16 %v3237, %v3236
          %v3251 = vpack.c.b16 %v3239, %v3238
          %v3252 = vpack.c.b16 %v3241, %v3240
          %v3253 = vpack.c.b16 %v3243, %v3242
          %v3254 = vpack.c.b16 %v3245, %v3244
          %v3255 = vpack.c.b16 %v3247, %v3246
          %3264 = vmatprep.subr.bf16.mxu0 0
          %3265 = vmatpush1.bf16.msra.mxu0 %v3248
          %3266 = vmatprep.subr.bf16.mxu0 0
          %3267 = vmatpush1.bf16.msra.mxu0 %v3249
          %3268 = vmatprep.subr.bf16.mxu0 0
          %3269 = vmatpush1.bf16.msra.mxu0 %v3250
          %3270 = vmatprep.subr.bf16.mxu0 0
          %3271 = vmatpush1.bf16.msra.mxu0 %v3251
          %3272 = vmatprep.subr.bf16.mxu0 0
          %3273 = vmatpush1.bf16.msra.mxu0 %v3252
          %3274 = vmatprep.subr.bf16.mxu0 0
          %3275 = vmatpush1.bf16.msra.mxu0 %v3253
          %3276 = vmatprep.subr.bf16.mxu0 0
          %3277 = vmatpush1.bf16.msra.mxu0 %v3254
          %3278 = vmatprep.subr.bf16.mxu0 0
          %3279 = vmatpush1.bf16.msra.mxu0 %v3255
          %3280 = vmatprep.subr.bf16.mxu0 0
          %3281 = vmatpush1.bf16.msra.mxu0 0
          %3282 = vmatprep.subr.bf16.mxu0 0
          %3283 = vmatpush1.bf16.msra.mxu0 0
          %3284 = vmatprep.subr.bf16.mxu0 0
          %3285 = vmatpush1.bf16.msra.mxu0 0
          %3286 = vmatprep.subr.bf16.mxu0 0
          %3287 = vmatpush1.bf16.msra.mxu0 0
          %3288 = vmatprep.subr.bf16.mxu0 0
          %3289 = vmatpush1.bf16.msra.mxu0 0
          %3290 = vmatprep.subr.bf16.mxu0 0
          %3291 = vmatpush1.bf16.msra.mxu0 0
          %3292 = vmatprep.subr.bf16.mxu0 0
          %3293 = vmatpush1.bf16.msra.mxu0 0
          %3294 = vmatprep.subr.bf16.mxu0 0
          %3295 = vmatpush1.bf16.msra.mxu0 0
          %3296 = vmatprep.mubr.bf16.mxu0 0
          %3297 = vmatmul.mubr.bf16.gmra.mrb[0].mxu0 %v3199
          %v3298 = vpop.f32.mrb[0].mxu0
          %v3299 = vadd.f32 0.0, %v3298
          %v3300 = vpop.f32.mrb[0].mxu0
          %v3301 = vpop.f32.mrb[0].mxu0
          %v3302 = vpop.f32.mrb[0].mxu0
          %3303 = vdwg.mxu0
          %v3304 = vmul.f32 %v3299, %v3299
          %v3305 = vsel %vm3171, %v3304, 0.0
          %3306 = vadd.xlane.f32.xlu0 %v3305
          %v3307 = vpop.xlane.xlu0 %3306
          %v3308 = vadd.f32 %v3307, 1e-12
          %v3309 = vrsqrt.pop %v3308
          %v3310 = vmul.f32 %v3299, %v3309
          %3311 = vst [vmem:[#allocation20] sm:$0x3] %v3310
        $region124: #{tpu_custom_call.1} parent=83 // pred_fallthru
          _
        // Predicated region
        $region125: #{tpu_custom_call.1} parent=83 // pred_check
          %p3312 = pneg %p453
        $region126: #{tpu_custom_call.1} parent=83 // pred_check_branch
          %3314 = sbr.rel (%p3312) target = $region128
        $region127: #{tpu_custom_call.1} parent=83 // pred_region
          %s3316 = ssub.s32 32, 32
          %3317 = vsyncadd [#allocation8], %s3316
          %s3319 = sshll.u32 [#allocation20], 4
          %s3320 = int_to_ptr.vmem [resolvable:$true] %s3319
          %3322 = dma.vmem_to_hbm [thread:$0]  %s3320, 32, %s17, [#allocation8]
        $region128: #{tpu_custom_call.1} parent=83 // pred_fallthru
          _
        // Predicated region
        $region129: #{tpu_custom_call.1} parent=83 // pred_check
          %p3323 = pneg %p453
        $region130: #{tpu_custom_call.1} parent=83 // pred_check_branch
          %3325 = sbr.rel (%p3323) target = $region132
        $region131: #{tpu_custom_call.1} parent=83 // pred_region
          %3326 = dma.done [#allocation8], 32
        $region132: #{tpu_custom_call.1} parent=83 // pred_fallthru
          _
      $region84: #{tpu_custom_call.1} parent=5 // pred_fallthru
        _
      %p3327 = scmp.le.s32.totalorder 2, %s39
      // Predicated region
      $region133: #{tpu_custom_call.1} parent=5 // pred_check
        %p3328 = pneg %p3327
      $region134: #{tpu_custom_call.1} parent=5 // pred_check_branch
        %3330 = sbr.rel (%p3328) target = $region136
      $region135: #{tpu_custom_call.1} parent=5 // pred_region
        %s3331 = ssub.s32 %s39, 2
      $region136: #{tpu_custom_call.1} parent=5 // pred_fallthru
        _
    $region6: #{tpu_custom_call.1} parent=1 // loop_footer
      %s43 = sadd.s32 1, %s39
    $region7: #{tpu_custom_call.1} parent=1 // loop_footer_branch
      %38 = sbr.rel target = $region3
    $region8: #{tpu_custom_call.1} parent=1 // loop_exit
      _
    %3332 = vsyncpa [#allocation7], 1
    %s3333 = scalar_lea.sflag [#allocation7], 1
    %3334 = vsyncpa %s3333, 1
    %3335 = vsyncpa [#allocation10], 1
    %s3336 = scalar_lea.sflag [#allocation10], 1
    %3337 = vsyncpa %s3336, 1
    %3338 = vsyncpa [#allocation13], 1
    %s3339 = scalar_lea.sflag [#allocation13], 1
    %3340 = vsyncpa %s3339, 1
    %3341 = vsyncpa [#allocation16], 1
    %s3342 = scalar_lea.sflag [#allocation16], 1
    %3343 = vsyncpa %s3342, 1
    %3344 = vsyncpa [#allocation19], 1
    %3345 = vsyncpa [#allocation8], 1
    %s3346 = scalar_lea.sflag [#allocation8], 1
    %3347 = vsyncpa %s3346, 1

</llo_original>
